<compile_context>
chip_gen: v7x
topology: tpu7x:2x2x1
jax: 0.10.0
libtpu: 0.0.40
codegen_flags: <defaults>
</compile_context>

<pallas_src>
import functools
import math

import jax
import jax.numpy as jnp
from jax.experimental import pallas as pl
from jax.experimental.pallas import tpu as pltpu

VMEM = pltpu.MemorySpace.VMEM
SMEM = pltpu.MemorySpace.SMEM


# --------------------------------------------------------------------------
# Generic fused linear kernel: out = act(a @ w + b)
# Used for: encoder MLP, hoisted cross-attention K/V projection, VQGAN
# pointwise (1x1-conv-as-matmul) decoder.  Small shapes -> whole-array VMEM.
# --------------------------------------------------------------------------
def _linear_kernel(a_ref, w_ref, b_ref, o_ref, *, activation):
    y = jnp.dot(a_ref[...], w_ref[...], preferred_element_type=jnp.float32)
    y = y + b_ref[...]
    if activation == "tanh":
        y = jnp.tanh(y)
    o_ref[...] = y.astype(o_ref.dtype)


def pallas_linear(a, w, b, activation=None):
    M, _ = a.shape
    N = w.shape[1]
    return pl.pallas_call(
        functools.partial(_linear_kernel, activation=activation),
        out_shape=jax.ShapeDtypeStruct((M, N), jnp.float32),
        in_specs=[pl.BlockSpec(memory_space=VMEM)] * 3,
        out_specs=pl.BlockSpec(memory_space=VMEM),
    )(a, w, b.reshape(1, N))


# --------------------------------------------------------------------------
# Vocabulary logits: h2 @ wvoc, tiled over the vocab dimension so the weight
# streams HBM->VMEM behind the MXU (and fits VMEM at real DALLE sizes).
# --------------------------------------------------------------------------
def _logits_kernel(h_ref, w_ref, o_ref):
    o_ref[...] = jnp.dot(h_ref[...], w_ref[...],
                         preferred_element_type=jnp.float32)


def pallas_logits(h, w, *, tn=128):
    B, H = h.shape
    V = w.shape[1]
    return pl.pallas_call(
        _logits_kernel,
        out_shape=jax.ShapeDtypeStruct((B, V), jnp.float32),
        grid=(V // tn,),
        in_specs=[pl.BlockSpec((B, H), lambda j: (0, 0)),
                  pl.BlockSpec((H, tn), lambda j: (0, j))],
        out_specs=pl.BlockSpec((B, tn), lambda j: (0, j)),
        compiler_params=pltpu.CompilerParams(
            dimension_semantics=("parallel",)),
    )(h, w)


# --------------------------------------------------------------------------
# Single decoder step (one autoregressive token):
#   - fused QKV projection (one MXU matmul)
#   - KV cache read from HBM, new row inserted at position t, ONLY the new row
#     written back to the aliased HBM cache (single-row DMA)
#   - causal self-attention over the cache + cross-attention over precomputed
#     encoder K/V, all heads batched via flash-style einsums
# Cache / encoder-KV layout: [N, T, head_dim] with N = batch*num_heads
# (batch-major), so scores/ctx are single-batch-dim dot_generals on the MXU.
# --------------------------------------------------------------------------
def _attn_step_kernel(t_ref, x_ref, kc_hbm, vc_hbm, ek_ref, ev_ref, mask_ref,
                      wqkv_ref, wo_ref, wcq_ref, wco_ref,
                      h_out_ref, kout_hbm, vout_hbm,
                      k_vmem, v_vmem, krow, vrow, sem,
                      *, num_heads, head_dim):
    t = t_ref[0]
    x = x_ref[...]                                   # [Be, H]
    Be, H = x.shape
    N, T, dh = k_vmem.shape
    scale = 1.0 / math.sqrt(head_dim)

    # 1) Start pulling the (stale) KV cache HBM -> VMEM; overlap with QKV.
    cpk = pltpu.make_async_copy(kc_hbm, k_vmem, sem.at[0])
    cpv = pltpu.make_async_copy(vc_hbm, v_vmem, sem.at[1])
    cpk.start()
    cpv.start()

    # 2) Fused QKV projection: one [Be,H] x [H,3H] MXU matmul.
    qkv = jnp.dot(x, wqkv_ref[...], preferred_element_type=jnp.float32)
    q = qkv[:, :H].reshape(N, 1, dh)
    k_new = qkv[:, H:2 * H].reshape(N, 1, dh)
    v_new = qkv[:, 2 * H:].reshape(N, 1, dh)

    cpk.wait()
    cpv.wait()

    # 3) Write back ONLY the new row to the aliased HBM cache.
    krow[...] = k_new
    vrow[...] = v_new
    wbk = pltpu.make_async_copy(krow, kout_hbm.at[:, pl.ds(t, 1), :], sem.at[0])
    wbv = pltpu.make_async_copy(vrow, vout_hbm.at[:, pl.ds(t, 1), :], sem.at[1])
    wbk.start()
    wbv.start()

    # 4) Causal self-attention over the cache, all heads batched over 'n'.
    #    Position t of the stale cache is overridden with the new K/V via a
    #    cheap select (no full-cache blend, no dynamic VMEM store needed).
    pos = jax.lax.broadcasted_iota(jnp.int32, (1, 1, T), 2)
    s_new = jnp.sum(q * k_new, axis=-1, keepdims=True)               # [N,1,1]
    scores = jnp.einsum('nqd,nkd->nqk', q, k_vmem[...],
                        preferred_element_type=jnp.float32)          # [N,1,T]
    scores = jnp.where(pos == t, s_new, scores) * scale
    scores = jnp.where(pos <= t, scores, -1e30)
    scores = scores - jnp.max(scores, axis=-1, keepdims=True)
    p = jnp.exp(scores)
    p = p * pl.reciprocal(jnp.sum(p, axis=-1, keepdims=True), approx=True)
    p_t = jnp.sum(jnp.where(pos == t, p, 0.0), axis=-1, keepdims=True)
    p_hist = jnp.where(pos == t, 0.0, p)
    ctx = jnp.einsum('nqk,nkd->nqd', p_hist, v_vmem[...],
                     preferred_element_type=jnp.float32) + p_t * v_new
    h1 = x + jnp.dot(ctx.reshape(Be, H), wo_ref[...],
                     preferred_element_type=jnp.float32)

    # 5) Cross-attention over precomputed (step-invariant) encoder K/V.
    qc = jnp.dot(h1, wcq_ref[...],
                 preferred_element_type=jnp.float32).reshape(N, 1, dh)
    cs = jnp.einsum('nqd,nkd->nqk', qc, ek_ref[...],
                    preferred_element_type=jnp.float32) * scale      # [N,1,S]
    msk = mask_ref[...][:, None, :]                                  # [N,1,S]
    cs = jnp.where(msk > 0.5, cs, -1e30)
    cs = cs - jnp.max(cs, axis=-1, keepdims=True)
    cp = jnp.exp(cs) * (msk > 0.5).astype(jnp.float32)
    # guard: a fully-masked row attends to nothing (zero context) instead of
    # degenerating to a uniform distribution over masked positions.
    denom = jnp.maximum(jnp.sum(cp, axis=-1, keepdims=True), 1e-20)
    cp = cp * pl.reciprocal(denom, approx=True)
    cctx = jnp.einsum('nqk,nkd->nqd', cp, ev_ref[...],
                      preferred_element_type=jnp.float32)
    h2 = h1 + jnp.dot(cctx.reshape(Be, H), wco_ref[...],
                      preferred_element_type=jnp.float32)

    h_out_ref[...] = h2

    # Ensure the single-row cache writebacks landed before kernel exit.
    wbk.wait()
    wbv.wait()


def make_attn_step(num_heads, head_dim, Be, T):
    H = num_heads * head_dim
    N = Be * num_heads
    kernel = functools.partial(_attn_step_kernel,
                               num_heads=num_heads, head_dim=head_dim)

    def step(t_arr, x, k_cache, v_cache, enc_k, enc_v, mask_n,
             wqkv, wo, wcq, wco):
        return pl.pallas_call(
            kernel,
            out_shape=(
                jax.ShapeDtypeStruct((Be, H), jnp.float32),
                jax.ShapeDtypeStruct((N, T, head_dim), jnp.float32),
                jax.ShapeDtypeStruct((N, T, head_dim), jnp.float32),
            ),
            in_specs=[
                pl.BlockSpec(memory_space=SMEM),     # t
                pl.BlockSpec(memory_space=VMEM),     # x
                pl.BlockSpec(memory_space=pl.ANY),   # k cache (HBM, aliased)
                pl.BlockSpec(memory_space=pl.ANY),   # v cache (HBM, aliased)
                pl.BlockSpec(memory_space=VMEM),     # enc K  [N,S,dh]
                pl.BlockSpec(memory_space=VMEM),     # enc V  [N,S,dh]
                pl.BlockSpec(memory_space=VMEM),     # mask   [N,S]
                pl.BlockSpec(memory_space=VMEM),     # wqkv
                pl.BlockSpec(memory_space=VMEM),     # wo
                pl.BlockSpec(memory_space=VMEM),     # wcq
                pl.BlockSpec(memory_space=VMEM),     # wco
            ],
            out_specs=(
                pl.BlockSpec(memory_space=VMEM),
                pl.BlockSpec(memory_space=pl.ANY),
                pl.BlockSpec(memory_space=pl.ANY),
            ),
            scratch_shapes=[
                pltpu.VMEM((N, T, head_dim), jnp.float32),   # K cache copy
                pltpu.VMEM((N, T, head_dim), jnp.float32),   # V cache copy
                pltpu.VMEM((N, 1, head_dim), jnp.float32),   # new K row
                pltpu.VMEM((N, 1, head_dim), jnp.float32),   # new V row
                pltpu.SemaphoreType.DMA((2,)),
            ],
            # k_cache -> kout, v_cache -> vout: in-place HBM cache update.
            input_output_aliases={2: 1, 3: 2},
        )(t_arr, x, k_cache, v_cache, enc_k, enc_v, mask_n, wqkv, wo, wcq, wco)

    return step


# --------------------------------------------------------------------------
# DALLE.forward
# --------------------------------------------------------------------------
def dalle_forward(params, input_ids, attention_mask, sample_key, *,
                  sequence_length, start_token_id, num_heads, head_dim,
                  temperature=1.0, top_k=50, num_return_sequences=1):
    B, S = input_ids.shape
    H = num_heads * head_dim

    # --- dalle_encoder (DALLEEncoderWrapper: encoder -> linear) ---
    emb = params["txt_embed"][input_ids] * attention_mask[:, :, None]
    flat = emb.reshape(B * S, H)
    e1 = pallas_linear(flat, params["enc_w1"], params["enc_b1"],
                       activation="tanh")
    e2 = pallas_linear(e1, params["enc_w2"], params["enc_b2"])
    hidden_states = e2.reshape(B, S, H)

    # hidden_states.repeat_interleave(num_return_sequences, dim=0)
    hidden_states = jnp.repeat(hidden_states, num_return_sequences, axis=0)
    mask_rep = jnp.repeat(attention_mask, num_return_sequences, axis=0)
    Be = B * num_return_sequences
    N = Be * num_heads
    T = sequence_length
    V = params["dec_wvoc"].shape[1]

    # --- hoisted (step-invariant) cross-attention K/V projections ---
    enc_flat = hidden_states.reshape(Be * S, H)
    enc_kv = pallas_linear(enc_flat, params["dec_wckv"],
                           jnp.zeros((2 * H,), jnp.float32))
    enc_k = enc_kv[:, :H].reshape(Be, S, num_heads, head_dim)
    enc_v = enc_kv[:, H:].reshape(Be, S, num_heads, head_dim)
    enc_k = jnp.transpose(enc_k, (0, 2, 1, 3)).reshape(N, S, head_dim)
    enc_v = jnp.transpose(enc_v, (0, 2, 1, 3)).reshape(N, S, head_dim)
    mask_n = jnp.repeat(mask_rep.astype(jnp.float32), num_heads, axis=0)

    # prepare_generation_inputs: preallocated HBM KV cache + start tokens.
    # TODO(synk): synthetic decoder has a single self+cross attention layer;
    # kv_num_hidden_layers > 1 of the real model is not replicated.
    k_cache0 = jnp.zeros((N, T, head_dim), jnp.float32)
    v_cache0 = jnp.zeros((N, T, head_dim), jnp.float32)
    cur0 = jnp.full((Be,), start_token_id, jnp.int32)
    tokens0 = jnp.zeros((Be, T), jnp.int32)

    attn_step = make_attn_step(num_heads, head_dim, Be, T)
    wqkv = params["dec_wqkv"]
    wo = params["dec_wo"]
    wcq = params["dec_wcq"]
    wco = params["dec_wco"]
    wvoc = params["dec_wvoc"]
    dec_embed = params["dec_embed"]
    kk = min(top_k, V)

    def body(t, carry):
        cur, kc, vc, toks = carry
        x = jnp.take(dec_embed, cur, axis=0)                    # [Be, H]
        t_arr = jnp.full((1,), t, jnp.int32)
        h, kc, vc = attn_step(t_arr, x, kc, vc, enc_k, enc_v, mask_n,
                              wqkv, wo, wcq, wco)
        logits = pallas_logits(h, wvoc)                         # [Be, V]
        vals, inds = jax.lax.top_k(logits, kk)                  # topk
        skey = jax.random.fold_in(sample_key, t)
        # softmax(vals / temperature).multinomial(1)
        choice = jax.random.categorical(skey, vals / temperature)
        nxt = jnp.take_along_axis(inds, choice[:, None], axis=1)[:, 0]
        toks = jax.lax.dynamic_update_slice(toks, nxt[:, None], (0, t))
        return nxt, kc, vc, toks

    _, _, _, latent_ids = jax.lax.fori_loop(
        0, sequence_length, body, (cur0, k_cache0, v_cache0, tokens0))

    # --- vqgan_decoder ---
    # TODO(synk): the full VQGAN conv/upsample stack is replaced by a codebook
    # lookup + pointwise (1x1-conv-as-matmul) decoder; compute is in Pallas.
    # The kernel writes a lane-dense [*, 128] slab; channels are sliced here.
    g = int(math.isqrt(sequence_length))
    z = jnp.take(params["vq_embed"], latent_ids.reshape(-1), axis=0)
    img_f = pallas_linear(z, params["vq_w"], params["vq_b"], activation="tanh")
    img = img_f[:, :3].reshape(Be, g, g, 3)                     # NHWC
    return jnp.transpose(img, (0, 3, 1, 2))                     # -> NCHW


dalle_forward_jit = jax.jit(
    dalle_forward,
    static_argnames=("sequence_length", "start_token_id", "num_heads",
                     "head_dim", "temperature", "top_k",
                     "num_return_sequences"))


# --------------------------------------------------------------------------
if __name__ == "__main__":
    B = 2
    S_ENC = 8
    NUM_HEADS = 2
    HEAD_DIM = 128
    H = NUM_HEADS * HEAD_DIM            # 256 (lane-dense)
    VOCAB_TXT = 64
    VOCAB_IMG = 256
    SEQ_LEN = 16                        # -> 4x4 latent grid
    START_TOKEN = 0
    TOP_K = 50
    TEMPERATURE = 1.0
    NUM_RETURN = 1

    key = jax.random.PRNGKey(0)
    ks = jax.random.split(key, 20)

    def init(k, shape, scale=0.02):
        return (scale * jax.random.normal(k, shape)).astype(jnp.float32)

    params = {
        "txt_embed": init(ks[0], (VOCAB_TXT, H)),
        "enc_w1": init(ks[1], (H, H)), "enc_b1": init(ks[2], (H,)),
        "enc_w2": init(ks[3], (H, H)), "enc_b2": init(ks[4], (H,)),
        "dec_embed": init(ks[5], (VOCAB_IMG, H)),
        "dec_wqkv": init(ks[6], (H, 3 * H)),
        "dec_wo": init(ks[7], (H, H)),
        "dec_wcq": init(ks[8], (H, H)),
        "dec_wckv": init(ks[9], (H, 2 * H)),
        "dec_wco": init(ks[10], (H, H)),
        "dec_wvoc": init(ks[11], (H, VOCAB_IMG)),
        "vq_embed": init(ks[12], (VOCAB_IMG, H)),
        # 1x1 conv weight padded to 128 output lanes; only first 3 used (RGB).
        "vq_w": init(ks[13], (H, 128)),
        "vq_b": init(ks[14], (128,)),
    }

    input_ids = jax.random.randint(ks[15], (B, S_ENC), 0, VOCAB_TXT)
    attention_mask = jnp.ones((B, S_ENC), jnp.float32).at[1, 6:].set(0.0)
    sample_key = jax.random.PRNGKey(42)

    img = dalle_forward_jit(
        params, input_ids, attention_mask, sample_key,
        sequence_length=SEQ_LEN, start_token_id=START_TOKEN,
        num_heads=NUM_HEADS, head_dim=HEAD_DIM,
        temperature=TEMPERATURE, top_k=TOP_K,
        num_return_sequences=NUM_RETURN)

    jax.block_until_ready(img)
    assert img.shape == (B * NUM_RETURN, 3, 4, 4), img.shape
    print("KERNEL_OK")
</pallas_src>

<mosaic_0001>
module attributes {stable_mosaic.version = 11 : i64} {
  func.func @_linear_kernel(%arg0: memref<16x256xf32, #tpu.memory_space<vmem>>, %arg1: memref<256x256xf32, #tpu.memory_space<vmem>>, %arg2: memref<1x256xf32, #tpu.memory_space<vmem>>, %arg3: memref<16x256xf32, #tpu.memory_space<vmem>>) attributes {dimension_semantics = [], scalar_prefetch = 0 : i64, scratch_operands = 0 : i64, tpu.core_type = #tpu.core_type<tc>} {
    %c0 = arith.constant 0 : index
    %c0_0 = arith.constant 0 : index
    %0 = vector.load %arg0[%c0, %c0_0] : memref<16x256xf32, #tpu.memory_space<vmem>>, vector<16x256xf32>
    %c0_1 = arith.constant 0 : index
    %c0_2 = arith.constant 0 : index
    %1 = vector.load %arg1[%c0_1, %c0_2] : memref<256x256xf32, #tpu.memory_space<vmem>>, vector<256x256xf32>
    %cst = arith.constant dense<0.000000e+00> : vector<16x256xf32>
    %2 = tpu.matmul %0, %1, %cst {dimension_numbers = #tpu.dot_dimension_numbers<[1], [0], [0], [1], [0, 0, 1, 1], [], []>} : vector<16x256xf32>, vector<256x256xf32>, vector<16x256xf32> -> vector<16x256xf32>
    %c0_3 = arith.constant 0 : index
    %c0_4 = arith.constant 0 : index
    %3 = vector.load %arg2[%c0_3, %c0_4] : memref<1x256xf32, #tpu.memory_space<vmem>>, vector<1x256xf32>
    %4 = vector.broadcast %3 : vector<1x256xf32> to vector<16x256xf32>
    %5 = arith.addf %2, %4 : vector<16x256xf32>
    %c0_5 = arith.constant 0 : index
    %c0_6 = arith.constant 0 : index
    %6 = vector.load %arg3[%c0_5, %c0_6] : memref<16x256xf32, #tpu.memory_space<vmem>>, vector<16x256xf32>
    tpu.vector_store %arg3[%c0_5, %c0_6], %5 {strides = array<i32>} : memref<16x256xf32, #tpu.memory_space<vmem>>, vector<16x256xf32>,
    return
  }
}

module attributes {stable_mosaic.version = 11 : i64} {
  func.func @_linear_kernel(%arg0: memref<16x256xf32, #tpu.memory_space<vmem>>, %arg1: memref<256x256xf32, #tpu.memory_space<vmem>>, %arg2: memref<1x256xf32, #tpu.memory_space<vmem>>, %arg3: memref<16x256xf32, #tpu.memory_space<vmem>>) attributes {dimension_semantics = [], scalar_prefetch = 0 : i64, scratch_operands = 0 : i64, tpu.core_type = #tpu.core_type<tc>} {
    %c0 = arith.constant 0 : index
    %c0_0 = arith.constant 0 : index
    %0 = vector.load %arg0[%c0, %c0_0] : memref<16x256xf32, #tpu.memory_space<vmem>>, vector<16x256xf32>
    %c0_1 = arith.constant 0 : index
    %c0_2 = arith.constant 0 : index
    %1 = vector.load %arg1[%c0_1, %c0_2] : memref<256x256xf32, #tpu.memory_space<vmem>>, vector<256x256xf32>
    %cst = arith.constant dense<0.000000e+00> : vector<16x256xf32>
    %2 = tpu.matmul %0, %1, %cst {dimension_numbers = #tpu.dot_dimension_numbers<[1], [0], [0], [1], [0, 0, 1, 1], [], []>} : vector<16x256xf32>, vector<256x256xf32>, vector<16x256xf32> -> vector<16x256xf32>
    %c0_3 = arith.constant 0 : index
    %c0_4 = arith.constant 0 : index
    %3 = vector.load %arg2[%c0_3, %c0_4] : memref<1x256xf32, #tpu.memory_space<vmem>>, vector<1x256xf32>
    %4 = vector.broadcast %3 : vector<1x256xf32> to vector<16x256xf32>
    %5 = arith.addf %2, %4 : vector<16x256xf32>
    %6 = math.tanh %5 : vector<16x256xf32>
    %c0_5 = arith.constant 0 : index
    %c0_6 = arith.constant 0 : index
    %7 = vector.load %arg3[%c0_5, %c0_6] : memref<16x256xf32, #tpu.memory_space<vmem>>, vector<16x256xf32>
    tpu.vector_store %arg3[%c0_5, %c0_6], %6 {strides = array<i32>} : memref<16x256xf32, #tpu.memory_space<vmem>>, vector<16x256xf32>,
    return
  }
}

module attributes {stable_mosaic.version = 11 : i64} {
  func.func @_linear_kernel(%arg0: memref<16x256xf32, #tpu.memory_space<vmem>>, %arg1: memref<256x512xf32, #tpu.memory_space<vmem>>, %arg2: memref<1x512xf32, #tpu.memory_space<vmem>>, %arg3: memref<16x512xf32, #tpu.memory_space<vmem>>) attributes {dimension_semantics = [], scalar_prefetch = 0 : i64, scratch_operands = 0 : i64, tpu.core_type = #tpu.core_type<tc>} {
    %c0 = arith.constant 0 : index
    %c0_0 = arith.constant 0 : index
    %0 = vector.load %arg0[%c0, %c0_0] : memref<16x256xf32, #tpu.memory_space<vmem>>, vector<16x256xf32>
    %c0_1 = arith.constant 0 : index
    %c0_2 = arith.constant 0 : index
    %1 = vector.load %arg1[%c0_1, %c0_2] : memref<256x512xf32, #tpu.memory_space<vmem>>, vector<256x512xf32>
    %cst = arith.constant dense<0.000000e+00> : vector<16x512xf32>
    %2 = tpu.matmul %0, %1, %cst {dimension_numbers = #tpu.dot_dimension_numbers<[1], [0], [0], [1], [0, 0, 1, 1], [], []>} : vector<16x256xf32>, vector<256x512xf32>, vector<16x512xf32> -> vector<16x512xf32>
    %c0_3 = arith.constant 0 : index
    %c0_4 = arith.constant 0 : index
    %3 = vector.load %arg2[%c0_3, %c0_4] : memref<1x512xf32, #tpu.memory_space<vmem>>, vector<1x512xf32>
    %4 = vector.broadcast %3 : vector<1x512xf32> to vector<16x512xf32>
    %5 = arith.addf %2, %4 : vector<16x512xf32>
    %c0_5 = arith.constant 0 : index
    %c0_6 = arith.constant 0 : index
    %6 = vector.load %arg3[%c0_5, %c0_6] : memref<16x512xf32, #tpu.memory_space<vmem>>, vector<16x512xf32>
    tpu.vector_store %arg3[%c0_5, %c0_6], %5 {strides = array<i32>} : memref<16x512xf32, #tpu.memory_space<vmem>>, vector<16x512xf32>,
    return
  }
}

module attributes {stable_mosaic.version = 11 : i64} {
  func.func @_attn_step_kernel(%arg0: memref<1xi32, #tpu.memory_space<smem>>, %arg1: memref<2x256xf32, #tpu.memory_space<vmem>>, %arg2: memref<4x16x128xf32, #tpu.memory_space<any>>, %arg3: memref<4x16x128xf32, #tpu.memory_space<any>>, %arg4: memref<4x8x128xf32, #tpu.memory_space<vmem>>, %arg5: memref<4x8x128xf32, #tpu.memory_space<vmem>>, %arg6: memref<4x8xf32, #tpu.memory_space<vmem>>, %arg7: memref<256x768xf32, #tpu.memory_space<vmem>>, %arg8: memref<256x256xf32, #tpu.memory_space<vmem>>, %arg9: memref<256x256xf32, #tpu.memory_space<vmem>>, %arg10: memref<256x256xf32, #tpu.memory_space<vmem>>, %arg11: memref<2x256xf32, #tpu.memory_space<vmem>>, %arg12: memref<4x16x128xf32, #tpu.memory_space<any>>, %arg13: memref<4x16x128xf32, #tpu.memory_space<any>>, %arg14: memref<4x16x128xf32, #tpu.memory_space<vmem>>, %arg15: memref<4x16x128xf32, #tpu.memory_space<vmem>>, %arg16: memref<4x1x128xf32, #tpu.memory_space<vmem>>, %arg17: memref<4x1x128xf32, #tpu.memory_space<vmem>>, %arg18: memref<2x!tpu.dma_semaphore, #tpu.memory_space<semaphore_mem>>) attributes {dimension_semantics = [], scalar_prefetch = 0 : i64, scratch_operands = 5 : i64, tpu.core_type = #tpu.core_type<tc>} {
    %c0 = arith.constant 0 : index
    %0 = memref.load %arg0[%c0] : memref<1xi32, #tpu.memory_space<smem>>
    %c0_0 = arith.constant 0 : index
    %c0_1 = arith.constant 0 : index
    %1 = vector.load %arg1[%c0_0, %c0_1] : memref<2x256xf32, #tpu.memory_space<vmem>>, vector<2x256xf32>
    %c0_i32 = arith.constant 0 : i32
    %2 = tpu.memref_slice %arg18[%c0_i32] : memref<2x!tpu.dma_semaphore, #tpu.memory_space<semaphore_mem>> -> memref<1x!tpu.dma_semaphore, #tpu.memory_space<semaphore_mem>>
    %3 = tpu.memref_squeeze %2 : memref<1x!tpu.dma_semaphore, #tpu.memory_space<semaphore_mem>> -> memref<!tpu.dma_semaphore, #tpu.memory_space<semaphore_mem>>
    tpu.enqueue_dma source(%arg2 : memref<4x16x128xf32, #tpu.memory_space<any>>) target(%arg14 : memref<4x16x128xf32, #tpu.memory_space<vmem>>) target_semaphore(%3 : memref<!tpu.dma_semaphore, #tpu.memory_space<semaphore_mem>>)
    %c1_i32 = arith.constant 1 : i32
    %4 = tpu.memref_slice %arg18[%c1_i32] : memref<2x!tpu.dma_semaphore, #tpu.memory_space<semaphore_mem>> -> memref<1x!tpu.dma_semaphore, #tpu.memory_space<semaphore_mem>>
    %5 = tpu.memref_squeeze %4 : memref<1x!tpu.dma_semaphore, #tpu.memory_space<semaphore_mem>> -> memref<!tpu.dma_semaphore, #tpu.memory_space<semaphore_mem>>
    tpu.enqueue_dma source(%arg3 : memref<4x16x128xf32, #tpu.memory_space<any>>) target(%arg15 : memref<4x16x128xf32, #tpu.memory_space<vmem>>) target_semaphore(%5 : memref<!tpu.dma_semaphore, #tpu.memory_space<semaphore_mem>>)
    %c0_2 = arith.constant 0 : index
    %c0_3 = arith.constant 0 : index
    %6 = vector.load %arg7[%c0_2, %c0_3] : memref<256x768xf32, #tpu.memory_space<vmem>>, vector<256x768xf32>
    %cst = arith.constant dense<0.000000e+00> : vector<2x768xf32>
    %7 = tpu.matmul %1, %6, %cst {dimension_numbers = #tpu.dot_dimension_numbers<[1], [0], [0], [1], [0, 0, 1, 1], [], []>} : vector<2x256xf32>, vector<256x768xf32>, vector<2x768xf32> -> vector<2x768xf32>
    %8 = vector.extract_strided_slice %7 {offsets = [0, 0], sizes = [2, 256], strides = [1, 1]} : vector<2x768xf32> to vector<2x256xf32>
    %9 = vector.shape_cast %8 : vector<2x256xf32> to vector<4x1x128xf32>
    %10 = vector.extract_strided_slice %7 {offsets = [0, 256], sizes = [2, 256], strides = [1, 1]} : vector<2x768xf32> to vector<2x256xf32>
    %11 = vector.shape_cast %10 : vector<2x256xf32> to vector<4x1x128xf32>
    %12 = vector.extract_strided_slice %7 {offsets = [0, 512], sizes = [2, 256], strides = [1, 1]} : vector<2x768xf32> to vector<2x256xf32>
    %13 = vector.shape_cast %12 : vector<2x256xf32> to vector<4x1x128xf32>
    %c0_i32_4 = arith.constant 0 : i32
    %14 = tpu.memref_slice %arg18[%c0_i32_4] : memref<2x!tpu.dma_semaphore, #tpu.memory_space<semaphore_mem>> -> memref<1x!tpu.dma_semaphore, #tpu.memory_space<semaphore_mem>>
    %15 = tpu.memref_squeeze %14 : memref<1x!tpu.dma_semaphore, #tpu.memory_space<semaphore_mem>> -> memref<!tpu.dma_semaphore, #tpu.memory_space<semaphore_mem>>
    tpu.wait_dma2 semaphore(%15 : memref<!tpu.dma_semaphore, #tpu.memory_space<semaphore_mem>>) src(%arg2 : memref<4x16x128xf32, #tpu.memory_space<any>>) dst(%arg14 : memref<4x16x128xf32, #tpu.memory_space<vmem>>)
    %c1_i32_5 = arith.constant 1 : i32
    %16 = tpu.memref_slice %arg18[%c1_i32_5] : memref<2x!tpu.dma_semaphore, #tpu.memory_space<semaphore_mem>> -> memref<1x!tpu.dma_semaphore, #tpu.memory_space<semaphore_mem>>
    %17 = tpu.memref_squeeze %16 : memref<1x!tpu.dma_semaphore, #tpu.memory_space<semaphore_mem>> -> memref<!tpu.dma_semaphore, #tpu.memory_space<semaphore_mem>>
    tpu.wait_dma2 semaphore(%17 : memref<!tpu.dma_semaphore, #tpu.memory_space<semaphore_mem>>) src(%arg3 : memref<4x16x128xf32, #tpu.memory_space<any>>) dst(%arg15 : memref<4x16x128xf32, #tpu.memory_space<vmem>>)
    %c0_6 = arith.constant 0 : index
    %c0_7 = arith.constant 0 : index
    %c0_8 = arith.constant 0 : index
    %18 = vector.load %arg16[%c0_6, %c0_7, %c0_8] : memref<4x1x128xf32, #tpu.memory_space<vmem>>, vector<4x1x128xf32>
    tpu.vector_store %arg16[%c0_6, %c0_7, %c0_8], %11 {strides = array<i32>} : memref<4x1x128xf32, #tpu.memory_space<vmem>>, vector<4x1x128xf32>,
    %c0_9 = arith.constant 0 : index
    %c0_10 = arith.constant 0 : index
    %c0_11 = arith.constant 0 : index
    %19 = vector.load %arg17[%c0_9, %c0_10, %c0_11] : memref<4x1x128xf32, #tpu.memory_space<vmem>>, vector<4x1x128xf32>
    tpu.vector_store %arg17[%c0_9, %c0_10, %c0_11], %13 {strides = array<i32>} : memref<4x1x128xf32, #tpu.memory_space<vmem>>, vector<4x1x128xf32>,
    %c0_i32_12 = arith.constant 0 : i32
    %c0_i32_13 = arith.constant 0 : i32
    %c0_i32_14 = arith.constant 0 : i32
    %20 = tpu.memref_slice %arg12[%c0_i32_13, %0, %c0_i32_14] : memref<4x16x128xf32, #tpu.memory_space<any>> -> memref<4x1x128xf32, #tpu.memory_space<any>>
    %21 = tpu.memref_slice %arg18[%c0_i32_12] : memref<2x!tpu.dma_semaphore, #tpu.memory_space<semaphore_mem>> -> memref<1x!tpu.dma_semaphore, #tpu.memory_space<semaphore_mem>>
    %22 = tpu.memref_squeeze %21 : memref<1x!tpu.dma_semaphore, #tpu.memory_space<semaphore_mem>> -> memref<!tpu.dma_semaphore, #tpu.memory_space<semaphore_mem>>
    tpu.enqueue_dma source(%arg16 : memref<4x1x128xf32, #tpu.memory_space<vmem>>) target(%20 : memref<4x1x128xf32, #tpu.memory_space<any>>) target_semaphore(%22 : memref<!tpu.dma_semaphore, #tpu.memory_space<semaphore_mem>>)
    %c1_i32_15 = arith.constant 1 : i32
    %c0_i32_16 = arith.constant 0 : i32
    %c0_i32_17 = arith.constant 0 : i32
    %23 = tpu.memref_slice %arg13[%c0_i32_16, %0, %c0_i32_17] : memref<4x16x128xf32, #tpu.memory_space<any>> -> memref<4x1x128xf32, #tpu.memory_space<any>>
    %24 = tpu.memref_slice %arg18[%c1_i32_15] : memref<2x!tpu.dma_semaphore, #tpu.memory_space<semaphore_mem>> -> memref<1x!tpu.dma_semaphore, #tpu.memory_space<semaphore_mem>>
    %25 = tpu.memref_squeeze %24 : memref<1x!tpu.dma_semaphore, #tpu.memory_space<semaphore_mem>> -> memref<!tpu.dma_semaphore, #tpu.memory_space<semaphore_mem>>
    tpu.enqueue_dma source(%arg17 : memref<4x1x128xf32, #tpu.memory_space<vmem>>) target(%23 : memref<4x1x128xf32, #tpu.memory_space<any>>) target_semaphore(%25 : memref<!tpu.dma_semaphore, #tpu.memory_space<semaphore_mem>>)
    %26 = tpu.iota {dimensions = array<i32: 2>} : vector<1x1x16xi32>
    %27 = arith.mulf %9, %11 : vector<4x1x128xf32>
    %cst_18 = arith.constant dense<0.000000e+00> : vector<4x1xf32>
    %28 = vector.multi_reduction <add>, %27, %cst_18 [2] : vector<4x1x128xf32> to vector<4x1xf32>
    %29 = vector.shape_cast %28 : vector<4x1xf32> to vector<4x1x1xf32>
    %c0_19 = arith.constant 0 : index
    %c0_20 = arith.constant 0 : index
    %c0_21 = arith.constant 0 : index
    %30 = vector.load %arg14[%c0_19, %c0_20, %c0_21] : memref<4x16x128xf32, #tpu.memory_space<vmem>>, vector<4x16x128xf32>
    "tpu.trace_start"() <{level = 10 : i32, message = "nqd,nkd->nqk"}> : () -> ()
    %cst_22 = arith.constant dense<0.000000e+00> : vector<4x1x16xf32>
    %31 = tpu.matmul %9, %30, %cst_22 {dimension_numbers = #tpu.dot_dimension_numbers<[2], [2], [1], [1], [0, 0, 0, 1, 1, 1], [0], [0]>} : vector<4x1x128xf32>, vector<4x16x128xf32>, vector<4x1x16xf32> -> vector<4x1x16xf32>
    "tpu.trace_stop"() : () -> ()
    %32 = vector.broadcast %0 : i32 to vector<1x1x16xi32>
    %33 = arith.cmpi eq, %26, %32 : vector<1x1x16xi32>
    %34 = vector.shape_cast %33 : vector<1x1x16xi1> to vector<1x1x16xi1>
    %35 = vector.broadcast %34 : vector<1x1x16xi1> to vector<4x1x16xi1>
    %36 = vector.shape_cast %29 : vector<4x1x1xf32> to vector<4x1x1xf32>
    %37 = vector.broadcast %36 : vector<4x1x1xf32> to vector<4x1x16xf32>
    %38 = arith.select %35, %37, %31 : vector<4x1x16xi1>, vector<4x1x16xf32>
    %cst_23 = arith.constant 0.0883883461 : f32
    %39 = vector.broadcast %cst_23 : f32 to vector<4x1x16xf32>
    %40 = arith.mulf %38, %39 : vector<4x1x16xf32>
    %41 = vector.broadcast %0 : i32 to vector<1x1x16xi32>
    %42 = arith.cmpi sle, %26, %41 : vector<1x1x16xi32>
    %cst_24 = arith.constant -1.000000e+30 : f32
    %43 = vector.shape_cast %42 : vector<1x1x16xi1> to vector<1x1x16xi1>
    %44 = vector.broadcast %43 : vector<1x1x16xi1> to vector<4x1x16xi1>
    %45 = vector.broadcast %cst_24 : f32 to vector<4x1x16xf32>
    %46 = arith.select %44, %40, %45 : vector<4x1x16xi1>, vector<4x1x16xf32>
    %cst_25 = arith.constant dense<0xFF800000> : vector<4x1xf32>
    %47 = vector.multi_reduction <maximumf>, %46, %cst_25 [2] : vector<4x1x16xf32> to vector<4x1xf32>
    %48 = vector.shape_cast %47 : vector<4x1xf32> to vector<4x1x1xf32>
    %49 = vector.broadcast %48 : vector<4x1x1xf32> to vector<4x1x16xf32>
    %50 = arith.subf %46, %49 : vector<4x1x16xf32>
    %51 = math.exp %50 : vector<4x1x16xf32>
    %cst_26 = arith.constant dense<0.000000e+00> : vector<4x1xf32>
    %52 = vector.multi_reduction <add>, %51, %cst_26 [2] : vector<4x1x16xf32> to vector<4x1xf32>
    %53 = vector.shape_cast %52 : vector<4x1xf32> to vector<4x1x1xf32>
    %54 = tpu.reciprocal %53 {approx = true} : vector<4x1x1xf32> -> vector<4x1x1xf32>
    %55 = vector.broadcast %54 : vector<4x1x1xf32> to vector<4x1x16xf32>
    %56 = arith.mulf %51, %55 : vector<4x1x16xf32>
    %57 = vector.broadcast %0 : i32 to vector<1x1x16xi32>
    %58 = arith.cmpi eq, %26, %57 : vector<1x1x16xi32>
    %cst_27 = arith.constant 0.000000e+00 : f32
    %59 = vector.shape_cast %58 : vector<1x1x16xi1> to vector<1x1x16xi1>
    %60 = vector.broadcast %59 : vector<1x1x16xi1> to vector<4x1x16xi1>
    %61 = vector.broadcast %cst_27 : f32 to vector<4x1x16xf32>
    %62 = arith.select %60, %56, %61 : vector<4x1x16xi1>, vector<4x1x16xf32>
    %cst_28 = arith.constant dense<0.000000e+00> : vector<4x1xf32>
    %63 = vector.multi_reduction <add>, %62, %cst_28 [2] : vector<4x1x16xf32> to vector<4x1xf32>
    %64 = vector.shape_cast %63 : vector<4x1xf32> to vector<4x1x1xf32>
    %65 = vector.broadcast %0 : i32 to vector<1x1x16xi32>
    %66 = arith.cmpi eq, %26, %65 : vector<1x1x16xi32>
    %cst_29 = arith.constant 0.000000e+00 : f32
    %67 = vector.shape_cast %66 : vector<1x1x16xi1> to vector<1x1x16xi1>
    %68 = vector.broadcast %67 : vector<1x1x16xi1> to vector<4x1x16xi1>
    %69 = vector.broadcast %cst_29 : f32 to vector<4x1x16xf32>
    %70 = arith.select %68, %69, %56 : vector<4x1x16xi1>, vector<4x1x16xf32>
    %c0_30 = arith.constant 0 : index
    %c0_31 = arith.constant 0 : index
    %c0_32 = arith.constant 0 : index
    %71 = vector.load %arg15[%c0_30, %c0_31, %c0_32] : memref<4x16x128xf32, #tpu.memory_space<vmem>>, vector<4x16x128xf32>
    "tpu.trace_start"() <{level = 10 : i32, message = "nqk,nkd->nqd"}> : () -> ()
    %cst_33 = arith.constant dense<0.000000e+00> : vector<4x1x128xf32>
    %72 = tpu.matmul %70, %71, %cst_33 {dimension_numbers = #tpu.dot_dimension_numbers<[2], [1], [1], [2], [0, 0, 0, 1, 1, 2], [0], [0]>} : vector<4x1x16xf32>, vector<4x16x128xf32>, vector<4x1x128xf32> -> vector<4x1x128xf32>
    "tpu.trace_stop"() : () -> ()
    %73 = vector.broadcast %64 : vector<4x1x1xf32> to vector<4x1x128xf32>
    %74 = arith.mulf %73, %13 : vector<4x1x128xf32>
    %75 = arith.addf %72, %74 : vector<4x1x128xf32>
    %76 = vector.shape_cast %75 : vector<4x1x128xf32> to vector<2x256xf32>
    %c0_34 = arith.constant 0 : index
    %c0_35 = arith.constant 0 : index
    %77 = vector.load %arg8[%c0_34, %c0_35] : memref<256x256xf32, #tpu.memory_space<vmem>>, vector<256x256xf32>
    %cst_36 = arith.constant dense<0.000000e+00> : vector<2x256xf32>
    %78 = tpu.matmul %76, %77, %cst_36 {dimension_numbers = #tpu.dot_dimension_numbers<[1], [0], [0], [1], [0, 0, 1, 1], [], []>} : vector<2x256xf32>, vector<256x256xf32>, vector<2x256xf32> -> vector<2x256xf32>
    %79 = arith.addf %1, %78 : vector<2x256xf32>
    %c0_37 = arith.constant 0 : index
    %c0_38 = arith.constant 0 : index
    %80 = vector.load %arg9[%c0_37, %c0_38] : memref<256x256xf32, #tpu.memory_space<vmem>>, vector<256x256xf32>
    %cst_39 = arith.constant dense<0.000000e+00> : vector<2x256xf32>
    %81 = tpu.matmul %79, %80, %cst_39 {dimension_numbers = #tpu.dot_dimension_numbers<[1], [0], [0], [1], [0, 0, 1, 1], [], []>} : vector<2x256xf32>, vector<256x256xf32>, vector<2x256xf32> -> vector<2x256xf32>
    %82 = vector.shape_cast %81 : vector<2x256xf32> to vector<4x1x128xf32>
    %c0_40 = arith.constant 0 : index
    %c0_41 = arith.constant 0 : index
    %c0_42 = arith.constant 0 : index
    %83 = vector.load %arg4[%c0_40, %c0_41, %c0_42] : memref<4x8x128xf32, #tpu.memory_space<vmem>>, vector<4x8x128xf32>
    "tpu.trace_start"() <{level = 10 : i32, message = "nqd,nkd->nqk"}> : () -> ()
    %cst_43 = arith.constant dense<0.000000e+00> : vector<4x1x8xf32>
    %84 = tpu.matmul %82, %83, %cst_43 {dimension_numbers = #tpu.dot_dimension_numbers<[2], [2], [1], [1], [0, 0, 0, 1, 1, 1], [0], [0]>} : vector<4x1x128xf32>, vector<4x8x128xf32>, vector<4x1x8xf32> -> vector<4x1x8xf32>
    "tpu.trace_stop"() : () -> ()
    %cst_44 = arith.constant 0.0883883461 : f32
    %85 = vector.broadcast %cst_44 : f32 to vector<4x1x8xf32>
    %86 = arith.mulf %84, %85 : vector<4x1x8xf32>
    %c0_45 = arith.constant 0 : index
    %c0_46 = arith.constant 0 : index
    %87 = vector.load %arg6[%c0_45, %c0_46] : memref<4x8xf32, #tpu.memory_space<vmem>>, vector<4x8xf32>
    %88 = vector.shape_cast %87 : vector<4x8xf32> to vector<4x1x8xf32>
    %cst_47 = arith.constant 5.000000e-01 : f32
    %89 = vector.broadcast %cst_47 : f32 to vector<4x1x8xf32>
    %90 = arith.cmpf ogt, %88, %89 : vector<4x1x8xf32>
    %cst_48 = arith.constant -1.000000e+30 : f32
    %91 = vector.broadcast %cst_48 : f32 to vector<4x1x8xf32>
    %92 = arith.select %90, %86, %91 : vector<4x1x8xi1>, vector<4x1x8xf32>
    %cst_49 = arith.constant dense<0xFF800000> : vector<4x1xf32>
    %93 = vector.multi_reduction <maximumf>, %92, %cst_49 [2] : vector<4x1x8xf32> to vector<4x1xf32>
    %94 = vector.shape_cast %93 : vector<4x1xf32> to vector<4x1x1xf32>
    %95 = vector.broadcast %94 : vector<4x1x1xf32> to vector<4x1x8xf32>
    %96 = arith.subf %92, %95 : vector<4x1x8xf32>
    %97 = math.exp %96 : vector<4x1x8xf32>
    %cst_50 = arith.constant 5.000000e-01 : f32
    %98 = vector.broadcast %cst_50 : f32 to vector<4x1x8xf32>
    %99 = arith.cmpf ogt, %88, %98 : vector<4x1x8xf32>
    %100 = arith.extui %99 : vector<4x1x8xi1> to vector<4x1x8xi32>
    %101 = arith.sitofp %100 : vector<4x1x8xi32> to vector<4x1x8xf32>
    %102 = arith.mulf %97, %101 : vector<4x1x8xf32>
    %cst_51 = arith.constant dense<0.000000e+00> : vector<4x1xf32>
    %103 = vector.multi_reduction <add>, %102, %cst_51 [2] : vector<4x1x8xf32> to vector<4x1xf32>
    %104 = vector.shape_cast %103 : vector<4x1xf32> to vector<4x1x1xf32>
    %cst_52 = arith.constant 9.99999968E-21 : f32
    %105 = vector.broadcast %cst_52 : f32 to vector<4x1x1xf32>
    %106 = arith.maximumf %104, %105 : vector<4x1x1xf32>
    %107 = tpu.reciprocal %106 {approx = true} : vector<4x1x1xf32> -> vector<4x1x1xf32>
    %108 = vector.broadcast %107 : vector<4x1x1xf32> to vector<4x1x8xf32>
    %109 = arith.mulf %102, %108 : vector<4x1x8xf32>
    %c0_53 = arith.constant 0 : index
    %c0_54 = arith.constant 0 : index
    %c0_55 = arith.constant 0 : index
    %110 = vector.load %arg5[%c0_53, %c0_54, %c0_55] : memref<4x8x128xf32, #tpu.memory_space<vmem>>, vector<4x8x128xf32>
    "tpu.trace_start"() <{level = 10 : i32, message = "nqk,nkd->nqd"}> : () -> ()
    %cst_56 = arith.constant dense<0.000000e+00> : vector<4x1x128xf32>
    %111 = tpu.matmul %109, %110, %cst_56 {dimension_numbers = #tpu.dot_dimension_numbers<[2], [1], [1], [2], [0, 0, 0, 1, 1, 2], [0], [0]>} : vector<4x1x8xf32>, vector<4x8x128xf32>, vector<4x1x128xf32> -> vector<4x1x128xf32>
    "tpu.trace_stop"() : () -> ()
    %112 = vector.shape_cast %111 : vector<4x1x128xf32> to vector<2x256xf32>
    %c0_57 = arith.constant 0 : index
    %c0_58 = arith.constant 0 : index
    %113 = vector.load %arg10[%c0_57, %c0_58] : memref<256x256xf32, #tpu.memory_space<vmem>>, vector<256x256xf32>
    %cst_59 = arith.constant dense<0.000000e+00> : vector<2x256xf32>
    %114 = tpu.matmul %112, %113, %cst_59 {dimension_numbers = #tpu.dot_dimension_numbers<[1], [0], [0], [1], [0, 0, 1, 1], [], []>} : vector<2x256xf32>, vector<256x256xf32>, vector<2x256xf32> -> vector<2x256xf32>
    %115 = arith.addf %79, %114 : vector<2x256xf32>
    %c0_60 = arith.constant 0 : index
    %c0_61 = arith.constant 0 : index
    %116 = vector.load %arg11[%c0_60, %c0_61] : memref<2x256xf32, #tpu.memory_space<vmem>>, vector<2x256xf32>
    tpu.vector_store %arg11[%c0_60, %c0_61], %115 {strides = array<i32>} : memref<2x256xf32, #tpu.memory_space<vmem>>, vector<2x256xf32>,
    %c0_i32_62 = arith.constant 0 : i32
    %c0_i32_63 = arith.constant 0 : i32
    %c0_i32_64 = arith.constant 0 : i32
    %117 = tpu.memref_slice %arg12[%c0_i32_63, %0, %c0_i32_64] : memref<4x16x128xf32, #tpu.memory_space<any>> -> memref<4x1x128xf32, #tpu.memory_space<any>>
    %118 = tpu.memref_slice %arg18[%c0_i32_62] : memref<2x!tpu.dma_semaphore, #tpu.memory_space<semaphore_mem>> -> memref<1x!tpu.dma_semaphore, #tpu.memory_space<semaphore_mem>>
    %119 = tpu.memref_squeeze %118 : memref<1x!tpu.dma_semaphore, #tpu.memory_space<semaphore_mem>> -> memref<!tpu.dma_semaphore, #tpu.memory_space<semaphore_mem>>
    tpu.wait_dma2 semaphore(%119 : memref<!tpu.dma_semaphore, #tpu.memory_space<semaphore_mem>>) src(%arg16 : memref<4x1x128xf32, #tpu.memory_space<vmem>>) dst(%117 : memref<4x1x128xf32, #tpu.memory_space<any>>)
    %c1_i32_65 = arith.constant 1 : i32
    %c0_i32_66 = arith.constant 0 : i32
    %c0_i32_67 = arith.constant 0 : i32
    %120 = tpu.memref_slice %arg13[%c0_i32_66, %0, %c0_i32_67] : memref<4x16x128xf32, #tpu.memory_space<any>> -> memref<4x1x128xf32, #tpu.memory_space<any>>
    %121 = tpu.memref_slice %arg18[%c1_i32_65] : memref<2x!tpu.dma_semaphore, #tpu.memory_space<semaphore_mem>> -> memref<1x!tpu.dma_semaphore, #tpu.memory_space<semaphore_mem>>
    %122 = tpu.memref_squeeze %121 : memref<1x!tpu.dma_semaphore, #tpu.memory_space<semaphore_mem>> -> memref<!tpu.dma_semaphore, #tpu.memory_space<semaphore_mem>>
    tpu.wait_dma2 semaphore(%122 : memref<!tpu.dma_semaphore, #tpu.memory_space<semaphore_mem>>) src(%arg17 : memref<4x1x128xf32, #tpu.memory_space<vmem>>) dst(%120 : memref<4x1x128xf32, #tpu.memory_space<any>>)
    return
  }
}

module attributes {stable_mosaic.version = 11 : i64} {
  func.func @_logits_kernel(%arg0: i32, %arg1: memref<2x256xf32, #tpu.memory_space<vmem>>, %arg2: memref<256x128xf32, #tpu.memory_space<vmem>>, %arg3: memref<2x128xf32, #tpu.memory_space<vmem>>) attributes {dimension_semantics = [#tpu.dimension_semantics<parallel>], iteration_bounds = array<i64: 2>, scalar_prefetch = 0 : i64, scratch_operands = 0 : i64, tpu.core_type = #tpu.core_type<tc>, window_params = [{pipeline_mode = #tpu.pipeline_mode<synchronous>, transform_indices = @transform_0, window_bounds = array<i64: 2, 256>}, {transform_indices = @transform_1, window_bounds = array<i64: 256, 128>}, {transform_indices = @transform_2, window_bounds = array<i64: 2, 128>}]} {
    %c0 = arith.constant 0 : index
    %c0_0 = arith.constant 0 : index
    %0 = vector.load %arg1[%c0, %c0_0] : memref<2x256xf32, #tpu.memory_space<vmem>>, vector<2x256xf32>
    %c0_1 = arith.constant 0 : index
    %c0_2 = arith.constant 0 : index
    %1 = vector.load %arg2[%c0_1, %c0_2] : memref<256x128xf32, #tpu.memory_space<vmem>>, vector<256x128xf32>
    %cst = arith.constant dense<0.000000e+00> : vector<2x128xf32>
    %2 = tpu.matmul %0, %1, %cst {dimension_numbers = #tpu.dot_dimension_numbers<[1], [0], [0], [1], [0, 0, 1, 1], [], []>} : vector<2x256xf32>, vector<256x128xf32>, vector<2x128xf32> -> vector<2x128xf32>
    %c0_3 = arith.constant 0 : index
    %c0_4 = arith.constant 0 : index
    %3 = vector.load %arg3[%c0_3, %c0_4] : memref<2x128xf32, #tpu.memory_space<vmem>>, vector<2x128xf32>
    tpu.vector_store %arg3[%c0_3, %c0_4], %2 {strides = array<i32>} : memref<2x128xf32, #tpu.memory_space<vmem>>, vector<2x128xf32>,
    return
  }
  func.func @transform_0(%arg0: i32) -> (i32, i32) {
    %c0_i32 = arith.constant 0 : i32
    %c0_i32_0 = arith.constant 0 : i32
    %c0_i32_1 = arith.constant 0 : i32
    return %c0_i32, %c0_i32_0 : i32, i32
  }
  func.func @transform_1(%arg0: i32) -> (i32, i32) {
    %c0_i32 = arith.constant 0 : i32
    %c0_i32_0 = arith.constant 0 : i32
    return %c0_i32, %arg0 : i32, i32
  }
  func.func @transform_2(%arg0: i32) -> (i32, i32) {
    %c0_i32 = arith.constant 0 : i32
    %c0_i32_0 = arith.constant 0 : i32
    return %c0_i32, %arg0 : i32, i32
  }
}

module attributes {stable_mosaic.version = 11 : i64} {
  func.func @_linear_kernel(%arg0: memref<32x256xf32, #tpu.memory_space<vmem>>, %arg1: memref<256x128xf32, #tpu.memory_space<vmem>>, %arg2: memref<1x128xf32, #tpu.memory_space<vmem>>, %arg3: memref<32x128xf32, #tpu.memory_space<vmem>>) attributes {dimension_semantics = [], scalar_prefetch = 0 : i64, scratch_operands = 0 : i64, tpu.core_type = #tpu.core_type<tc>} {
    %c0 = arith.constant 0 : index
    %c0_0 = arith.constant 0 : index
    %0 = vector.load %arg0[%c0, %c0_0] : memref<32x256xf32, #tpu.memory_space<vmem>>, vector<32x256xf32>
    %c0_1 = arith.constant 0 : index
    %c0_2 = arith.constant 0 : index
    %1 = vector.load %arg1[%c0_1, %c0_2] : memref<256x128xf32, #tpu.memory_space<vmem>>, vector<256x128xf32>
    %cst = arith.constant dense<0.000000e+00> : vector<32x128xf32>
    %2 = tpu.matmul %0, %1, %cst {dimension_numbers = #tpu.dot_dimension_numbers<[1], [0], [0], [1], [0, 0, 1, 1], [], []>} : vector<32x256xf32>, vector<256x128xf32>, vector<32x128xf32> -> vector<32x128xf32>
    %c0_3 = arith.constant 0 : index
    %c0_4 = arith.constant 0 : index
    %3 = vector.load %arg2[%c0_3, %c0_4] : memref<1x128xf32, #tpu.memory_space<vmem>>, vector<1x128xf32>
    %4 = vector.broadcast %3 : vector<1x128xf32> to vector<32x128xf32>
    %5 = arith.addf %2, %4 : vector<32x128xf32>
    %6 = math.tanh %5 : vector<32x128xf32>
    %c0_5 = arith.constant 0 : index
    %c0_6 = arith.constant 0 : index
    %7 = vector.load %arg3[%c0_5, %c0_6] : memref<32x128xf32, #tpu.memory_space<vmem>>, vector<32x128xf32>
    tpu.vector_store %arg3[%c0_5, %c0_6], %6 {strides = array<i32>} : memref<32x128xf32, #tpu.memory_space<vmem>>, vector<32x128xf32>,
    return
  }
}

</mosaic_0001>

<llo_original>
// kernel: custom-call.10
$region0: #{custom-call.10}
  %s0 = inlined_call_operand.vmem [shape: s32[2,16], index: 0, kind: output, shape index: {}]

// kernel: custom-call.2
$region0: #{custom-call.2}
  %s0 = inlined_call_operand.vmem [shape: s32[2], index: 0, kind: output, shape index: {}]

// kernel: dalle_forward.4
$region0: #{dalle_forward.4}
  #allocation0 [shape = 'u32[]', space=smem, size = 0x4, offset = 0x4, fixed_abs, tag = 'smem constant byte address 0x4 - core index']
  #allocation1 [shape = 'u32[144,128]{1,0:T(1,128)}', space=vmem, size = 0x12000, scoped, tag = 'internal scratch']
  %s0 = inlined_call_operand.vmem [shape: f32[16,256], index: 0, kind: input, shape index: {}]
  %s1 = inlined_call_operand.hbm [shape: f32[256,256], index: 1, kind: input, shape index: {}]
  %s2 = inlined_call_operand.vmem [shape: f32[1,256], index: 2, kind: input, shape index: {}]
  %s3 = inlined_call_operand.vmem [shape: f32[16,256], index: 3, kind: output, shape index: {}]
  %s4 = sld [smem:[#allocation0]]
  $region26: #{dalle_forward.4} parent=0
    _
  %s6 = ssub.s32 1, %s4
  %s7 = scalar_select 0, %s6, %s4
  $region1: #{dalle_forward.4} parent=0
    #allocation2 [shape = 'u8[262144]{0}', space=vmem, size = 0x40000, scoped, tag = 'input window, operand 1, single buffered']
    #allocation3 [shape = 's32[1]{0}', space=sflag, size = 0x4, scoped, tag = 'scoped memory for dalle_forward.4']
    %8 = vsyncpa [#allocation3], 0
    // Predicated region
    $region2: #{dalle_forward.4} parent=1 // pred_check
      _
    $region3: #{dalle_forward.4} parent=1 // pred_check_branch
      %10 = sbr.rel (0) target = $region5
    $region4: #{dalle_forward.4} parent=1 // pred_region
      _
    $region5: #{dalle_forward.4} parent=1 // pred_fallthru
      _
    // Predicated region
    $region6: #{dalle_forward.4} parent=1 // pred_check
      _
    $region7: #{dalle_forward.4} parent=1 // pred_check_branch
      %12 = sbr.rel (0) target = $region9
    $region8: #{dalle_forward.4} parent=1 // pred_region
      %s14 = ssub.s32 8192, 8192
      %15 = vsyncadd [#allocation3], %s14
      %s16 = sshll.u32 [#allocation2], 4
      %s17 = int_to_ptr.vmem [resolvable:$true] %s16
      %22 = dma.hbm_to_vmem [thread:$0]  %s1, 8192, %s17, [#allocation3], 256, 256, 16
    $region9: #{dalle_forward.4} parent=1 // pred_fallthru
      _
    // Predicated region
    $region10: #{dalle_forward.4} parent=1 // pred_check
      _
    $region11: #{dalle_forward.4} parent=1 // pred_check_branch
      %24 = sbr.rel (0) target = $region13
    $region12: #{dalle_forward.4} parent=1 // pred_region
      _
    $region13: #{dalle_forward.4} parent=1 // pred_fallthru
      _
    // Predicated region
    $region14: #{dalle_forward.4} parent=1 // pred_check
      _
    $region15: #{dalle_forward.4} parent=1 // pred_check_branch
      %26 = sbr.rel (0) target = $region17
    $region16: #{dalle_forward.4} parent=1 // pred_region
      %27 = dma.done [#allocation3], 8192
    $region17: #{dalle_forward.4} parent=1 // pred_fallthru
      _
    %v28 = vld [vmem:[%s0] sm:$0xff]
    %v29 = vld [vmem:[%s0 + $0x8] sm:$0xff]
    %v30 = vld [vmem:[%s0 + $0x10] sm:$0xff]
    %v31 = vld [vmem:[%s0 + $0x18] sm:$0xff]
    %v32 = vld [vmem:[#allocation2] sm:$0xff]
    %v33 = vld [vmem:[#allocation2 + $0x8] sm:$0xff]
    %v34 = vld [vmem:[#allocation2 + $0x10] sm:$0xff]
    %v35 = vld [vmem:[#allocation2 + $0x18] sm:$0xff]
    %v36 = vld [vmem:[#allocation2 + $0x20] sm:$0xff]
    %v37 = vld [vmem:[#allocation2 + $0x28] sm:$0xff]
    %v38 = vld [vmem:[#allocation2 + $0x30] sm:$0xff]
    %v39 = vld [vmem:[#allocation2 + $0x38] sm:$0xff]
    %v40 = vld [vmem:[#allocation2 + $0x40] sm:$0xff]
    %v41 = vld [vmem:[#allocation2 + $0x48] sm:$0xff]
    %v42 = vld [vmem:[#allocation2 + $0x50] sm:$0xff]
    %v43 = vld [vmem:[#allocation2 + $0x58] sm:$0xff]
    %v44 = vld [vmem:[#allocation2 + $0x60] sm:$0xff]
    %v45 = vld [vmem:[#allocation2 + $0x68] sm:$0xff]
    %v46 = vld [vmem:[#allocation2 + $0x70] sm:$0xff]
    %v47 = vld [vmem:[#allocation2 + $0x78] sm:$0xff]
    %v48 = vld [vmem:[#allocation2 + $0x80] sm:$0xff]
    %v49 = vld [vmem:[#allocation2 + $0x88] sm:$0xff]
    %v50 = vld [vmem:[#allocation2 + $0x90] sm:$0xff]
    %v51 = vld [vmem:[#allocation2 + $0x98] sm:$0xff]
    %v52 = vld [vmem:[#allocation2 + $0xa0] sm:$0xff]
    %v53 = vld [vmem:[#allocation2 + $0xa8] sm:$0xff]
    %v54 = vld [vmem:[#allocation2 + $0xb0] sm:$0xff]
    %v55 = vld [vmem:[#allocation2 + $0xb8] sm:$0xff]
    %v56 = vld [vmem:[#allocation2 + $0xc0] sm:$0xff]
    %v57 = vld [vmem:[#allocation2 + $0xc8] sm:$0xff]
    %v58 = vld [vmem:[#allocation2 + $0xd0] sm:$0xff]
    %v59 = vld [vmem:[#allocation2 + $0xd8] sm:$0xff]
    %v60 = vld [vmem:[#allocation2 + $0xe0] sm:$0xff]
    %v61 = vld [vmem:[#allocation2 + $0xe8] sm:$0xff]
    %v62 = vld [vmem:[#allocation2 + $0xf0] sm:$0xff]
    %v63 = vld [vmem:[#allocation2 + $0xf8] sm:$0xff]
    %v64 = vld [vmem:[#allocation2 + $0x100] sm:$0xff]
    %v65 = vld [vmem:[#allocation2 + $0x108] sm:$0xff]
    %v66 = vld [vmem:[#allocation2 + $0x110] sm:$0xff]
    %v67 = vld [vmem:[#allocation2 + $0x118] sm:$0xff]
    %v68 = vld [vmem:[#allocation2 + $0x120] sm:$0xff]
    %v69 = vld [vmem:[#allocation2 + $0x128] sm:$0xff]
    %v70 = vld [vmem:[#allocation2 + $0x130] sm:$0xff]
    %v71 = vld [vmem:[#allocation2 + $0x138] sm:$0xff]
    %v72 = vld [vmem:[#allocation2 + $0x140] sm:$0xff]
    %v73 = vld [vmem:[#allocation2 + $0x148] sm:$0xff]
    %v74 = vld [vmem:[#allocation2 + $0x150] sm:$0xff]
    %v75 = vld [vmem:[#allocation2 + $0x158] sm:$0xff]
    %v76 = vld [vmem:[#allocation2 + $0x160] sm:$0xff]
    %v77 = vld [vmem:[#allocation2 + $0x168] sm:$0xff]
    %v78 = vld [vmem:[#allocation2 + $0x170] sm:$0xff]
    %v79 = vld [vmem:[#allocation2 + $0x178] sm:$0xff]
    %v80 = vld [vmem:[#allocation2 + $0x180] sm:$0xff]
    %v81 = vld [vmem:[#allocation2 + $0x188] sm:$0xff]
    %v82 = vld [vmem:[#allocation2 + $0x190] sm:$0xff]
    %v83 = vld [vmem:[#allocation2 + $0x198] sm:$0xff]
    %v84 = vld [vmem:[#allocation2 + $0x1a0] sm:$0xff]
    %v85 = vld [vmem:[#allocation2 + $0x1a8] sm:$0xff]
    %v86 = vld [vmem:[#allocation2 + $0x1b0] sm:$0xff]
    %v87 = vld [vmem:[#allocation2 + $0x1b8] sm:$0xff]
    %v88 = vld [vmem:[#allocation2 + $0x1c0] sm:$0xff]
    %v89 = vld [vmem:[#allocation2 + $0x1c8] sm:$0xff]
    %v90 = vld [vmem:[#allocation2 + $0x1d0] sm:$0xff]
    %v91 = vld [vmem:[#allocation2 + $0x1d8] sm:$0xff]
    %v92 = vld [vmem:[#allocation2 + $0x1e0] sm:$0xff]
    %v93 = vld [vmem:[#allocation2 + $0x1e8] sm:$0xff]
    %v94 = vld [vmem:[#allocation2 + $0x1f0] sm:$0xff]
    %v95 = vld [vmem:[#allocation2 + $0x1f8] sm:$0xff]
    %v96 = vld [vmem:[%s2] sm:$0x3]
    %v98 = vlaneseq
    %v99 = vshrl.u32 %v98, 7
    %v100 = vsub.s32 0, %v99
    %v101 = vrot.slane %v96, %v100
    %v102 = vlaneseq
    %v103 = vshrl.u32 %v102, 7
    %v104 = vsub.s32 1, %v103
    %v105 = vrot.slane %v96, %v104
    %108 = vmatprep.subr.mxu0 %v33
    %109 = vmatpush1.msra.mxu0 %v32
    %110 = vmatprep.subr.mxu0 %v35
    %111 = vmatpush1.msra.mxu0 %v34
    %112 = vmatprep.subr.mxu0 %v37
    %113 = vmatpush1.msra.mxu0 %v36
    %114 = vmatprep.subr.mxu0 %v39
    %115 = vmatpush1.msra.mxu0 %v38
    %116 = vmatprep.subr.mxu0 %v41
    %117 = vmatpush1.msra.mxu0 %v40
    %118 = vmatprep.subr.mxu0 %v43
    %119 = vmatpush1.msra.mxu0 %v42
    %120 = vmatprep.subr.mxu0 %v45
    %121 = vmatpush1.msra.mxu0 %v44
    %122 = vmatprep.subr.mxu0 %v47
    %123 = vmatpush1.msra.mxu0 %v46
    %124 = vmatprep.subr.mxu0 %v49
    %125 = vmatpush1.msra.mxu0 %v48
    %126 = vmatprep.subr.mxu0 %v51
    %127 = vmatpush1.msra.mxu0 %v50
    %128 = vmatprep.subr.mxu0 %v53
    %129 = vmatpush1.msra.mxu0 %v52
    %130 = vmatprep.subr.mxu0 %v55
    %131 = vmatpush1.msra.mxu0 %v54
    %132 = vmatprep.subr.mxu0 %v57
    %133 = vmatpush1.msra.mxu0 %v56
    %134 = vmatprep.subr.mxu0 %v59
    %135 = vmatpush1.msra.mxu0 %v58
    %136 = vmatprep.subr.mxu0 %v61
    %137 = vmatpush1.msra.mxu0 %v60
    %138 = vmatprep.subr.mxu0 %v63
    %139 = vmatpush1.msra.mxu0 %v62
    %140 = vmatprep.subr.mxu0 %v65
    %141 = vmatpush1.msra.mxu0 %v64
    %142 = vmatprep.subr.mxu0 %v67
    %143 = vmatpush1.msra.mxu0 %v66
    %144 = vmatprep.subr.mxu0 %v69
    %145 = vmatpush1.msra.mxu0 %v68
    %146 = vmatprep.subr.mxu0 %v71
    %147 = vmatpush1.msra.mxu0 %v70
    %148 = vmatprep.subr.mxu0 %v73
    %149 = vmatpush1.msra.mxu0 %v72
    %150 = vmatprep.subr.mxu0 %v75
    %151 = vmatpush1.msra.mxu0 %v74
    %152 = vmatprep.subr.mxu0 %v77
    %153 = vmatpush1.msra.mxu0 %v76
    %154 = vmatprep.subr.mxu0 %v79
    %155 = vmatpush1.msra.mxu0 %v78
    %156 = vmatprep.subr.mxu0 %v81
    %157 = vmatpush1.msra.mxu0 %v80
    %158 = vmatprep.subr.mxu0 %v83
    %159 = vmatpush1.msra.mxu0 %v82
    %160 = vmatprep.subr.mxu0 %v85
    %161 = vmatpush1.msra.mxu0 %v84
    %162 = vmatprep.subr.mxu0 %v87
    %163 = vmatpush1.msra.mxu0 %v86
    %164 = vmatprep.subr.mxu0 %v89
    %165 = vmatpush1.msra.mxu0 %v88
    %166 = vmatprep.subr.mxu0 %v91
    %167 = vmatpush1.msra.mxu0 %v90
    %168 = vmatprep.subr.mxu0 %v93
    %169 = vmatpush1.msra.mxu0 %v92
    %170 = vmatprep.subr.mxu0 %v95
    %171 = vmatpush1.msra.mxu0 %v94
    %172 = vmatprep.mubr.f32.mxu0 %v29
    %173 = vmatmul.mubr.f32.gmra.mrb[0].mxu0 %v28
    %v174 = vpop.f32.mrb[0].mxu0
    %v175 = vadd.f32 %v101, %v174
    %v176 = vpop.f32.mrb[0].mxu0
    %v177 = vadd.f32 %v105, %v176
    %178 = vmatprep.mubr.f32.mxu0 %v31
    %179 = vmatmul.mubr.f32.gmra.mrb[0].mxu0 %v30
    %v180 = vpop.f32.mrb[0].mxu0
    %v181 = vadd.f32 %v101, %v180
    %v182 = vpop.f32.mrb[0].mxu0
    %v183 = vadd.f32 %v105, %v182
    %184 = vdwg.mxu0
    %v185 = vtanh.pop %v175
    %v186 = vtanh.pop %v177
    %v187 = vtanh.pop %v181
    %v188 = vtanh.pop %v183
    %189 = vst [vmem:[%s3] sm:$0xff] %v185
    %190 = vst [vmem:[%s3 + $0x8] sm:$0xff] %v186
    %191 = vst [vmem:[%s3 + $0x10] sm:$0xff] %v187
    %192 = vst [vmem:[%s3 + $0x18] sm:$0xff] %v188
    // Predicated region
    $region18: #{dalle_forward.4} parent=1 // pred_check
      _
    $region19: #{dalle_forward.4} parent=1 // pred_check_branch
      %194 = sbr.rel (0) target = $region21
    $region20: #{dalle_forward.4} parent=1 // pred_region
      _
    $region21: #{dalle_forward.4} parent=1 // pred_fallthru
      _
    // Predicated region
    $region22: #{dalle_forward.4} parent=1 // pred_check
      _
    $region23: #{dalle_forward.4} parent=1 // pred_check_branch
      %196 = sbr.rel (0) target = $region25
    $region24: #{dalle_forward.4} parent=1 // pred_region
      _
    $region25: #{dalle_forward.4} parent=1 // pred_fallthru
      _
    %197 = vsyncpa [#allocation3], 1

// kernel: dalle_forward.5
$region0: #{dalle_forward.5}
  #allocation0 [shape = 'u32[]', space=smem, size = 0x4, offset = 0x4, fixed_abs, tag = 'smem constant byte address 0x4 - core index']
  #allocation1 [shape = 'u32[144,128]{1,0:T(1,128)}', space=vmem, size = 0x12000, scoped, tag = 'internal scratch']
  %s0 = inlined_call_operand.vmem [shape: f32[16,256], index: 0, kind: input, shape index: {}]
  %s1 = inlined_call_operand.hbm [shape: f32[256,256], index: 1, kind: input, shape index: {}]
  %s2 = inlined_call_operand.vmem [shape: f32[1,256], index: 2, kind: input, shape index: {}]
  %s3 = inlined_call_operand.vmem [shape: f32[16,256], index: 3, kind: output, shape index: {}]
  %s4 = sld [smem:[#allocation0]]
  $region26: #{dalle_forward.5} parent=0
    _
  %s6 = ssub.s32 1, %s4
  %s7 = scalar_select 0, %s6, %s4
  $region1: #{dalle_forward.5} parent=0
    #allocation2 [shape = 'u8[262144]{0}', space=vmem, size = 0x40000, scoped, tag = 'input window, operand 1, single buffered']
    #allocation3 [shape = 's32[1]{0}', space=sflag, size = 0x4, scoped, tag = 'scoped memory for dalle_forward.5']
    %8 = vsyncpa [#allocation3], 0
    // Predicated region
    $region2: #{dalle_forward.5} parent=1 // pred_check
      _
    $region3: #{dalle_forward.5} parent=1 // pred_check_branch
      %10 = sbr.rel (0) target = $region5
    $region4: #{dalle_forward.5} parent=1 // pred_region
      _
    $region5: #{dalle_forward.5} parent=1 // pred_fallthru
      _
    // Predicated region
    $region6: #{dalle_forward.5} parent=1 // pred_check
      _
    $region7: #{dalle_forward.5} parent=1 // pred_check_branch
      %12 = sbr.rel (0) target = $region9
    $region8: #{dalle_forward.5} parent=1 // pred_region
      %s14 = ssub.s32 8192, 8192
      %15 = vsyncadd [#allocation3], %s14
      %s16 = sshll.u32 [#allocation2], 4
      %s17 = int_to_ptr.vmem [resolvable:$true] %s16
      %22 = dma.hbm_to_vmem [thread:$0]  %s1, 8192, %s17, [#allocation3], 256, 256, 16
    $region9: #{dalle_forward.5} parent=1 // pred_fallthru
      _
    // Predicated region
    $region10: #{dalle_forward.5} parent=1 // pred_check
      _
    $region11: #{dalle_forward.5} parent=1 // pred_check_branch
      %24 = sbr.rel (0) target = $region13
    $region12: #{dalle_forward.5} parent=1 // pred_region
      _
    $region13: #{dalle_forward.5} parent=1 // pred_fallthru
      _
    // Predicated region
    $region14: #{dalle_forward.5} parent=1 // pred_check
      _
    $region15: #{dalle_forward.5} parent=1 // pred_check_branch
      %26 = sbr.rel (0) target = $region17
    $region16: #{dalle_forward.5} parent=1 // pred_region
      %27 = dma.done [#allocation3], 8192
    $region17: #{dalle_forward.5} parent=1 // pred_fallthru
      _
    %v28 = vld [vmem:[%s0] sm:$0xff]
    %v29 = vld [vmem:[%s0 + $0x8] sm:$0xff]
    %v30 = vld [vmem:[%s0 + $0x10] sm:$0xff]
    %v31 = vld [vmem:[%s0 + $0x18] sm:$0xff]
    %v32 = vld [vmem:[#allocation2] sm:$0xff]
    %v33 = vld [vmem:[#allocation2 + $0x8] sm:$0xff]
    %v34 = vld [vmem:[#allocation2 + $0x10] sm:$0xff]
    %v35 = vld [vmem:[#allocation2 + $0x18] sm:$0xff]
    %v36 = vld [vmem:[#allocation2 + $0x20] sm:$0xff]
    %v37 = vld [vmem:[#allocation2 + $0x28] sm:$0xff]
    %v38 = vld [vmem:[#allocation2 + $0x30] sm:$0xff]
    %v39 = vld [vmem:[#allocation2 + $0x38] sm:$0xff]
    %v40 = vld [vmem:[#allocation2 + $0x40] sm:$0xff]
    %v41 = vld [vmem:[#allocation2 + $0x48] sm:$0xff]
    %v42 = vld [vmem:[#allocation2 + $0x50] sm:$0xff]
    %v43 = vld [vmem:[#allocation2 + $0x58] sm:$0xff]
    %v44 = vld [vmem:[#allocation2 + $0x60] sm:$0xff]
    %v45 = vld [vmem:[#allocation2 + $0x68] sm:$0xff]
    %v46 = vld [vmem:[#allocation2 + $0x70] sm:$0xff]
    %v47 = vld [vmem:[#allocation2 + $0x78] sm:$0xff]
    %v48 = vld [vmem:[#allocation2 + $0x80] sm:$0xff]
    %v49 = vld [vmem:[#allocation2 + $0x88] sm:$0xff]
    %v50 = vld [vmem:[#allocation2 + $0x90] sm:$0xff]
    %v51 = vld [vmem:[#allocation2 + $0x98] sm:$0xff]
    %v52 = vld [vmem:[#allocation2 + $0xa0] sm:$0xff]
    %v53 = vld [vmem:[#allocation2 + $0xa8] sm:$0xff]
    %v54 = vld [vmem:[#allocation2 + $0xb0] sm:$0xff]
    %v55 = vld [vmem:[#allocation2 + $0xb8] sm:$0xff]
    %v56 = vld [vmem:[#allocation2 + $0xc0] sm:$0xff]
    %v57 = vld [vmem:[#allocation2 + $0xc8] sm:$0xff]
    %v58 = vld [vmem:[#allocation2 + $0xd0] sm:$0xff]
    %v59 = vld [vmem:[#allocation2 + $0xd8] sm:$0xff]
    %v60 = vld [vmem:[#allocation2 + $0xe0] sm:$0xff]
    %v61 = vld [vmem:[#allocation2 + $0xe8] sm:$0xff]
    %v62 = vld [vmem:[#allocation2 + $0xf0] sm:$0xff]
    %v63 = vld [vmem:[#allocation2 + $0xf8] sm:$0xff]
    %v64 = vld [vmem:[#allocation2 + $0x100] sm:$0xff]
    %v65 = vld [vmem:[#allocation2 + $0x108] sm:$0xff]
    %v66 = vld [vmem:[#allocation2 + $0x110] sm:$0xff]
    %v67 = vld [vmem:[#allocation2 + $0x118] sm:$0xff]
    %v68 = vld [vmem:[#allocation2 + $0x120] sm:$0xff]
    %v69 = vld [vmem:[#allocation2 + $0x128] sm:$0xff]
    %v70 = vld [vmem:[#allocation2 + $0x130] sm:$0xff]
    %v71 = vld [vmem:[#allocation2 + $0x138] sm:$0xff]
    %v72 = vld [vmem:[#allocation2 + $0x140] sm:$0xff]
    %v73 = vld [vmem:[#allocation2 + $0x148] sm:$0xff]
    %v74 = vld [vmem:[#allocation2 + $0x150] sm:$0xff]
    %v75 = vld [vmem:[#allocation2 + $0x158] sm:$0xff]
    %v76 = vld [vmem:[#allocation2 + $0x160] sm:$0xff]
    %v77 = vld [vmem:[#allocation2 + $0x168] sm:$0xff]
    %v78 = vld [vmem:[#allocation2 + $0x170] sm:$0xff]
    %v79 = vld [vmem:[#allocation2 + $0x178] sm:$0xff]
    %v80 = vld [vmem:[#allocation2 + $0x180] sm:$0xff]
    %v81 = vld [vmem:[#allocation2 + $0x188] sm:$0xff]
    %v82 = vld [vmem:[#allocation2 + $0x190] sm:$0xff]
    %v83 = vld [vmem:[#allocation2 + $0x198] sm:$0xff]
    %v84 = vld [vmem:[#allocation2 + $0x1a0] sm:$0xff]
    %v85 = vld [vmem:[#allocation2 + $0x1a8] sm:$0xff]
    %v86 = vld [vmem:[#allocation2 + $0x1b0] sm:$0xff]
    %v87 = vld [vmem:[#allocation2 + $0x1b8] sm:$0xff]
    %v88 = vld [vmem:[#allocation2 + $0x1c0] sm:$0xff]
    %v89 = vld [vmem:[#allocation2 + $0x1c8] sm:$0xff]
    %v90 = vld [vmem:[#allocation2 + $0x1d0] sm:$0xff]
    %v91 = vld [vmem:[#allocation2 + $0x1d8] sm:$0xff]
    %v92 = vld [vmem:[#allocation2 + $0x1e0] sm:$0xff]
    %v93 = vld [vmem:[#allocation2 + $0x1e8] sm:$0xff]
    %v94 = vld [vmem:[#allocation2 + $0x1f0] sm:$0xff]
    %v95 = vld [vmem:[#allocation2 + $0x1f8] sm:$0xff]
    %v96 = vld [vmem:[%s2] sm:$0x3]
    %v98 = vlaneseq
    %v99 = vshrl.u32 %v98, 7
    %v100 = vsub.s32 0, %v99
    %v101 = vrot.slane %v96, %v100
    %v102 = vlaneseq
    %v103 = vshrl.u32 %v102, 7
    %v104 = vsub.s32 1, %v103
    %v105 = vrot.slane %v96, %v104
    %108 = vmatprep.subr.mxu0 %v33
    %109 = vmatpush1.msra.mxu0 %v32
    %110 = vmatprep.subr.mxu0 %v35
    %111 = vmatpush1.msra.mxu0 %v34
    %112 = vmatprep.subr.mxu0 %v37
    %113 = vmatpush1.msra.mxu0 %v36
    %114 = vmatprep.subr.mxu0 %v39
    %115 = vmatpush1.msra.mxu0 %v38
    %116 = vmatprep.subr.mxu0 %v41
    %117 = vmatpush1.msra.mxu0 %v40
    %118 = vmatprep.subr.mxu0 %v43
    %119 = vmatpush1.msra.mxu0 %v42
    %120 = vmatprep.subr.mxu0 %v45
    %121 = vmatpush1.msra.mxu0 %v44
    %122 = vmatprep.subr.mxu0 %v47
    %123 = vmatpush1.msra.mxu0 %v46
    %124 = vmatprep.subr.mxu0 %v49
    %125 = vmatpush1.msra.mxu0 %v48
    %126 = vmatprep.subr.mxu0 %v51
    %127 = vmatpush1.msra.mxu0 %v50
    %128 = vmatprep.subr.mxu0 %v53
    %129 = vmatpush1.msra.mxu0 %v52
    %130 = vmatprep.subr.mxu0 %v55
    %131 = vmatpush1.msra.mxu0 %v54
    %132 = vmatprep.subr.mxu0 %v57
    %133 = vmatpush1.msra.mxu0 %v56
    %134 = vmatprep.subr.mxu0 %v59
    %135 = vmatpush1.msra.mxu0 %v58
    %136 = vmatprep.subr.mxu0 %v61
    %137 = vmatpush1.msra.mxu0 %v60
    %138 = vmatprep.subr.mxu0 %v63
    %139 = vmatpush1.msra.mxu0 %v62
    %140 = vmatprep.subr.mxu0 %v65
    %141 = vmatpush1.msra.mxu0 %v64
    %142 = vmatprep.subr.mxu0 %v67
    %143 = vmatpush1.msra.mxu0 %v66
    %144 = vmatprep.subr.mxu0 %v69
    %145 = vmatpush1.msra.mxu0 %v68
    %146 = vmatprep.subr.mxu0 %v71
    %147 = vmatpush1.msra.mxu0 %v70
    %148 = vmatprep.subr.mxu0 %v73
    %149 = vmatpush1.msra.mxu0 %v72
    %150 = vmatprep.subr.mxu0 %v75
    %151 = vmatpush1.msra.mxu0 %v74
    %152 = vmatprep.subr.mxu0 %v77
    %153 = vmatpush1.msra.mxu0 %v76
    %154 = vmatprep.subr.mxu0 %v79
    %155 = vmatpush1.msra.mxu0 %v78
    %156 = vmatprep.subr.mxu0 %v81
    %157 = vmatpush1.msra.mxu0 %v80
    %158 = vmatprep.subr.mxu0 %v83
    %159 = vmatpush1.msra.mxu0 %v82
    %160 = vmatprep.subr.mxu0 %v85
    %161 = vmatpush1.msra.mxu0 %v84
    %162 = vmatprep.subr.mxu0 %v87
    %163 = vmatpush1.msra.mxu0 %v86
    %164 = vmatprep.subr.mxu0 %v89
    %165 = vmatpush1.msra.mxu0 %v88
    %166 = vmatprep.subr.mxu0 %v91
    %167 = vmatpush1.msra.mxu0 %v90
    %168 = vmatprep.subr.mxu0 %v93
    %169 = vmatpush1.msra.mxu0 %v92
    %170 = vmatprep.subr.mxu0 %v95
    %171 = vmatpush1.msra.mxu0 %v94
    %172 = vmatprep.mubr.f32.mxu0 %v29
    %173 = vmatmul.mubr.f32.gmra.mrb[0].mxu0 %v28
    %v174 = vpop.f32.mrb[0].mxu0
    %v175 = vadd.f32 %v101, %v174
    %v176 = vpop.f32.mrb[0].mxu0
    %v177 = vadd.f32 %v105, %v176
    %178 = vmatprep.mubr.f32.mxu0 %v31
    %179 = vmatmul.mubr.f32.gmra.mrb[0].mxu0 %v30
    %v180 = vpop.f32.mrb[0].mxu0
    %v181 = vadd.f32 %v101, %v180
    %v182 = vpop.f32.mrb[0].mxu0
    %v183 = vadd.f32 %v105, %v182
    %184 = vdwg.mxu0
    %185 = vst [vmem:[%s3] sm:$0xff] %v175
    %186 = vst [vmem:[%s3 + $0x8] sm:$0xff] %v177
    %187 = vst [vmem:[%s3 + $0x10] sm:$0xff] %v181
    %188 = vst [vmem:[%s3 + $0x18] sm:$0xff] %v183
    // Predicated region
    $region18: #{dalle_forward.5} parent=1 // pred_check
      _
    $region19: #{dalle_forward.5} parent=1 // pred_check_branch
      %190 = sbr.rel (0) target = $region21
    $region20: #{dalle_forward.5} parent=1 // pred_region
      _
    $region21: #{dalle_forward.5} parent=1 // pred_fallthru
      _
    // Predicated region
    $region22: #{dalle_forward.5} parent=1 // pred_check
      _
    $region23: #{dalle_forward.5} parent=1 // pred_check_branch
      %192 = sbr.rel (0) target = $region25
    $region24: #{dalle_forward.5} parent=1 // pred_region
      _
    $region25: #{dalle_forward.5} parent=1 // pred_fallthru
      _
    %193 = vsyncpa [#allocation3], 1

// kernel: dalle_forward.6
$region0: #{dalle_forward.6}
  #allocation0 [shape = 'u32[]', space=smem, size = 0x4, offset = 0x4, fixed_abs, tag = 'smem constant byte address 0x4 - core index']
  #allocation1 [shape = 'u32[144,128]{1,0:T(1,128)}', space=vmem, size = 0x12000, scoped, tag = 'internal scratch']
  %s0 = inlined_call_operand.vmem [shape: f32[16,256], index: 0, kind: input, shape index: {}]
  %s1 = inlined_call_operand.hbm [shape: f32[256,512], index: 1, kind: input, shape index: {}]
  %s2 = inlined_call_operand.vmem [shape: f32[1,512], index: 2, kind: input, shape index: {}]
  %s3 = inlined_call_operand.vmem [shape: f32[16,512], index: 3, kind: output, shape index: {}]
  %s4 = sld [smem:[#allocation0]]
  $region26: #{dalle_forward.6} parent=0
    _
  %s6 = ssub.s32 1, %s4
  %s7 = scalar_select 0, %s6, %s4
  $region1: #{dalle_forward.6} parent=0
    #allocation2 [shape = 'u8[524288]{0}', space=vmem, size = 0x80000, scoped, tag = 'input window, operand 1, single buffered']
    #allocation3 [shape = 's32[1]{0}', space=sflag, size = 0x4, scoped, tag = 'scoped memory for dalle_forward.6']
    %8 = vsyncpa [#allocation3], 0
    // Predicated region
    $region2: #{dalle_forward.6} parent=1 // pred_check
      _
    $region3: #{dalle_forward.6} parent=1 // pred_check_branch
      %10 = sbr.rel (0) target = $region5
    $region4: #{dalle_forward.6} parent=1 // pred_region
      _
    $region5: #{dalle_forward.6} parent=1 // pred_fallthru
      _
    // Predicated region
    $region6: #{dalle_forward.6} parent=1 // pred_check
      _
    $region7: #{dalle_forward.6} parent=1 // pred_check_branch
      %12 = sbr.rel (0) target = $region9
    $region8: #{dalle_forward.6} parent=1 // pred_region
      %s14 = ssub.s32 16384, 16384
      %15 = vsyncadd [#allocation3], %s14
      %s16 = sshll.u32 [#allocation2], 4
      %s17 = int_to_ptr.vmem [resolvable:$true] %s16
      %22 = dma.hbm_to_vmem [thread:$0]  %s1, 16384, %s17, [#allocation3], 512, 512, 32
    $region9: #{dalle_forward.6} parent=1 // pred_fallthru
      _
    // Predicated region
    $region10: #{dalle_forward.6} parent=1 // pred_check
      _
    $region11: #{dalle_forward.6} parent=1 // pred_check_branch
      %24 = sbr.rel (0) target = $region13
    $region12: #{dalle_forward.6} parent=1 // pred_region
      _
    $region13: #{dalle_forward.6} parent=1 // pred_fallthru
      _
    // Predicated region
    $region14: #{dalle_forward.6} parent=1 // pred_check
      _
    $region15: #{dalle_forward.6} parent=1 // pred_check_branch
      %26 = sbr.rel (0) target = $region17
    $region16: #{dalle_forward.6} parent=1 // pred_region
      %27 = dma.done [#allocation3], 16384
    $region17: #{dalle_forward.6} parent=1 // pred_fallthru
      _
    %v28 = vld [vmem:[%s0] sm:$0xff]
    %v29 = vld [vmem:[%s0 + $0x8] sm:$0xff]
    %v30 = vld [vmem:[%s0 + $0x10] sm:$0xff]
    %v31 = vld [vmem:[%s0 + $0x18] sm:$0xff]
    %v32 = vld [vmem:[#allocation2] sm:$0xff]
    %v33 = vld [vmem:[#allocation2 + $0x8] sm:$0xff]
    %v34 = vld [vmem:[#allocation2 + $0x10] sm:$0xff]
    %v35 = vld [vmem:[#allocation2 + $0x18] sm:$0xff]
    %v36 = vld [vmem:[#allocation2 + $0x20] sm:$0xff]
    %v37 = vld [vmem:[#allocation2 + $0x28] sm:$0xff]
    %v38 = vld [vmem:[#allocation2 + $0x30] sm:$0xff]
    %v39 = vld [vmem:[#allocation2 + $0x38] sm:$0xff]
    %v40 = vld [vmem:[#allocation2 + $0x40] sm:$0xff]
    %v41 = vld [vmem:[#allocation2 + $0x48] sm:$0xff]
    %v42 = vld [vmem:[#allocation2 + $0x50] sm:$0xff]
    %v43 = vld [vmem:[#allocation2 + $0x58] sm:$0xff]
    %v44 = vld [vmem:[#allocation2 + $0x60] sm:$0xff]
    %v45 = vld [vmem:[#allocation2 + $0x68] sm:$0xff]
    %v46 = vld [vmem:[#allocation2 + $0x70] sm:$0xff]
    %v47 = vld [vmem:[#allocation2 + $0x78] sm:$0xff]
    %v48 = vld [vmem:[#allocation2 + $0x80] sm:$0xff]
    %v49 = vld [vmem:[#allocation2 + $0x88] sm:$0xff]
    %v50 = vld [vmem:[#allocation2 + $0x90] sm:$0xff]
    %v51 = vld [vmem:[#allocation2 + $0x98] sm:$0xff]
    %v52 = vld [vmem:[#allocation2 + $0xa0] sm:$0xff]
    %v53 = vld [vmem:[#allocation2 + $0xa8] sm:$0xff]
    %v54 = vld [vmem:[#allocation2 + $0xb0] sm:$0xff]
    %v55 = vld [vmem:[#allocation2 + $0xb8] sm:$0xff]
    %v56 = vld [vmem:[#allocation2 + $0xc0] sm:$0xff]
    %v57 = vld [vmem:[#allocation2 + $0xc8] sm:$0xff]
    %v58 = vld [vmem:[#allocation2 + $0xd0] sm:$0xff]
    %v59 = vld [vmem:[#allocation2 + $0xd8] sm:$0xff]
    %v60 = vld [vmem:[#allocation2 + $0xe0] sm:$0xff]
    %v61 = vld [vmem:[#allocation2 + $0xe8] sm:$0xff]
    %v62 = vld [vmem:[#allocation2 + $0xf0] sm:$0xff]
    %v63 = vld [vmem:[#allocation2 + $0xf8] sm:$0xff]
    %v64 = vld [vmem:[#allocation2 + $0x100] sm:$0xff]
    %v65 = vld [vmem:[#allocation2 + $0x108] sm:$0xff]
    %v66 = vld [vmem:[#allocation2 + $0x110] sm:$0xff]
    %v67 = vld [vmem:[#allocation2 + $0x118] sm:$0xff]
    %v68 = vld [vmem:[#allocation2 + $0x120] sm:$0xff]
    %v69 = vld [vmem:[#allocation2 + $0x128] sm:$0xff]
    %v70 = vld [vmem:[#allocation2 + $0x130] sm:$0xff]
    %v71 = vld [vmem:[#allocation2 + $0x138] sm:$0xff]
    %v72 = vld [vmem:[#allocation2 + $0x140] sm:$0xff]
    %v73 = vld [vmem:[#allocation2 + $0x148] sm:$0xff]
    %v74 = vld [vmem:[#allocation2 + $0x150] sm:$0xff]
    %v75 = vld [vmem:[#allocation2 + $0x158] sm:$0xff]
    %v76 = vld [vmem:[#allocation2 + $0x160] sm:$0xff]
    %v77 = vld [vmem:[#allocation2 + $0x168] sm:$0xff]
    %v78 = vld [vmem:[#allocation2 + $0x170] sm:$0xff]
    %v79 = vld [vmem:[#allocation2 + $0x178] sm:$0xff]
    %v80 = vld [vmem:[#allocation2 + $0x180] sm:$0xff]
    %v81 = vld [vmem:[#allocation2 + $0x188] sm:$0xff]
    %v82 = vld [vmem:[#allocation2 + $0x190] sm:$0xff]
    %v83 = vld [vmem:[#allocation2 + $0x198] sm:$0xff]
    %v84 = vld [vmem:[#allocation2 + $0x1a0] sm:$0xff]
    %v85 = vld [vmem:[#allocation2 + $0x1a8] sm:$0xff]
    %v86 = vld [vmem:[#allocation2 + $0x1b0] sm:$0xff]
    %v87 = vld [vmem:[#allocation2 + $0x1b8] sm:$0xff]
    %v88 = vld [vmem:[#allocation2 + $0x1c0] sm:$0xff]
    %v89 = vld [vmem:[#allocation2 + $0x1c8] sm:$0xff]
    %v90 = vld [vmem:[#allocation2 + $0x1d0] sm:$0xff]
    %v91 = vld [vmem:[#allocation2 + $0x1d8] sm:$0xff]
    %v92 = vld [vmem:[#allocation2 + $0x1e0] sm:$0xff]
    %v93 = vld [vmem:[#allocation2 + $0x1e8] sm:$0xff]
    %v94 = vld [vmem:[#allocation2 + $0x1f0] sm:$0xff]
    %v95 = vld [vmem:[#allocation2 + $0x1f8] sm:$0xff]
    %v96 = vld [vmem:[#allocation2 + $0x200] sm:$0xff]
    %v97 = vld [vmem:[#allocation2 + $0x208] sm:$0xff]
    %v98 = vld [vmem:[#allocation2 + $0x210] sm:$0xff]
    %v99 = vld [vmem:[#allocation2 + $0x218] sm:$0xff]
    %v100 = vld [vmem:[#allocation2 + $0x220] sm:$0xff]
    %v101 = vld [vmem:[#allocation2 + $0x228] sm:$0xff]
    %v102 = vld [vmem:[#allocation2 + $0x230] sm:$0xff]
    %v103 = vld [vmem:[#allocation2 + $0x238] sm:$0xff]
    %v104 = vld [vmem:[#allocation2 + $0x240] sm:$0xff]
    %v105 = vld [vmem:[#allocation2 + $0x248] sm:$0xff]
    %v106 = vld [vmem:[#allocation2 + $0x250] sm:$0xff]
    %v107 = vld [vmem:[#allocation2 + $0x258] sm:$0xff]
    %v108 = vld [vmem:[#allocation2 + $0x260] sm:$0xff]
    %v109 = vld [vmem:[#allocation2 + $0x268] sm:$0xff]
    %v110 = vld [vmem:[#allocation2 + $0x270] sm:$0xff]
    %v111 = vld [vmem:[#allocation2 + $0x278] sm:$0xff]
    %v112 = vld [vmem:[#allocation2 + $0x280] sm:$0xff]
    %v113 = vld [vmem:[#allocation2 + $0x288] sm:$0xff]
    %v114 = vld [vmem:[#allocation2 + $0x290] sm:$0xff]
    %v115 = vld [vmem:[#allocation2 + $0x298] sm:$0xff]
    %v116 = vld [vmem:[#allocation2 + $0x2a0] sm:$0xff]
    %v117 = vld [vmem:[#allocation2 + $0x2a8] sm:$0xff]
    %v118 = vld [vmem:[#allocation2 + $0x2b0] sm:$0xff]
    %v119 = vld [vmem:[#allocation2 + $0x2b8] sm:$0xff]
    %v120 = vld [vmem:[#allocation2 + $0x2c0] sm:$0xff]
    %v121 = vld [vmem:[#allocation2 + $0x2c8] sm:$0xff]
    %v122 = vld [vmem:[#allocation2 + $0x2d0] sm:$0xff]
    %v123 = vld [vmem:[#allocation2 + $0x2d8] sm:$0xff]
    %v124 = vld [vmem:[#allocation2 + $0x2e0] sm:$0xff]
    %v125 = vld [vmem:[#allocation2 + $0x2e8] sm:$0xff]
    %v126 = vld [vmem:[#allocation2 + $0x2f0] sm:$0xff]
    %v127 = vld [vmem:[#allocation2 + $0x2f8] sm:$0xff]
    %v128 = vld [vmem:[#allocation2 + $0x300] sm:$0xff]
    %v129 = vld [vmem:[#allocation2 + $0x308] sm:$0xff]
    %v130 = vld [vmem:[#allocation2 + $0x310] sm:$0xff]
    %v131 = vld [vmem:[#allocation2 + $0x318] sm:$0xff]
    %v132 = vld [vmem:[#allocation2 + $0x320] sm:$0xff]
    %v133 = vld [vmem:[#allocation2 + $0x328] sm:$0xff]
    %v134 = vld [vmem:[#allocation2 + $0x330] sm:$0xff]
    %v135 = vld [vmem:[#allocation2 + $0x338] sm:$0xff]
    %v136 = vld [vmem:[#allocation2 + $0x340] sm:$0xff]
    %v137 = vld [vmem:[#allocation2 + $0x348] sm:$0xff]
    %v138 = vld [vmem:[#allocation2 + $0x350] sm:$0xff]
    %v139 = vld [vmem:[#allocation2 + $0x358] sm:$0xff]
    %v140 = vld [vmem:[#allocation2 + $0x360] sm:$0xff]
    %v141 = vld [vmem:[#allocation2 + $0x368] sm:$0xff]
    %v142 = vld [vmem:[#allocation2 + $0x370] sm:$0xff]
    %v143 = vld [vmem:[#allocation2 + $0x378] sm:$0xff]
    %v144 = vld [vmem:[#allocation2 + $0x380] sm:$0xff]
    %v145 = vld [vmem:[#allocation2 + $0x388] sm:$0xff]
    %v146 = vld [vmem:[#allocation2 + $0x390] sm:$0xff]
    %v147 = vld [vmem:[#allocation2 + $0x398] sm:$0xff]
    %v148 = vld [vmem:[#allocation2 + $0x3a0] sm:$0xff]
    %v149 = vld [vmem:[#allocation2 + $0x3a8] sm:$0xff]
    %v150 = vld [vmem:[#allocation2 + $0x3b0] sm:$0xff]
    %v151 = vld [vmem:[#allocation2 + $0x3b8] sm:$0xff]
    %v152 = vld [vmem:[#allocation2 + $0x3c0] sm:$0xff]
    %v153 = vld [vmem:[#allocation2 + $0x3c8] sm:$0xff]
    %v154 = vld [vmem:[#allocation2 + $0x3d0] sm:$0xff]
    %v155 = vld [vmem:[#allocation2 + $0x3d8] sm:$0xff]
    %v156 = vld [vmem:[#allocation2 + $0x3e0] sm:$0xff]
    %v157 = vld [vmem:[#allocation2 + $0x3e8] sm:$0xff]
    %v158 = vld [vmem:[#allocation2 + $0x3f0] sm:$0xff]
    %v159 = vld [vmem:[#allocation2 + $0x3f8] sm:$0xff]
    %v160 = vld [vmem:[%s2] sm:$0xf]
    %v162 = vlaneseq
    %v163 = vshrl.u32 %v162, 7
    %v164 = vsub.s32 0, %v163
    %v165 = vrot.slane %v160, %v164
    %v166 = vlaneseq
    %v167 = vshrl.u32 %v166, 7
    %v168 = vsub.s32 1, %v167
    %v169 = vrot.slane %v160, %v168
    %v170 = vlaneseq
    %v171 = vshrl.u32 %v170, 7
    %v172 = vsub.s32 2, %v171
    %v173 = vrot.slane %v160, %v172
    %v174 = vlaneseq
    %v175 = vshrl.u32 %v174, 7
    %v176 = vsub.s32 3, %v175
    %v177 = vrot.slane %v160, %v176
    %182 = vmatprep.subr.mxu0 %v33
    %183 = vmatpush1.msra.mxu0 %v32
    %184 = vmatprep.subr.mxu0 %v37
    %185 = vmatpush1.msra.mxu0 %v36
    %186 = vmatprep.subr.mxu0 %v41
    %187 = vmatpush1.msra.mxu0 %v40
    %188 = vmatprep.subr.mxu0 %v45
    %189 = vmatpush1.msra.mxu0 %v44
    %190 = vmatprep.subr.mxu0 %v49
    %191 = vmatpush1.msra.mxu0 %v48
    %192 = vmatprep.subr.mxu0 %v53
    %193 = vmatpush1.msra.mxu0 %v52
    %194 = vmatprep.subr.mxu0 %v57
    %195 = vmatpush1.msra.mxu0 %v56
    %196 = vmatprep.subr.mxu0 %v61
    %197 = vmatpush1.msra.mxu0 %v60
    %198 = vmatprep.subr.mxu0 %v65
    %199 = vmatpush1.msra.mxu0 %v64
    %200 = vmatprep.subr.mxu0 %v69
    %201 = vmatpush1.msra.mxu0 %v68
    %202 = vmatprep.subr.mxu0 %v73
    %203 = vmatpush1.msra.mxu0 %v72
    %204 = vmatprep.subr.mxu0 %v77
    %205 = vmatpush1.msra.mxu0 %v76
    %206 = vmatprep.subr.mxu0 %v81
    %207 = vmatpush1.msra.mxu0 %v80
    %208 = vmatprep.subr.mxu0 %v85
    %209 = vmatpush1.msra.mxu0 %v84
    %210 = vmatprep.subr.mxu0 %v89
    %211 = vmatpush1.msra.mxu0 %v88
    %212 = vmatprep.subr.mxu0 %v93
    %213 = vmatpush1.msra.mxu0 %v92
    %214 = vmatprep.subr.mxu0 %v97
    %215 = vmatpush1.msra.mxu0 %v96
    %216 = vmatprep.subr.mxu0 %v101
    %217 = vmatpush1.msra.mxu0 %v100
    %218 = vmatprep.subr.mxu0 %v105
    %219 = vmatpush1.msra.mxu0 %v104
    %220 = vmatprep.subr.mxu0 %v109
    %221 = vmatpush1.msra.mxu0 %v108
    %222 = vmatprep.subr.mxu0 %v113
    %223 = vmatpush1.msra.mxu0 %v112
    %224 = vmatprep.subr.mxu0 %v117
    %225 = vmatpush1.msra.mxu0 %v116
    %226 = vmatprep.subr.mxu0 %v121
    %227 = vmatpush1.msra.mxu0 %v120
    %228 = vmatprep.subr.mxu0 %v125
    %229 = vmatpush1.msra.mxu0 %v124
    %230 = vmatprep.subr.mxu0 %v129
    %231 = vmatpush1.msra.mxu0 %v128
    %232 = vmatprep.subr.mxu0 %v133
    %233 = vmatpush1.msra.mxu0 %v132
    %234 = vmatprep.subr.mxu0 %v137
    %235 = vmatpush1.msra.mxu0 %v136
    %236 = vmatprep.subr.mxu0 %v141
    %237 = vmatpush1.msra.mxu0 %v140
    %238 = vmatprep.subr.mxu0 %v145
    %239 = vmatpush1.msra.mxu0 %v144
    %240 = vmatprep.subr.mxu0 %v149
    %241 = vmatpush1.msra.mxu0 %v148
    %242 = vmatprep.subr.mxu0 %v153
    %243 = vmatpush1.msra.mxu0 %v152
    %244 = vmatprep.subr.mxu0 %v157
    %245 = vmatpush1.msra.mxu0 %v156
    %246 = vmatprep.mubr.f32.mxu0 %v29
    %247 = vmatmul.mubr.f32.gmra.mrb[0].mxu0 %v28
    %v248 = vpop.f32.mrb[0].mxu0
    %v249 = vadd.f32 %v165, %v248
    %v250 = vpop.f32.mrb[0].mxu0
    %v251 = vadd.f32 %v169, %v250
    %252 = vmatprep.mubr.f32.mxu0 %v31
    %253 = vmatmul.mubr.f32.gmra.mrb[0].mxu0 %v30
    %v254 = vpop.f32.mrb[0].mxu0
    %v255 = vadd.f32 %v165, %v254
    %v256 = vpop.f32.mrb[0].mxu0
    %v257 = vadd.f32 %v169, %v256
    %258 = vdwg.mxu0
    %259 = vmatprep.subr.mxu0 %v35
    %260 = vmatpush1.msra.mxu0 %v34
    %261 = vmatprep.subr.mxu0 %v39
    %262 = vmatpush1.msra.mxu0 %v38
    %263 = vmatprep.subr.mxu0 %v43
    %264 = vmatpush1.msra.mxu0 %v42
    %265 = vmatprep.subr.mxu0 %v47
    %266 = vmatpush1.msra.mxu0 %v46
    %267 = vmatprep.subr.mxu0 %v51
    %268 = vmatpush1.msra.mxu0 %v50
    %269 = vmatprep.subr.mxu0 %v55
    %270 = vmatpush1.msra.mxu0 %v54
    %271 = vmatprep.subr.mxu0 %v59
    %272 = vmatpush1.msra.mxu0 %v58
    %273 = vmatprep.subr.mxu0 %v63
    %274 = vmatpush1.msra.mxu0 %v62
    %275 = vmatprep.subr.mxu0 %v67
    %276 = vmatpush1.msra.mxu0 %v66
    %277 = vmatprep.subr.mxu0 %v71
    %278 = vmatpush1.msra.mxu0 %v70
    %279 = vmatprep.subr.mxu0 %v75
    %280 = vmatpush1.msra.mxu0 %v74
    %281 = vmatprep.subr.mxu0 %v79
    %282 = vmatpush1.msra.mxu0 %v78
    %283 = vmatprep.subr.mxu0 %v83
    %284 = vmatpush1.msra.mxu0 %v82
    %285 = vmatprep.subr.mxu0 %v87
    %286 = vmatpush1.msra.mxu0 %v86
    %287 = vmatprep.subr.mxu0 %v91
    %288 = vmatpush1.msra.mxu0 %v90
    %289 = vmatprep.subr.mxu0 %v95
    %290 = vmatpush1.msra.mxu0 %v94
    %291 = vmatprep.subr.mxu0 %v99
    %292 = vmatpush1.msra.mxu0 %v98
    %293 = vmatprep.subr.mxu0 %v103
    %294 = vmatpush1.msra.mxu0 %v102
    %295 = vmatprep.subr.mxu0 %v107
    %296 = vmatpush1.msra.mxu0 %v106
    %297 = vmatprep.subr.mxu0 %v111
    %298 = vmatpush1.msra.mxu0 %v110
    %299 = vmatprep.subr.mxu0 %v115
    %300 = vmatpush1.msra.mxu0 %v114
    %301 = vmatprep.subr.mxu0 %v119
    %302 = vmatpush1.msra.mxu0 %v118
    %303 = vmatprep.subr.mxu0 %v123
    %304 = vmatpush1.msra.mxu0 %v122
    %305 = vmatprep.subr.mxu0 %v127
    %306 = vmatpush1.msra.mxu0 %v126
    %307 = vmatprep.subr.mxu0 %v131
    %308 = vmatpush1.msra.mxu0 %v130
    %309 = vmatprep.subr.mxu0 %v135
    %310 = vmatpush1.msra.mxu0 %v134
    %311 = vmatprep.subr.mxu0 %v139
    %312 = vmatpush1.msra.mxu0 %v138
    %313 = vmatprep.subr.mxu0 %v143
    %314 = vmatpush1.msra.mxu0 %v142
    %315 = vmatprep.subr.mxu0 %v147
    %316 = vmatpush1.msra.mxu0 %v146
    %317 = vmatprep.subr.mxu0 %v151
    %318 = vmatpush1.msra.mxu0 %v150
    %319 = vmatprep.subr.mxu0 %v155
    %320 = vmatpush1.msra.mxu0 %v154
    %321 = vmatprep.subr.mxu0 %v159
    %322 = vmatpush1.msra.mxu0 %v158
    %323 = vmatprep.mubr.f32.mxu0 %v29
    %324 = vmatmul.mubr.f32.gmra.mrb[0].mxu0 %v28
    %v325 = vpop.f32.mrb[0].mxu0
    %v326 = vadd.f32 %v173, %v325
    %v327 = vpop.f32.mrb[0].mxu0
    %v328 = vadd.f32 %v177, %v327
    %329 = vmatprep.mubr.f32.mxu0 %v31
    %330 = vmatmul.mubr.f32.gmra.mrb[0].mxu0 %v30
    %v331 = vpop.f32.mrb[0].mxu0
    %v332 = vadd.f32 %v173, %v331
    %v333 = vpop.f32.mrb[0].mxu0
    %v334 = vadd.f32 %v177, %v333
    %335 = vdwg.mxu0
    %336 = vst [vmem:[%s3] sm:$0xff] %v249
    %337 = vst [vmem:[%s3 + $0x8] sm:$0xff] %v251
    %338 = vst [vmem:[%s3 + $0x10] sm:$0xff] %v326
    %339 = vst [vmem:[%s3 + $0x18] sm:$0xff] %v328
    %340 = vst [vmem:[%s3 + $0x20] sm:$0xff] %v255
    %341 = vst [vmem:[%s3 + $0x28] sm:$0xff] %v257
    %342 = vst [vmem:[%s3 + $0x30] sm:$0xff] %v332
    %343 = vst [vmem:[%s3 + $0x38] sm:$0xff] %v334
    // Predicated region
    $region18: #{dalle_forward.6} parent=1 // pred_check
      _
    $region19: #{dalle_forward.6} parent=1 // pred_check_branch
      %345 = sbr.rel (0) target = $region21
    $region20: #{dalle_forward.6} parent=1 // pred_region
      _
    $region21: #{dalle_forward.6} parent=1 // pred_fallthru
      _
    // Predicated region
    $region22: #{dalle_forward.6} parent=1 // pred_check
      _
    $region23: #{dalle_forward.6} parent=1 // pred_check_branch
      %347 = sbr.rel (0) target = $region25
    $region24: #{dalle_forward.6} parent=1 // pred_region
      _
    $region25: #{dalle_forward.6} parent=1 // pred_fallthru
      _
    %348 = vsyncpa [#allocation3], 1

// kernel: closed_call.38
$region0: #{closed_call.38}
  #allocation0 [shape = 'u32[]', space=smem, size = 0x4, offset = 0x4, fixed_abs, tag = 'smem constant byte address 0x4 - core index']
  #allocation1 [shape = 'u32[144,128]{1,0:T(1,128)}', space=vmem, size = 0x12000, scoped, tag = 'internal scratch']
  %s0 = inlined_call_operand.vmem [shape: f32[2,256], index: 0, kind: input, shape index: {}]
  %s1 = inlined_call_operand.vmem [shape: f32[256,256], index: 1, kind: input, shape index: {}]
  %s2 = inlined_call_operand.vmem [shape: f32[2,256], index: 2, kind: output, shape index: {}]
  %s3 = sld [smem:[#allocation0]]
  $region79: #{closed_call.38} parent=0
    _
  %s5 = ssub.s32 1, %s3
  %s6 = scalar_select 0, %s5, %s3
  $region1: #{closed_call.38} parent=0
    #allocation2 [shape = 'u8[262144]{0}', space=vmem, size = 0x40000, scoped, tag = 'input window, operand 1']
    loop: start=0, step=1, limit=4
    $region2: #{closed_call.38} parent=1 // loop_pre_header
      _
    $region3: #{closed_call.38} parent=1 // loop_header
      %s8 = sphi 0, %s12
      %p9 = scmp.ge.s32.totalorder %s8, 4
      %s16 = sphi 0, %s16
      %s18 = sphi 0, %s16
      %s19 = sphi 0, %s18
      %s33 = sphi 0, %s19
      %s39 = sphi 0, %s41
      %s42 = sphi 0, %s39
      %s43 = sphi 0, %s42
      %s59 = sphi 0, %s43
      %s65 = sphi 0, %s67
      %s68 = sphi 0, %s65
      %s69 = sphi 0, %s68
      %s85 = sphi 0, %s69
    $region4: #{closed_call.38} parent=1 // loop_header_branch
      %11 = sbr.rel (%p9) target = $region8
    $region5: #{closed_call.38} parent=1 // loop_body
      %s13 = ssub.s32 %s8, 1
      %s14 = ssub.s32 %s8, 2
      %s15 = sadd.s32 %s8, 1
      %s17 = sadd.s32 %s16, 1
      %p20 = scmp.eq.s32.totalorder %s8, 1
      %p21 = scmp.ne.s32.totalorder %s16, %s18
      %p22 = scmp.eq.s32.totalorder %s8, 0
      %p23 = por %p21, %p22
      %p24 = scmp.ne.s32.totalorder %s16, %s18
      %p25 = scmp.eq.s32.totalorder %s13, 1
      %p26 = por %p24, %p25
      %p27 = scmp.ne.s32.totalorder %s18, %s19
      %p28 = scmp.eq.s32.totalorder %s13, 0
      %p29 = por %p27, %p28
      %p30 = scmp.ne.s32.totalorder %s18, %s19
      %p31 = scmp.eq.s32.totalorder %s14, 1
      %p32 = por %p30, %p31
      %p34 = scmp.ne.s32.totalorder %s19, %s33
      %p35 = scmp.eq.s32.totalorder %s14, 0
      %p36 = por %p34, %p35
      %s37 = ssub.s32 %s8, %s15
      %p38 = scmp.eq.s32.totalorder %s37, 0
      %s40 = sadd.s32 %s39, 1
      %s41 = scalar_select %p38, %s39, %s40
      %p44 = pneg %p38
      %p45 = scmp.eq.s32.totalorder %s8, 1
      %p46 = por %p44, %p45
      %p47 = scmp.ne.s32.totalorder %s39, %s42
      %p48 = scmp.eq.s32.totalorder %s8, 0
      %p49 = por %p47, %p48
      %p50 = scmp.ne.s32.totalorder %s39, %s42
      %p51 = scmp.eq.s32.totalorder %s13, 1
      %p52 = por %p50, %p51
      %p53 = scmp.ne.s32.totalorder %s42, %s43
      %p54 = scmp.eq.s32.totalorder %s13, 0
      %p55 = por %p53, %p54
      %p56 = scmp.ne.s32.totalorder %s42, %s43
      %p57 = scmp.eq.s32.totalorder %s14, 1
      %p58 = por %p56, %p57
      %p60 = scmp.ne.s32.totalorder %s43, %s59
      %p61 = scmp.eq.s32.totalorder %s14, 0
      %p62 = por %p60, %p61
      %s63 = ssub.s32 %s8, %s15
      %p64 = scmp.eq.s32.totalorder %s63, 0
      %s66 = sadd.s32 %s65, 1
      %s67 = scalar_select %p64, %s65, %s66
      %p70 = pneg %p64
      %p71 = scmp.eq.s32.totalorder %s8, 1
      %p72 = por %p70, %p71
      %p73 = scmp.ne.s32.totalorder %s65, %s68
      %p74 = scmp.eq.s32.totalorder %s8, 0
      %p75 = por %p73, %p74
      %p76 = scmp.ne.s32.totalorder %s65, %s68
      %p77 = scmp.eq.s32.totalorder %s13, 1
      %p78 = por %p76, %p77
      %p79 = scmp.ne.s32.totalorder %s68, %s69
      %p80 = scmp.eq.s32.totalorder %s13, 0
      %p81 = por %p79, %p80
      %p82 = scmp.ne.s32.totalorder %s68, %s69
      %p83 = scmp.eq.s32.totalorder %s14, 1
      %p84 = por %p82, %p83
      %p86 = scmp.ne.s32.totalorder %s69, %s85
      %p87 = scmp.eq.s32.totalorder %s14, 0
      %p88 = por %p86, %p87
      %p89 = scmp.le.s32.totalorder 1, %s8
      %p90 = scmp.lt.s32.totalorder %s8, 3
      %p91 = pnand %p89, %p90
      %p92 = pneg %p91
      // Predicated region
      $region9: #{closed_call.38} parent=5 // pred_check
        _
      $region10: #{closed_call.38} parent=5 // pred_check_branch
        %94 = sbr.rel (%p91) target = $region12
      $region11: #{closed_call.38} parent=5 // pred_region
        %s95 = ssub.s32 %s8, 1
        // Predicated region
        $region13: #{closed_call.38} parent=11 // pred_check
          %p96 = pneg %p29
        $region14: #{closed_call.38} parent=11 // pred_check_branch
          %98 = sbr.rel (%p96) target = $region16
        $region15: #{closed_call.38} parent=11 // pred_region
          _
        $region16: #{closed_call.38} parent=11 // pred_fallthru
          _
      $region12: #{closed_call.38} parent=5 // pred_fallthru
        _
      %p99 = scmp.lt.s32.totalorder %s8, 2
      // Predicated region
      $region17: #{closed_call.38} parent=5 // pred_check
        %p100 = pneg %p99
      $region18: #{closed_call.38} parent=5 // pred_check_branch
        %102 = sbr.rel (%p100) target = $region20
      $region19: #{closed_call.38} parent=5 // pred_region
        // Predicated region
        $region21: #{closed_call.38} parent=19 // pred_check
          %p103 = pneg %p49
        $region22: #{closed_call.38} parent=19 // pred_check_branch
          %105 = sbr.rel (%p103) target = $region24
        $region23: #{closed_call.38} parent=19 // pred_region
          %s106 = sand.u32 %s39, 1
          %s107 = sand.u32 %s39, 1
          %s108 = smul.addr %s107, 256
          %s109 = scalar_lea.vmem [#allocation2], %s108
          %s110 = smul.addr %s8, 8
          %s111 = scalar_lea.vmem %s1, %s110
          // Predicated region
          $region25: #{closed_call.38} parent=23 // pred_check
            _
          $region26: #{closed_call.38} parent=23 // pred_check_branch
            %113 = sbr.rel (0) target = $region28
          $region27: #{closed_call.38} parent=23 // pred_region
            // Predicated region
            $region29: #{closed_call.38} parent=27 // pred_check
              _
            $region30: #{closed_call.38} parent=27 // pred_check_branch
              %115 = sbr.rel (0) target = $region32
            $region31: #{closed_call.38} parent=27 // pred_region
              // Predicated region
              $region44: #{closed_call.38} parent=31 // pred_check
                _
              $region45: #{closed_call.38} parent=31 // pred_check_branch
                %192 = sbr.rel (0) target = $region47
              $region46: #{closed_call.38} parent=31 // pred_region
                loop: start=0, step=1, limit=1
                $region48: #{closed_call.38} parent=46 // loop_pre_header
                  _
                $region49: #{closed_call.38} parent=46 // loop_header
                  %s194 = sphi 0, %s198
                  %p195 = scmp.ge.s32.totalorder %s194, 1
                  %s199 = sphi %s111, %s111
                  %s200 = sphi %s109, %s109
                $region50: #{closed_call.38} parent=46 // loop_header_branch
                  %197 = sbr.rel (%p195) target = $region54
                $region51: #{closed_call.38} parent=46 // loop_body
                  %v201 = vld [vmem:[%s199] sm:$0xff]
                  %202 = vst [vmem:[%s200] sm:$0xff] %v201
                  %v203 = vld [vmem:[%s199 + $0x10] sm:$0xff]
                  %204 = vst [vmem:[%s200 + $0x8] sm:$0xff] %v203
                  %v205 = vld [vmem:[%s199 + $0x20] sm:$0xff]
                  %206 = vst [vmem:[%s200 + $0x10] sm:$0xff] %v205
                  %v207 = vld [vmem:[%s199 + $0x30] sm:$0xff]
                  %208 = vst [vmem:[%s200 + $0x18] sm:$0xff] %v207
                  %v209 = vld [vmem:[%s199 + $0x40] sm:$0xff]
                  %210 = vst [vmem:[%s200 + $0x20] sm:$0xff] %v209
                  %v211 = vld [vmem:[%s199 + $0x50] sm:$0xff]
                  %212 = vst [vmem:[%s200 + $0x28] sm:$0xff] %v211
                  %v213 = vld [vmem:[%s199 + $0x60] sm:$0xff]
                  %214 = vst [vmem:[%s200 + $0x30] sm:$0xff] %v213
                  %v215 = vld [vmem:[%s199 + $0x70] sm:$0xff]
                  %216 = vst [vmem:[%s200 + $0x38] sm:$0xff] %v215
                  %v217 = vld [vmem:[%s199 + $0x80] sm:$0xff]
                  %218 = vst [vmem:[%s200 + $0x40] sm:$0xff] %v217
                  %v219 = vld [vmem:[%s199 + $0x90] sm:$0xff]
                  %220 = vst [vmem:[%s200 + $0x48] sm:$0xff] %v219
                  %v221 = vld [vmem:[%s199 + $0xa0] sm:$0xff]
                  %222 = vst [vmem:[%s200 + $0x50] sm:$0xff] %v221
                  %v223 = vld [vmem:[%s199 + $0xb0] sm:$0xff]
                  %224 = vst [vmem:[%s200 + $0x58] sm:$0xff] %v223
                  %v225 = vld [vmem:[%s199 + $0xc0] sm:$0xff]
                  %226 = vst [vmem:[%s200 + $0x60] sm:$0xff] %v225
                  %v227 = vld [vmem:[%s199 + $0xd0] sm:$0xff]
                  %228 = vst [vmem:[%s200 + $0x68] sm:$0xff] %v227
                  %v229 = vld [vmem:[%s199 + $0xe0] sm:$0xff]
                  %230 = vst [vmem:[%s200 + $0x70] sm:$0xff] %v229
                  %v231 = vld [vmem:[%s199 + $0xf0] sm:$0xff]
                  %232 = vst [vmem:[%s200 + $0x78] sm:$0xff] %v231
                  %v233 = vld [vmem:[%s199 + $0x100] sm:$0xff]
                  %234 = vst [vmem:[%s200 + $0x80] sm:$0xff] %v233
                  %v235 = vld [vmem:[%s199 + $0x110] sm:$0xff]
                  %236 = vst [vmem:[%s200 + $0x88] sm:$0xff] %v235
                  %v237 = vld [vmem:[%s199 + $0x120] sm:$0xff]
                  %238 = vst [vmem:[%s200 + $0x90] sm:$0xff] %v237
                  %v239 = vld [vmem:[%s199 + $0x130] sm:$0xff]
                  %240 = vst [vmem:[%s200 + $0x98] sm:$0xff] %v239
                  %v241 = vld [vmem:[%s199 + $0x140] sm:$0xff]
                  %242 = vst [vmem:[%s200 + $0xa0] sm:$0xff] %v241
                  %v243 = vld [vmem:[%s199 + $0x150] sm:$0xff]
                  %244 = vst [vmem:[%s200 + $0xa8] sm:$0xff] %v243
                  %v245 = vld [vmem:[%s199 + $0x160] sm:$0xff]
                  %246 = vst [vmem:[%s200 + $0xb0] sm:$0xff] %v245
                  %v247 = vld [vmem:[%s199 + $0x170] sm:$0xff]
                  %248 = vst [vmem:[%s200 + $0xb8] sm:$0xff] %v247
                  %v249 = vld [vmem:[%s199 + $0x180] sm:$0xff]
                  %250 = vst [vmem:[%s200 + $0xc0] sm:$0xff] %v249
                  %v251 = vld [vmem:[%s199 + $0x190] sm:$0xff]
                  %252 = vst [vmem:[%s200 + $0xc8] sm:$0xff] %v251
                  %v253 = vld [vmem:[%s199 + $0x1a0] sm:$0xff]
                  %254 = vst [vmem:[%s200 + $0xd0] sm:$0xff] %v253
                  %v255 = vld [vmem:[%s199 + $0x1b0] sm:$0xff]
                  %256 = vst [vmem:[%s200 + $0xd8] sm:$0xff] %v255
                  %v257 = vld [vmem:[%s199 + $0x1c0] sm:$0xff]
                  %258 = vst [vmem:[%s200 + $0xe0] sm:$0xff] %v257
                  %v259 = vld [vmem:[%s199 + $0x1d0] sm:$0xff]
                  %260 = vst [vmem:[%s200 + $0xe8] sm:$0xff] %v259
                  %v261 = vld [vmem:[%s199 + $0x1e0] sm:$0xff]
                  %262 = vst [vmem:[%s200 + $0xf0] sm:$0xff] %v261
                  %v263 = vld [vmem:[%s199 + $0x1f0] sm:$0xff]
                  %264 = vst [vmem:[%s200 + $0xf8] sm:$0xff] %v263
                $region52: #{closed_call.38} parent=46 // loop_footer
                  %s198 = sadd.s32 1, %s194
                $region53: #{closed_call.38} parent=46 // loop_footer_branch
                  %193 = sbr.rel target = $region49
                $region54: #{closed_call.38} parent=46 // loop_exit
                  _
              $region47: #{closed_call.38} parent=31 // pred_fallthru
                _
              // Predicated region
              $region55: #{closed_call.38} parent=31 // pred_check
                _
              $region56: #{closed_call.38} parent=31 // pred_check_branch
                %266 = sbr.rel target = $region58
              $region57: #{closed_call.38} parent=31 // pred_region
                _
              $region58: #{closed_call.38} parent=31 // pred_fallthru
                _
            $region32: #{closed_call.38} parent=27 // pred_fallthru
              _
            // Predicated region
            $region33: #{closed_call.38} parent=27 // pred_check
              _
            $region34: #{closed_call.38} parent=27 // pred_check_branch
              %117 = sbr.rel target = $region36
            $region35: #{closed_call.38} parent=27 // pred_region
              loop: start=0, step=1, limit=1
              $region37: #{closed_call.38} parent=35 // loop_pre_header
                _
              $region38: #{closed_call.38} parent=35 // loop_header
                %s120 = sphi 0, %s124
                %p121 = scmp.ge.s32.totalorder %s120, 1
                %s125 = sphi %s111, %s111
                %s126 = sphi %s109, %s109
              $region39: #{closed_call.38} parent=35 // loop_header_branch
                %123 = sbr.rel (%p121) target = $region43
              $region40: #{closed_call.38} parent=35 // loop_body
                %v127 = vld [vmem:[%s125] sm:$0xff]
                %128 = vst [vmem:[%s126] sm:$0xff] %v127
                %v129 = vld [vmem:[%s125 + $0x10] sm:$0xff]
                %130 = vst [vmem:[%s126 + $0x8] sm:$0xff] %v129
                %v131 = vld [vmem:[%s125 + $0x20] sm:$0xff]
                %132 = vst [vmem:[%s126 + $0x10] sm:$0xff] %v131
                %v133 = vld [vmem:[%s125 + $0x30] sm:$0xff]
                %134 = vst [vmem:[%s126 + $0x18] sm:$0xff] %v133
                %v135 = vld [vmem:[%s125 + $0x40] sm:$0xff]
                %136 = vst [vmem:[%s126 + $0x20] sm:$0xff] %v135
                %v137 = vld [vmem:[%s125 + $0x50] sm:$0xff]
                %138 = vst [vmem:[%s126 + $0x28] sm:$0xff] %v137
                %v139 = vld [vmem:[%s125 + $0x60] sm:$0xff]
                %140 = vst [vmem:[%s126 + $0x30] sm:$0xff] %v139
                %v141 = vld [vmem:[%s125 + $0x70] sm:$0xff]
                %142 = vst [vmem:[%s126 + $0x38] sm:$0xff] %v141
                %v143 = vld [vmem:[%s125 + $0x80] sm:$0xff]
                %144 = vst [vmem:[%s126 + $0x40] sm:$0xff] %v143
                %v145 = vld [vmem:[%s125 + $0x90] sm:$0xff]
                %146 = vst [vmem:[%s126 + $0x48] sm:$0xff] %v145
                %v147 = vld [vmem:[%s125 + $0xa0] sm:$0xff]
                %148 = vst [vmem:[%s126 + $0x50] sm:$0xff] %v147
                %v149 = vld [vmem:[%s125 + $0xb0] sm:$0xff]
                %150 = vst [vmem:[%s126 + $0x58] sm:$0xff] %v149
                %v151 = vld [vmem:[%s125 + $0xc0] sm:$0xff]
                %152 = vst [vmem:[%s126 + $0x60] sm:$0xff] %v151
                %v153 = vld [vmem:[%s125 + $0xd0] sm:$0xff]
                %154 = vst [vmem:[%s126 + $0x68] sm:$0xff] %v153
                %v155 = vld [vmem:[%s125 + $0xe0] sm:$0xff]
                %156 = vst [vmem:[%s126 + $0x70] sm:$0xff] %v155
                %v157 = vld [vmem:[%s125 + $0xf0] sm:$0xff]
                %158 = vst [vmem:[%s126 + $0x78] sm:$0xff] %v157
                %v159 = vld [vmem:[%s125 + $0x100] sm:$0xff]
                %160 = vst [vmem:[%s126 + $0x80] sm:$0xff] %v159
                %v161 = vld [vmem:[%s125 + $0x110] sm:$0xff]
                %162 = vst [vmem:[%s126 + $0x88] sm:$0xff] %v161
                %v163 = vld [vmem:[%s125 + $0x120] sm:$0xff]
                %164 = vst [vmem:[%s126 + $0x90] sm:$0xff] %v163
                %v165 = vld [vmem:[%s125 + $0x130] sm:$0xff]
                %166 = vst [vmem:[%s126 + $0x98] sm:$0xff] %v165
                %v167 = vld [vmem:[%s125 + $0x140] sm:$0xff]
                %168 = vst [vmem:[%s126 + $0xa0] sm:$0xff] %v167
                %v169 = vld [vmem:[%s125 + $0x150] sm:$0xff]
                %170 = vst [vmem:[%s126 + $0xa8] sm:$0xff] %v169
                %v171 = vld [vmem:[%s125 + $0x160] sm:$0xff]
                %172 = vst [vmem:[%s126 + $0xb0] sm:$0xff] %v171
                %v173 = vld [vmem:[%s125 + $0x170] sm:$0xff]
                %174 = vst [vmem:[%s126 + $0xb8] sm:$0xff] %v173
                %v175 = vld [vmem:[%s125 + $0x180] sm:$0xff]
                %176 = vst [vmem:[%s126 + $0xc0] sm:$0xff] %v175
                %v177 = vld [vmem:[%s125 + $0x190] sm:$0xff]
                %178 = vst [vmem:[%s126 + $0xc8] sm:$0xff] %v177
                %v179 = vld [vmem:[%s125 + $0x1a0] sm:$0xff]
                %180 = vst [vmem:[%s126 + $0xd0] sm:$0xff] %v179
                %v181 = vld [vmem:[%s125 + $0x1b0] sm:$0xff]
                %182 = vst [vmem:[%s126 + $0xd8] sm:$0xff] %v181
                %v183 = vld [vmem:[%s125 + $0x1c0] sm:$0xff]
                %184 = vst [vmem:[%s126 + $0xe0] sm:$0xff] %v183
                %v185 = vld [vmem:[%s125 + $0x1d0] sm:$0xff]
                %186 = vst [vmem:[%s126 + $0xe8] sm:$0xff] %v185
                %v187 = vld [vmem:[%s125 + $0x1e0] sm:$0xff]
                %188 = vst [vmem:[%s126 + $0xf0] sm:$0xff] %v187
                %v189 = vld [vmem:[%s125 + $0x1f0] sm:$0xff]
                %190 = vst [vmem:[%s126 + $0xf8] sm:$0xff] %v189
              $region41: #{closed_call.38} parent=35 // loop_footer
                %s124 = sadd.s32 1, %s120
              $region42: #{closed_call.38} parent=35 // loop_footer_branch
                %119 = sbr.rel target = $region38
              $region43: #{closed_call.38} parent=35 // loop_exit
                _
            $region36: #{closed_call.38} parent=27 // pred_fallthru
              _
          $region28: #{closed_call.38} parent=23 // pred_fallthru
            _
          %267 = vnop
        $region24: #{closed_call.38} parent=19 // pred_fallthru
          _
      $region20: #{closed_call.38} parent=5 // pred_fallthru
        _
      %p268 = scmp.le.s32.totalorder 1, %s8
      %p269 = scmp.lt.s32.totalorder %s8, 3
      %p270 = pnand %p268, %p269
      %p271 = pneg %p270
      // Predicated region
      $region59: #{closed_call.38} parent=5 // pred_check
        _
      $region60: #{closed_call.38} parent=5 // pred_check_branch
        %273 = sbr.rel (%p270) target = $region62
      $region61: #{closed_call.38} parent=5 // pred_region
        %s274 = ssub.s32 %s8, 1
        %s275 = sand.u32 %s42, 1
        %s276 = sand.u32 %s42, 1
        %s277 = smul.addr %s276, 256
        %s278 = scalar_lea.vmem [#allocation2], %s277
        // Predicated region
        $region63: #{closed_call.38} parent=61 // pred_check
          %p279 = pneg %p55
        $region64: #{closed_call.38} parent=61 // pred_check_branch
          %281 = sbr.rel (%p279) target = $region66
        $region65: #{closed_call.38} parent=61 // pred_region
          _
        $region66: #{closed_call.38} parent=61 // pred_fallthru
          _
        %p282 = pneg %p29
        %p283 = pneg %p26
        %s284 = sand.u32 %s42, 1
        %s285 = sand.u32 %s42, 1
        %s286 = smul.addr %s285, 256
        %s287 = scalar_lea.vmem [#allocation2], %s286
        %p288 = pneg %p55
        %p289 = pneg %p52
        %p290 = pneg %p81
        %p291 = pneg %p78
        %p292 = scmp.lt.s32.totalorder %s13, 1
        %s293 = scalar_select %p292, %s13, 1
        %s294 = smul.addr %s293, 2
        %s295 = scalar_lea.vmem %s2, %s294
        %p296 = scmp.lt.s32.totalorder %s13, 1
        %s297 = scalar_select %p296, %s13, 1
        %s298 = smul.addr %s297, 2
        %s299 = scalar_lea.vmem %s2, %s298
        %v300 = vld [vmem:[%s0] sm:$0xf]
        %v301 = vld [vmem:[%s278] sm:$0xff]
        %v302 = vld [vmem:[%s278 + $0x8] sm:$0xff]
        %v303 = vld [vmem:[%s278 + $0x10] sm:$0xff]
        %v304 = vld [vmem:[%s278 + $0x18] sm:$0xff]
        %v305 = vld [vmem:[%s278 + $0x20] sm:$0xff]
        %v306 = vld [vmem:[%s278 + $0x28] sm:$0xff]
        %v307 = vld [vmem:[%s278 + $0x30] sm:$0xff]
        %v308 = vld [vmem:[%s278 + $0x38] sm:$0xff]
        %v309 = vld [vmem:[%s278 + $0x40] sm:$0xff]
        %v310 = vld [vmem:[%s278 + $0x48] sm:$0xff]
        %v311 = vld [vmem:[%s278 + $0x50] sm:$0xff]
        %v312 = vld [vmem:[%s278 + $0x58] sm:$0xff]
        %v313 = vld [vmem:[%s278 + $0x60] sm:$0xff]
        %v314 = vld [vmem:[%s278 + $0x68] sm:$0xff]
        %v315 = vld [vmem:[%s278 + $0x70] sm:$0xff]
        %v316 = vld [vmem:[%s278 + $0x78] sm:$0xff]
        %v317 = vld [vmem:[%s278 + $0x80] sm:$0xff]
        %v318 = vld [vmem:[%s278 + $0x88] sm:$0xff]
        %v319 = vld [vmem:[%s278 + $0x90] sm:$0xff]
        %v320 = vld [vmem:[%s278 + $0x98] sm:$0xff]
        %v321 = vld [vmem:[%s278 + $0xa0] sm:$0xff]
        %v322 = vld [vmem:[%s278 + $0xa8] sm:$0xff]
        %v323 = vld [vmem:[%s278 + $0xb0] sm:$0xff]
        %v324 = vld [vmem:[%s278 + $0xb8] sm:$0xff]
        %v325 = vld [vmem:[%s278 + $0xc0] sm:$0xff]
        %v326 = vld [vmem:[%s278 + $0xc8] sm:$0xff]
        %v327 = vld [vmem:[%s278 + $0xd0] sm:$0xff]
        %v328 = vld [vmem:[%s278 + $0xd8] sm:$0xff]
        %v329 = vld [vmem:[%s278 + $0xe0] sm:$0xff]
        %v330 = vld [vmem:[%s278 + $0xe8] sm:$0xff]
        %v331 = vld [vmem:[%s278 + $0xf0] sm:$0xff]
        %v332 = vld [vmem:[%s278 + $0xf8] sm:$0xff]
        %v335 = vunpack.c.l.s4 1983009808
        %v336 = vunpack.c.0.s8 %v335
        %v337 = vlaneseq
        %v338 = vshrl.u32 %v337, 7
        %v339 = vsub.s32 %v336, %v338
        %v340 = vrot.slane %v300, %v339
        %v341 = vcombine.high %v340, %v340
        %344 = vmatprep.subr.mxu0 0.0
        %345 = vmatpush1.msra.mxu0 %v301
        %346 = vmatprep.subr.mxu0 0.0
        %347 = vmatpush1.msra.mxu0 %v302
        %348 = vmatprep.subr.mxu0 0.0
        %349 = vmatpush1.msra.mxu0 %v303
        %350 = vmatprep.subr.mxu0 0.0
        %351 = vmatpush1.msra.mxu0 %v304
        %352 = vmatprep.subr.mxu0 0.0
        %353 = vmatpush1.msra.mxu0 %v305
        %354 = vmatprep.subr.mxu0 0.0
        %355 = vmatpush1.msra.mxu0 %v306
        %356 = vmatprep.subr.mxu0 0.0
        %357 = vmatpush1.msra.mxu0 %v307
        %358 = vmatprep.subr.mxu0 0.0
        %359 = vmatpush1.msra.mxu0 %v308
        %360 = vmatprep.subr.mxu0 0.0
        %361 = vmatpush1.msra.mxu0 %v309
        %362 = vmatprep.subr.mxu0 0.0
        %363 = vmatpush1.msra.mxu0 %v310
        %364 = vmatprep.subr.mxu0 0.0
        %365 = vmatpush1.msra.mxu0 %v311
        %366 = vmatprep.subr.mxu0 0.0
        %367 = vmatpush1.msra.mxu0 %v312
        %368 = vmatprep.subr.mxu0 0.0
        %369 = vmatpush1.msra.mxu0 %v313
        %370 = vmatprep.subr.mxu0 0.0
        %371 = vmatpush1.msra.mxu0 %v314
        %372 = vmatprep.subr.mxu0 0.0
        %373 = vmatpush1.msra.mxu0 %v315
        %374 = vmatprep.subr.mxu0 0.0
        %375 = vmatpush1.msra.mxu0 %v316
        %376 = vmatprep.subr.mxu0 0.0
        %377 = vmatpush1.msra.mxu0 %v317
        %378 = vmatprep.subr.mxu0 0.0
        %379 = vmatpush1.msra.mxu0 %v318
        %380 = vmatprep.subr.mxu0 0.0
        %381 = vmatpush1.msra.mxu0 %v319
        %382 = vmatprep.subr.mxu0 0.0
        %383 = vmatpush1.msra.mxu0 %v320
        %384 = vmatprep.subr.mxu0 0.0
        %385 = vmatpush1.msra.mxu0 %v321
        %386 = vmatprep.subr.mxu0 0.0
        %387 = vmatpush1.msra.mxu0 %v322
        %388 = vmatprep.subr.mxu0 0.0
        %389 = vmatpush1.msra.mxu0 %v323
        %390 = vmatprep.subr.mxu0 0.0
        %391 = vmatpush1.msra.mxu0 %v324
        %392 = vmatprep.subr.mxu0 0.0
        %393 = vmatpush1.msra.mxu0 %v325
        %394 = vmatprep.subr.mxu0 0.0
        %395 = vmatpush1.msra.mxu0 %v326
        %396 = vmatprep.subr.mxu0 0.0
        %397 = vmatpush1.msra.mxu0 %v327
        %398 = vmatprep.subr.mxu0 0.0
        %399 = vmatpush1.msra.mxu0 %v328
        %400 = vmatprep.subr.mxu0 0.0
        %401 = vmatpush1.msra.mxu0 %v329
        %402 = vmatprep.subr.mxu0 0.0
        %403 = vmatpush1.msra.mxu0 %v330
        %404 = vmatprep.subr.mxu0 0.0
        %405 = vmatpush1.msra.mxu0 %v331
        %406 = vmatprep.subr.mxu0 0.0
        %407 = vmatpush1.msra.mxu0 %v332
        %408 = vmatprep.mubr.f32.mxu0 %v341
        %409 = vmatmul.mubr.f32.gmra.mrb[0].mxu0 %v340
        %v410 = vpop.f32.mrb[0].mxu0
        %v411 = vadd.f32 0.0, %v410
        %v412 = vpop.f32.mrb[0].mxu0
        %413 = vdwg.mxu0
        %414 = vst [vmem:[%s299] sm:$0x3] %v411
        %p415 = scmp.lt.s32.totalorder %s13, 1
        %s416 = scalar_select %p415, %s13, 1
        %s417 = smul.addr %s416, 2
        %s418 = scalar_lea.vmem %s2, %s417
        // Predicated region
        $region67: #{closed_call.38} parent=61 // pred_check
          %p419 = pneg %p78
        $region68: #{closed_call.38} parent=61 // pred_check_branch
          %421 = sbr.rel (%p419) target = $region70
        $region69: #{closed_call.38} parent=61 // pred_region
          _
        $region70: #{closed_call.38} parent=61 // pred_fallthru
          _
      $region62: #{closed_call.38} parent=5 // pred_fallthru
        _
      %p422 = scmp.le.s32.totalorder 2, %s8
      // Predicated region
      $region71: #{closed_call.38} parent=5 // pred_check
        %p423 = pneg %p422
      $region72: #{closed_call.38} parent=5 // pred_check_branch
        %425 = sbr.rel (%p423) target = $region74
      $region73: #{closed_call.38} parent=5 // pred_region
        %s426 = ssub.s32 %s8, 2
        // Predicated region
        $region75: #{closed_call.38} parent=73 // pred_check
          %p427 = pneg %p84
        $region76: #{closed_call.38} parent=73 // pred_check_branch
          %429 = sbr.rel (%p427) target = $region78
        $region77: #{closed_call.38} parent=73 // pred_region
          %p430 = scmp.lt.s32.totalorder %s14, 1
          %s431 = scalar_select %p430, %s14, 1
          %s432 = smul.addr %s431, 2
          %s433 = scalar_lea.vmem %s2, %s432
        $region78: #{closed_call.38} parent=73 // pred_fallthru
          _
      $region74: #{closed_call.38} parent=5 // pred_fallthru
        _
    $region6: #{closed_call.38} parent=1 // loop_footer
      %s12 = sadd.s32 1, %s8
    $region7: #{closed_call.38} parent=1 // loop_footer_branch
      %7 = sbr.rel target = $region3
    $region8: #{closed_call.38} parent=1 // loop_exit
      _

// kernel: dalle_forward.7
$region0: #{dalle_forward.7}
  #allocation0 [shape = 'u32[]', space=smem, size = 0x4, offset = 0x4, fixed_abs, tag = 'smem constant byte address 0x4 - core index']
  #allocation1 [shape = 'u32[144,128]{1,0:T(1,128)}', space=vmem, size = 0x12000, scoped, tag = 'internal scratch']
  %s0 = inlined_call_operand.vmem [shape: f32[32,256], index: 0, kind: input, shape index: {}]
  %s1 = inlined_call_operand.vmem [shape: f32[256,128], index: 1, kind: input, shape index: {}]
  %s2 = inlined_call_operand.vmem [shape: f32[1,128], index: 2, kind: input, shape index: {}]
  %s3 = inlined_call_operand.vmem [shape: f32[32,128], index: 3, kind: output, shape index: {}]
  %s4 = sld [smem:[#allocation0]]
  $region22: #{dalle_forward.7} parent=0
    _
  %s6 = ssub.s32 1, %s4
  %s7 = scalar_select 0, %s6, %s4
  // Predicated region
  $region2: #{dalle_forward.7} parent=0 // pred_check
    _
  $region3: #{dalle_forward.7} parent=0 // pred_check_branch
    %9 = sbr.rel (0) target = $region5
  $region4: #{dalle_forward.7} parent=0 // pred_region
    _
  $region5: #{dalle_forward.7} parent=0 // pred_fallthru
    _
  // Predicated region
  $region6: #{dalle_forward.7} parent=0 // pred_check
    _
  $region7: #{dalle_forward.7} parent=0 // pred_check_branch
    %11 = sbr.rel (0) target = $region9
  $region8: #{dalle_forward.7} parent=0 // pred_region
    _
  $region9: #{dalle_forward.7} parent=0 // pred_fallthru
    _
  // Predicated region
  $region10: #{dalle_forward.7} parent=0 // pred_check
    _
  $region11: #{dalle_forward.7} parent=0 // pred_check_branch
    %13 = sbr.rel (0) target = $region13
  $region12: #{dalle_forward.7} parent=0 // pred_region
    _
  $region13: #{dalle_forward.7} parent=0 // pred_fallthru
    _
  %v14 = vld [vmem:[%s0] sm:$0xff]
  %v15 = vld [vmem:[%s0 + $0x8] sm:$0xff]
  %v16 = vld [vmem:[%s0 + $0x10] sm:$0xff]
  %v17 = vld [vmem:[%s0 + $0x18] sm:$0xff]
  %v18 = vld [vmem:[%s0 + $0x20] sm:$0xff]
  %v19 = vld [vmem:[%s0 + $0x28] sm:$0xff]
  %v20 = vld [vmem:[%s0 + $0x30] sm:$0xff]
  %v21 = vld [vmem:[%s0 + $0x38] sm:$0xff]
  %v22 = vld [vmem:[%s1] sm:$0xff]
  %v23 = vld [vmem:[%s1 + $0x8] sm:$0xff]
  %v24 = vld [vmem:[%s1 + $0x10] sm:$0xff]
  %v25 = vld [vmem:[%s1 + $0x18] sm:$0xff]
  %v26 = vld [vmem:[%s1 + $0x20] sm:$0xff]
  %v27 = vld [vmem:[%s1 + $0x28] sm:$0xff]
  %v28 = vld [vmem:[%s1 + $0x30] sm:$0xff]
  %v29 = vld [vmem:[%s1 + $0x38] sm:$0xff]
  %v30 = vld [vmem:[%s1 + $0x40] sm:$0xff]
  %v31 = vld [vmem:[%s1 + $0x48] sm:$0xff]
  %v32 = vld [vmem:[%s1 + $0x50] sm:$0xff]
  %v33 = vld [vmem:[%s1 + $0x58] sm:$0xff]
  %v34 = vld [vmem:[%s1 + $0x60] sm:$0xff]
  %v35 = vld [vmem:[%s1 + $0x68] sm:$0xff]
  %v36 = vld [vmem:[%s1 + $0x70] sm:$0xff]
  %v37 = vld [vmem:[%s1 + $0x78] sm:$0xff]
  %v38 = vld [vmem:[%s1 + $0x80] sm:$0xff]
  %v39 = vld [vmem:[%s1 + $0x88] sm:$0xff]
  %v40 = vld [vmem:[%s1 + $0x90] sm:$0xff]
  %v41 = vld [vmem:[%s1 + $0x98] sm:$0xff]
  %v42 = vld [vmem:[%s1 + $0xa0] sm:$0xff]
  %v43 = vld [vmem:[%s1 + $0xa8] sm:$0xff]
  %v44 = vld [vmem:[%s1 + $0xb0] sm:$0xff]
  %v45 = vld [vmem:[%s1 + $0xb8] sm:$0xff]
  %v46 = vld [vmem:[%s1 + $0xc0] sm:$0xff]
  %v47 = vld [vmem:[%s1 + $0xc8] sm:$0xff]
  %v48 = vld [vmem:[%s1 + $0xd0] sm:$0xff]
  %v49 = vld [vmem:[%s1 + $0xd8] sm:$0xff]
  %v50 = vld [vmem:[%s1 + $0xe0] sm:$0xff]
  %v51 = vld [vmem:[%s1 + $0xe8] sm:$0xff]
  %v52 = vld [vmem:[%s1 + $0xf0] sm:$0xff]
  %v53 = vld [vmem:[%s1 + $0xf8] sm:$0xff]
  %v54 = vld [vmem:[%s2] sm:$0x1]
  %v56 = vlaneseq
  %v57 = vshrl.u32 %v56, 7
  %v58 = vsub.s32 0, %v57
  %v59 = vrot.slane %v54, %v58
  %61 = vmatprep.subr.mxu0 0.0
  %62 = vmatpush1.msra.mxu0 %v22
  %63 = vmatprep.subr.mxu0 0.0
  %64 = vmatpush1.msra.mxu0 %v23
  %65 = vmatprep.subr.mxu0 0.0
  %66 = vmatpush1.msra.mxu0 %v24
  %67 = vmatprep.subr.mxu0 0.0
  %68 = vmatpush1.msra.mxu0 %v25
  %69 = vmatprep.subr.mxu0 0.0
  %70 = vmatpush1.msra.mxu0 %v26
  %71 = vmatprep.subr.mxu0 0.0
  %72 = vmatpush1.msra.mxu0 %v27
  %73 = vmatprep.subr.mxu0 0.0
  %74 = vmatpush1.msra.mxu0 %v28
  %75 = vmatprep.subr.mxu0 0.0
  %76 = vmatpush1.msra.mxu0 %v29
  %77 = vmatprep.subr.mxu0 0.0
  %78 = vmatpush1.msra.mxu0 %v30
  %79 = vmatprep.subr.mxu0 0.0
  %80 = vmatpush1.msra.mxu0 %v31
  %81 = vmatprep.subr.mxu0 0.0
  %82 = vmatpush1.msra.mxu0 %v32
  %83 = vmatprep.subr.mxu0 0.0
  %84 = vmatpush1.msra.mxu0 %v33
  %85 = vmatprep.subr.mxu0 0.0
  %86 = vmatpush1.msra.mxu0 %v34
  %87 = vmatprep.subr.mxu0 0.0
  %88 = vmatpush1.msra.mxu0 %v35
  %89 = vmatprep.subr.mxu0 0.0
  %90 = vmatpush1.msra.mxu0 %v36
  %91 = vmatprep.subr.mxu0 0.0
  %92 = vmatpush1.msra.mxu0 %v37
  %93 = vmatprep.subr.mxu0 0.0
  %94 = vmatpush1.msra.mxu0 %v38
  %95 = vmatprep.subr.mxu0 0.0
  %96 = vmatpush1.msra.mxu0 %v39
  %97 = vmatprep.subr.mxu0 0.0
  %98 = vmatpush1.msra.mxu0 %v40
  %99 = vmatprep.subr.mxu0 0.0
  %100 = vmatpush1.msra.mxu0 %v41
  %101 = vmatprep.subr.mxu0 0.0
  %102 = vmatpush1.msra.mxu0 %v42
  %103 = vmatprep.subr.mxu0 0.0
  %104 = vmatpush1.msra.mxu0 %v43
  %105 = vmatprep.subr.mxu0 0.0
  %106 = vmatpush1.msra.mxu0 %v44
  %107 = vmatprep.subr.mxu0 0.0
  %108 = vmatpush1.msra.mxu0 %v45
  %109 = vmatprep.subr.mxu0 0.0
  %110 = vmatpush1.msra.mxu0 %v46
  %111 = vmatprep.subr.mxu0 0.0
  %112 = vmatpush1.msra.mxu0 %v47
  %113 = vmatprep.subr.mxu0 0.0
  %114 = vmatpush1.msra.mxu0 %v48
  %115 = vmatprep.subr.mxu0 0.0
  %116 = vmatpush1.msra.mxu0 %v49
  %117 = vmatprep.subr.mxu0 0.0
  %118 = vmatpush1.msra.mxu0 %v50
  %119 = vmatprep.subr.mxu0 0.0
  %120 = vmatpush1.msra.mxu0 %v51
  %121 = vmatprep.subr.mxu0 0.0
  %122 = vmatpush1.msra.mxu0 %v52
  %123 = vmatprep.subr.mxu0 0.0
  %124 = vmatpush1.msra.mxu0 %v53
  %125 = vmatprep.mubr.f32.mxu0 %v15
  %126 = vmatmul.mubr.f32.gmra.mrb[0].mxu0 %v14
  %v127 = vpop.f32.mrb[0].mxu0
  %v128 = vadd.f32 %v59, %v127
  %v129 = vpop.f32.mrb[0].mxu0
  %130 = vmatprep.mubr.f32.mxu0 %v17
  %131 = vmatmul.mubr.f32.gmra.mrb[0].mxu0 %v16
  %v132 = vpop.f32.mrb[0].mxu0
  %v133 = vadd.f32 %v59, %v132
  %v134 = vpop.f32.mrb[0].mxu0
  %135 = vmatprep.mubr.f32.mxu0 %v19
  %136 = vmatmul.mubr.f32.gmra.mrb[0].mxu0 %v18
  %v137 = vpop.f32.mrb[0].mxu0
  %v138 = vadd.f32 %v59, %v137
  %v139 = vpop.f32.mrb[0].mxu0
  %140 = vmatprep.mubr.f32.mxu0 %v21
  %141 = vmatmul.mubr.f32.gmra.mrb[0].mxu0 %v20
  %v142 = vpop.f32.mrb[0].mxu0
  %v143 = vadd.f32 %v59, %v142
  %v144 = vpop.f32.mrb[0].mxu0
  %145 = vdwg.mxu0
  %v146 = vtanh.pop %v128
  %v147 = vtanh.pop %v133
  %v148 = vtanh.pop %v138
  %v149 = vtanh.pop %v143
  %150 = vst [vmem:[%s3] sm:$0xff] %v146
  %151 = vst [vmem:[%s3 + $0x8] sm:$0xff] %v147
  %152 = vst [vmem:[%s3 + $0x10] sm:$0xff] %v148
  %153 = vst [vmem:[%s3 + $0x18] sm:$0xff] %v149
  // Predicated region
  $region14: #{dalle_forward.7} parent=0 // pred_check
    _
  $region15: #{dalle_forward.7} parent=0 // pred_check_branch
    %155 = sbr.rel (0) target = $region17
  $region16: #{dalle_forward.7} parent=0 // pred_region
    _
  $region17: #{dalle_forward.7} parent=0 // pred_fallthru
    _
  // Predicated region
  $region18: #{dalle_forward.7} parent=0 // pred_check
    _
  $region19: #{dalle_forward.7} parent=0 // pred_check_branch
    %157 = sbr.rel (0) target = $region21
  $region20: #{dalle_forward.7} parent=0 // pred_region
    _
  $region21: #{dalle_forward.7} parent=0 // pred_fallthru
    _

// kernel: closed_call.37
$region0: #{closed_call.37}
  #allocation0 [shape = 'u32[]', space=smem, size = 0x4, offset = 0x4, fixed_abs, tag = 'smem constant byte address 0x4 - core index']
  #allocation1 [shape = 'u32[144,128]{1,0:T(1,128)}', space=vmem, size = 0x12000, scoped, tag = 'internal scratch']
  #allocation2 [shape = 'f32[4,16,128]{2,1,0:T(8,128)}', space=vmem, size = 0x8000, scoped, tag = 'scratch operand']
  #allocation3 [shape = 'f32[4,16,128]{2,1,0:T(8,128)}', space=vmem, size = 0x8000, scoped, tag = 'scratch operand']
  #allocation4 [shape = 'f32[4,1,128]{2,1,0:T(1,128)}', space=vmem, size = 0x800, scoped, tag = 'scratch operand']
  #allocation5 [shape = 'f32[4,1,128]{2,1,0:T(1,128)}', space=vmem, size = 0x800, scoped, tag = 'scratch operand']
  #allocation6 [shape = 's32[2]{0}', space=sflag, size = 0x8, scoped, tag = 'scratch operand']
  #allocation7 [shape = 's32[1]{0:T(128)S(6)}', space=smem, size = 0x200, scoped, tag = 'scoped memory for closed_call.37']
  #allocation10 [shape = 's32[]', space=sflag, size = 0x4, offset = 0, fixed_abs, tag = 'sflag constant byte address 0x0 - dummy sync flag']
  #allocation11 [shape = 's32[]', space=sflag, size = 0x4, offset = 0, fixed_abs, tag = 'sflag constant byte address 0x0 - dummy sync flag']
  #allocation12 [shape = 's32[]', space=sflag, size = 0x4, offset = 0, fixed_abs, tag = 'sflag constant byte address 0x0 - dummy sync flag']
  #allocation13 [shape = 's32[]', space=sflag, size = 0x4, offset = 0, fixed_abs, tag = 'sflag constant byte address 0x0 - dummy sync flag']
  %s0 = inlined_call_operand.<no memory space> [shape: s32[1], index: 0, kind: input, shape index: {}]
  %s1 = inlined_call_operand.vmem [shape: f32[2,256], index: 1, kind: input, shape index: {}]
  %s2 = inlined_call_operand.vmem [shape: f32[4,16,128], index: 2, kind: input, shape index: {}, may-alias: {2,12}]
  %s3 = inlined_call_operand.vmem [shape: f32[4,16,128], index: 3, kind: input, shape index: {}, may-alias: {3,13}]
  %s4 = inlined_call_operand.vmem [shape: f32[4,8,128], index: 4, kind: input, shape index: {}]
  %s5 = inlined_call_operand.vmem [shape: f32[4,8,128], index: 5, kind: input, shape index: {}]
  %s6 = inlined_call_operand.vmem [shape: f32[4,8], index: 6, kind: input, shape index: {}]
  %s7 = inlined_call_operand.vmem [shape: f32[256,768], index: 7, kind: input, shape index: {}]
  %s8 = inlined_call_operand.vmem [shape: f32[256,256], index: 8, kind: input, shape index: {}]
  %s9 = inlined_call_operand.vmem [shape: f32[256,256], index: 9, kind: input, shape index: {}]
  %s10 = inlined_call_operand.hbm [shape: f32[256,256], index: 10, kind: input, shape index: {}]
  %s11 = inlined_call_operand.vmem [shape: f32[2,256], index: 11, kind: output, shape index: {0}]
  %s12 = inlined_call_operand.vmem [shape: f32[4,16,128], index: 12, kind: output, shape index: {1}, may-alias: {2,12}]
  %s13 = inlined_call_operand.vmem [shape: f32[4,16,128], index: 13, kind: output, shape index: {2}, may-alias: {3,13}]
  %14 = xla_tuple %s11, %s12, %s13
  %s15 = sld [smem:[#allocation0]]
  $region178: #{closed_call.37} parent=0
    _
  %s17 = ssub.s32 1, %s15
  %s18 = scalar_select 0, %s17, %s15
  %19 = sst [smem:[#allocation7]] %s0
  $region1: #{closed_call.37} parent=0
    #allocation8 [shape = 'u8[262144]{0}', space=vmem, size = 0x40000, scoped, tag = 'input window, operand 10, single buffered']
    #allocation9 [shape = 's32[1]{0}', space=sflag, size = 0x4, scoped, tag = 'scoped memory for closed_call.37']
    %20 = vsyncpa [#allocation9], 0
    // Predicated region
    $region2: #{closed_call.37} parent=1 // pred_check
      _
    $region3: #{closed_call.37} parent=1 // pred_check_branch
      %22 = sbr.rel (0) target = $region5
    $region4: #{closed_call.37} parent=1 // pred_region
      _
    $region5: #{closed_call.37} parent=1 // pred_fallthru
      _
    // Predicated region
    $region6: #{closed_call.37} parent=1 // pred_check
      _
    $region7: #{closed_call.37} parent=1 // pred_check_branch
      %24 = sbr.rel (0) target = $region9
    $region8: #{closed_call.37} parent=1 // pred_region
      _
    $region9: #{closed_call.37} parent=1 // pred_fallthru
      _
    // Predicated region
    $region10: #{closed_call.37} parent=1 // pred_check
      _
    $region11: #{closed_call.37} parent=1 // pred_check_branch
      %26 = sbr.rel (0) target = $region13
    $region12: #{closed_call.37} parent=1 // pred_region
      _
    $region13: #{closed_call.37} parent=1 // pred_fallthru
      _
    // Predicated region
    $region14: #{closed_call.37} parent=1 // pred_check
      _
    $region15: #{closed_call.37} parent=1 // pred_check_branch
      %28 = sbr.rel (0) target = $region17
    $region16: #{closed_call.37} parent=1 // pred_region
      _
    $region17: #{closed_call.37} parent=1 // pred_fallthru
      _
    // Predicated region
    $region18: #{closed_call.37} parent=1 // pred_check
      _
    $region19: #{closed_call.37} parent=1 // pred_check_branch
      %30 = sbr.rel (0) target = $region21
    $region20: #{closed_call.37} parent=1 // pred_region
      _
    $region21: #{closed_call.37} parent=1 // pred_fallthru
      _
    // Predicated region
    $region22: #{closed_call.37} parent=1 // pred_check
      _
    $region23: #{closed_call.37} parent=1 // pred_check_branch
      %32 = sbr.rel (0) target = $region25
    $region24: #{closed_call.37} parent=1 // pred_region
      _
    $region25: #{closed_call.37} parent=1 // pred_fallthru
      _
    // Predicated region
    $region26: #{closed_call.37} parent=1 // pred_check
      _
    $region27: #{closed_call.37} parent=1 // pred_check_branch
      %34 = sbr.rel (0) target = $region29
    $region28: #{closed_call.37} parent=1 // pred_region
      _
    $region29: #{closed_call.37} parent=1 // pred_fallthru
      _
    // Predicated region
    $region30: #{closed_call.37} parent=1 // pred_check
      _
    $region31: #{closed_call.37} parent=1 // pred_check_branch
      %36 = sbr.rel (0) target = $region33
    $region32: #{closed_call.37} parent=1 // pred_region
      _
    $region33: #{closed_call.37} parent=1 // pred_fallthru
      _
    // Predicated region
    $region34: #{closed_call.37} parent=1 // pred_check
      _
    $region35: #{closed_call.37} parent=1 // pred_check_branch
      %38 = sbr.rel (0) target = $region37
    $region36: #{closed_call.37} parent=1 // pred_region
      %s40 = ssub.s32 8192, 8192
      %41 = vsyncadd [#allocation9], %s40
      %s42 = sshll.u32 [#allocation8], 4
      %s43 = int_to_ptr.vmem [resolvable:$true] %s42
      %48 = dma.hbm_to_vmem [thread:$0]  %s10, 8192, %s43, [#allocation9], 256, 256, 16
    $region37: #{closed_call.37} parent=1 // pred_fallthru
      _
    // Predicated region
    $region38: #{closed_call.37} parent=1 // pred_check
      _
    $region39: #{closed_call.37} parent=1 // pred_check_branch
      %50 = sbr.rel (0) target = $region41
    $region40: #{closed_call.37} parent=1 // pred_region
      %51 = dma.done [#allocation9], 8192
    $region41: #{closed_call.37} parent=1 // pred_fallthru
      _
    %s52 = sld [smem:[#allocation7]]
    %v53 = vld [vmem:[%s1] sm:$0xf]
    %p55 = scmp.lt.u32.totalorder 64, 8
    %p56 = pneg %p55
    // Predicated region
    $region42: #{closed_call.37} parent=1 // pred_check
      _
    $region43: #{closed_call.37} parent=1 // pred_check_branch
      %58 = sbr.rel (%p55) target = $region45
    $region44: #{closed_call.37} parent=1 // pred_region
      %s73 = sand.u32 64, 7
      %p74 = scmp.eq.s32.totalorder %s73, 0
      // Predicated region
      $region57: #{closed_call.37} parent=44 // pred_check
        %p75 = pneg %p74
      $region58: #{closed_call.37} parent=44 // pred_check_branch
        %77 = sbr.rel (%p75) target = $region60
      $region59: #{closed_call.37} parent=44 // pred_region
        loop: start=0, step=1, limit=1
        $region61: #{closed_call.37} parent=59 // loop_pre_header
          _
        $region62: #{closed_call.37} parent=59 // loop_header
          %s79 = sphi 0, %s83
          %p80 = scmp.ge.s32.totalorder %s79, 1
          %s84 = sphi %s2, %s2
          %s85 = sphi [#allocation2], [#allocation2]
        $region63: #{closed_call.37} parent=59 // loop_header_branch
          %82 = sbr.rel (%p80) target = $region67
        $region64: #{closed_call.37} parent=59 // loop_body
          %v86 = vld [vmem:[%s84] sm:$0xff]
          %87 = vst [vmem:[%s85] sm:$0xff] %v86
          %v88 = vld [vmem:[%s84 + $0x8] sm:$0xff]
          %89 = vst [vmem:[%s85 + $0x8] sm:$0xff] %v88
          %v90 = vld [vmem:[%s84 + $0x10] sm:$0xff]
          %91 = vst [vmem:[%s85 + $0x10] sm:$0xff] %v90
          %v92 = vld [vmem:[%s84 + $0x18] sm:$0xff]
          %93 = vst [vmem:[%s85 + $0x18] sm:$0xff] %v92
          %v94 = vld [vmem:[%s84 + $0x20] sm:$0xff]
          %95 = vst [vmem:[%s85 + $0x20] sm:$0xff] %v94
          %v96 = vld [vmem:[%s84 + $0x28] sm:$0xff]
          %97 = vst [vmem:[%s85 + $0x28] sm:$0xff] %v96
          %v98 = vld [vmem:[%s84 + $0x30] sm:$0xff]
          %99 = vst [vmem:[%s85 + $0x30] sm:$0xff] %v98
          %v100 = vld [vmem:[%s84 + $0x38] sm:$0xff]
          %101 = vst [vmem:[%s85 + $0x38] sm:$0xff] %v100
        $region65: #{closed_call.37} parent=59 // loop_footer
          %s83 = sadd.s32 1, %s79
        $region66: #{closed_call.37} parent=59 // loop_footer_branch
          %78 = sbr.rel target = $region62
        $region67: #{closed_call.37} parent=59 // loop_exit
          _
      $region60: #{closed_call.37} parent=44 // pred_fallthru
        _
      %p102 = pneg %p74
      // Predicated region
      $region68: #{closed_call.37} parent=44 // pred_check
        _
      $region69: #{closed_call.37} parent=44 // pred_check_branch
        %104 = sbr.rel (%p74) target = $region71
      $region70: #{closed_call.37} parent=44 // pred_region
        %s105 = sand.u32 64, 7
      $region71: #{closed_call.37} parent=44 // pred_fallthru
        _
    $region45: #{closed_call.37} parent=1 // pred_fallthru
      _
    // Predicated region
    $region46: #{closed_call.37} parent=1 // pred_check
      %p59 = pneg %p55
    $region47: #{closed_call.37} parent=1 // pred_check_branch
      %61 = sbr.rel (%p59) target = $region49
    $region48: #{closed_call.37} parent=1 // pred_region
      %s62 = sshllo.u32 0, 64
      loop: start=0, step=1, limit=1
      $region50: #{closed_call.37} parent=48 // loop_pre_header
        _
      $region51: #{closed_call.37} parent=48 // loop_header
        %s64 = sphi 0, %s68
        %p65 = scmp.ge.s32.totalorder %s64, 1
        %s69 = sphi %s2, %s2
        %s70 = sphi [#allocation2], [#allocation2]
      $region52: #{closed_call.37} parent=48 // loop_header_branch
        %67 = sbr.rel (%p65) target = $region56
      $region53: #{closed_call.37} parent=48 // loop_body
        %v71 = vld [vmem:[%s69] sm:%s62]
        %72 = vst [vmem:[%s70] sm:%s62] %v71
      $region54: #{closed_call.37} parent=48 // loop_footer
        %s68 = sadd.s32 1, %s64
      $region55: #{closed_call.37} parent=48 // loop_footer_branch
        %63 = sbr.rel target = $region51
      $region56: #{closed_call.37} parent=48 // loop_exit
        _
    $region49: #{closed_call.37} parent=1 // pred_fallthru
      _
    // Predicated region
    $region72: #{closed_call.37} parent=1 // pred_check
      _
    $region73: #{closed_call.37} parent=1 // pred_check_branch
      %108 = sbr.rel (0) target = $region75
    $region74: #{closed_call.37} parent=1 // pred_region
      %109 = vsyncadd [#allocation6], 1024
    $region75: #{closed_call.37} parent=1 // pred_fallthru
      _
    %s110 = scalar_lea.sflag [#allocation6], 1
    %p112 = scmp.lt.u32.totalorder 64, 8
    %p113 = pneg %p112
    // Predicated region
    $region76: #{closed_call.37} parent=1 // pred_check
      _
    $region77: #{closed_call.37} parent=1 // pred_check_branch
      %115 = sbr.rel (%p112) target = $region79
    $region78: #{closed_call.37} parent=1 // pred_region
      %s130 = sand.u32 64, 7
      %p131 = scmp.eq.s32.totalorder %s130, 0
      // Predicated region
      $region91: #{closed_call.37} parent=78 // pred_check
        %p132 = pneg %p131
      $region92: #{closed_call.37} parent=78 // pred_check_branch
        %134 = sbr.rel (%p132) target = $region94
      $region93: #{closed_call.37} parent=78 // pred_region
        loop: start=0, step=1, limit=1
        $region95: #{closed_call.37} parent=93 // loop_pre_header
          _
        $region96: #{closed_call.37} parent=93 // loop_header
          %s136 = sphi 0, %s140
          %p137 = scmp.ge.s32.totalorder %s136, 1
          %s141 = sphi %s3, %s3
          %s142 = sphi [#allocation3], [#allocation3]
        $region97: #{closed_call.37} parent=93 // loop_header_branch
          %139 = sbr.rel (%p137) target = $region101
        $region98: #{closed_call.37} parent=93 // loop_body
          %v143 = vld [vmem:[%s141] sm:$0xff]
          %144 = vst [vmem:[%s142] sm:$0xff] %v143
          %v145 = vld [vmem:[%s141 + $0x8] sm:$0xff]
          %146 = vst [vmem:[%s142 + $0x8] sm:$0xff] %v145
          %v147 = vld [vmem:[%s141 + $0x10] sm:$0xff]
          %148 = vst [vmem:[%s142 + $0x10] sm:$0xff] %v147
          %v149 = vld [vmem:[%s141 + $0x18] sm:$0xff]
          %150 = vst [vmem:[%s142 + $0x18] sm:$0xff] %v149
          %v151 = vld [vmem:[%s141 + $0x20] sm:$0xff]
          %152 = vst [vmem:[%s142 + $0x20] sm:$0xff] %v151
          %v153 = vld [vmem:[%s141 + $0x28] sm:$0xff]
          %154 = vst [vmem:[%s142 + $0x28] sm:$0xff] %v153
          %v155 = vld [vmem:[%s141 + $0x30] sm:$0xff]
          %156 = vst [vmem:[%s142 + $0x30] sm:$0xff] %v155
          %v157 = vld [vmem:[%s141 + $0x38] sm:$0xff]
          %158 = vst [vmem:[%s142 + $0x38] sm:$0xff] %v157
        $region99: #{closed_call.37} parent=93 // loop_footer
          %s140 = sadd.s32 1, %s136
        $region100: #{closed_call.37} parent=93 // loop_footer_branch
          %135 = sbr.rel target = $region96
        $region101: #{closed_call.37} parent=93 // loop_exit
          _
      $region94: #{closed_call.37} parent=78 // pred_fallthru
        _
      %p159 = pneg %p131
      // Predicated region
      $region102: #{closed_call.37} parent=78 // pred_check
        _
      $region103: #{closed_call.37} parent=78 // pred_check_branch
        %161 = sbr.rel (%p131) target = $region105
      $region104: #{closed_call.37} parent=78 // pred_region
        %s162 = sand.u32 64, 7
      $region105: #{closed_call.37} parent=78 // pred_fallthru
        _
    $region79: #{closed_call.37} parent=1 // pred_fallthru
      _
    // Predicated region
    $region80: #{closed_call.37} parent=1 // pred_check
      %p116 = pneg %p112
    $region81: #{closed_call.37} parent=1 // pred_check_branch
      %118 = sbr.rel (%p116) target = $region83
    $region82: #{closed_call.37} parent=1 // pred_region
      %s119 = sshllo.u32 0, 64
      loop: start=0, step=1, limit=1
      $region84: #{closed_call.37} parent=82 // loop_pre_header
        _
      $region85: #{closed_call.37} parent=82 // loop_header
        %s121 = sphi 0, %s125
        %p122 = scmp.ge.s32.totalorder %s121, 1
        %s126 = sphi %s3, %s3
        %s127 = sphi [#allocation3], [#allocation3]
      $region86: #{closed_call.37} parent=82 // loop_header_branch
        %124 = sbr.rel (%p122) target = $region90
      $region87: #{closed_call.37} parent=82 // loop_body
        %v128 = vld [vmem:[%s126] sm:%s119]
        %129 = vst [vmem:[%s127] sm:%s119] %v128
      $region88: #{closed_call.37} parent=82 // loop_footer
        %s125 = sadd.s32 1, %s121
      $region89: #{closed_call.37} parent=82 // loop_footer_branch
        %120 = sbr.rel target = $region85
      $region90: #{closed_call.37} parent=82 // loop_exit
        _
    $region83: #{closed_call.37} parent=1 // pred_fallthru
      _
    // Predicated region
    $region106: #{closed_call.37} parent=1 // pred_check
      _
    $region107: #{closed_call.37} parent=1 // pred_check_branch
      %165 = sbr.rel (0) target = $region109
    $region108: #{closed_call.37} parent=1 // pred_region
      %166 = vsyncadd %s110, 1024
    $region109: #{closed_call.37} parent=1 // pred_fallthru
      _
    %v167 = vld [vmem:[%s7] sm:$0xff]
    %v168 = vld [vmem:[%s7 + $0x8] sm:$0xff]
    %v169 = vld [vmem:[%s7 + $0x10] sm:$0xff]
    %v170 = vld [vmem:[%s7 + $0x18] sm:$0xff]
    %v171 = vld [vmem:[%s7 + $0x20] sm:$0xff]
    %v172 = vld [vmem:[%s7 + $0x28] sm:$0xff]
    %v173 = vld [vmem:[%s7 + $0x30] sm:$0xff]
    %v174 = vld [vmem:[%s7 + $0x38] sm:$0xff]
    %v175 = vld [vmem:[%s7 + $0x40] sm:$0xff]
    %v176 = vld [vmem:[%s7 + $0x48] sm:$0xff]
    %v177 = vld [vmem:[%s7 + $0x50] sm:$0xff]
    %v178 = vld [vmem:[%s7 + $0x58] sm:$0xff]
    %v179 = vld [vmem:[%s7 + $0x60] sm:$0xff]
    %v180 = vld [vmem:[%s7 + $0x68] sm:$0xff]
    %v181 = vld [vmem:[%s7 + $0x70] sm:$0xff]
    %v182 = vld [vmem:[%s7 + $0x78] sm:$0xff]
    %v183 = vld [vmem:[%s7 + $0x80] sm:$0xff]
    %v184 = vld [vmem:[%s7 + $0x88] sm:$0xff]
    %v185 = vld [vmem:[%s7 + $0x90] sm:$0xff]
    %v186 = vld [vmem:[%s7 + $0x98] sm:$0xff]
    %v187 = vld [vmem:[%s7 + $0xa0] sm:$0xff]
    %v188 = vld [vmem:[%s7 + $0xa8] sm:$0xff]
    %v189 = vld [vmem:[%s7 + $0xb0] sm:$0xff]
    %v190 = vld [vmem:[%s7 + $0xb8] sm:$0xff]
    %v191 = vld [vmem:[%s7 + $0xc0] sm:$0xff]
    %v192 = vld [vmem:[%s7 + $0xc8] sm:$0xff]
    %v193 = vld [vmem:[%s7 + $0xd0] sm:$0xff]
    %v194 = vld [vmem:[%s7 + $0xd8] sm:$0xff]
    %v195 = vld [vmem:[%s7 + $0xe0] sm:$0xff]
    %v196 = vld [vmem:[%s7 + $0xe8] sm:$0xff]
    %v197 = vld [vmem:[%s7 + $0xf0] sm:$0xff]
    %v198 = vld [vmem:[%s7 + $0xf8] sm:$0xff]
    %v199 = vld [vmem:[%s7 + $0x100] sm:$0xff]
    %v200 = vld [vmem:[%s7 + $0x108] sm:$0xff]
    %v201 = vld [vmem:[%s7 + $0x110] sm:$0xff]
    %v202 = vld [vmem:[%s7 + $0x118] sm:$0xff]
    %v203 = vld [vmem:[%s7 + $0x120] sm:$0xff]
    %v204 = vld [vmem:[%s7 + $0x128] sm:$0xff]
    %v205 = vld [vmem:[%s7 + $0x130] sm:$0xff]
    %v206 = vld [vmem:[%s7 + $0x138] sm:$0xff]
    %v207 = vld [vmem:[%s7 + $0x140] sm:$0xff]
    %v208 = vld [vmem:[%s7 + $0x148] sm:$0xff]
    %v209 = vld [vmem:[%s7 + $0x150] sm:$0xff]
    %v210 = vld [vmem:[%s7 + $0x158] sm:$0xff]
    %v211 = vld [vmem:[%s7 + $0x160] sm:$0xff]
    %v212 = vld [vmem:[%s7 + $0x168] sm:$0xff]
    %v213 = vld [vmem:[%s7 + $0x170] sm:$0xff]
    %v214 = vld [vmem:[%s7 + $0x178] sm:$0xff]
    %v215 = vld [vmem:[%s7 + $0x180] sm:$0xff]
    %v216 = vld [vmem:[%s7 + $0x188] sm:$0xff]
    %v217 = vld [vmem:[%s7 + $0x190] sm:$0xff]
    %v218 = vld [vmem:[%s7 + $0x198] sm:$0xff]
    %v219 = vld [vmem:[%s7 + $0x1a0] sm:$0xff]
    %v220 = vld [vmem:[%s7 + $0x1a8] sm:$0xff]
    %v221 = vld [vmem:[%s7 + $0x1b0] sm:$0xff]
    %v222 = vld [vmem:[%s7 + $0x1b8] sm:$0xff]
    %v223 = vld [vmem:[%s7 + $0x1c0] sm:$0xff]
    %v224 = vld [vmem:[%s7 + $0x1c8] sm:$0xff]
    %v225 = vld [vmem:[%s7 + $0x1d0] sm:$0xff]
    %v226 = vld [vmem:[%s7 + $0x1d8] sm:$0xff]
    %v227 = vld [vmem:[%s7 + $0x1e0] sm:$0xff]
    %v228 = vld [vmem:[%s7 + $0x1e8] sm:$0xff]
    %v229 = vld [vmem:[%s7 + $0x1f0] sm:$0xff]
    %v230 = vld [vmem:[%s7 + $0x1f8] sm:$0xff]
    %v231 = vld [vmem:[%s7 + $0x200] sm:$0xff]
    %v232 = vld [vmem:[%s7 + $0x208] sm:$0xff]
    %v233 = vld [vmem:[%s7 + $0x210] sm:$0xff]
    %v234 = vld [vmem:[%s7 + $0x218] sm:$0xff]
    %v235 = vld [vmem:[%s7 + $0x220] sm:$0xff]
    %v236 = vld [vmem:[%s7 + $0x228] sm:$0xff]
    %v237 = vld [vmem:[%s7 + $0x230] sm:$0xff]
    %v238 = vld [vmem:[%s7 + $0x238] sm:$0xff]
    %v239 = vld [vmem:[%s7 + $0x240] sm:$0xff]
    %v240 = vld [vmem:[%s7 + $0x248] sm:$0xff]
    %v241 = vld [vmem:[%s7 + $0x250] sm:$0xff]
    %v242 = vld [vmem:[%s7 + $0x258] sm:$0xff]
    %v243 = vld [vmem:[%s7 + $0x260] sm:$0xff]
    %v244 = vld [vmem:[%s7 + $0x268] sm:$0xff]
    %v245 = vld [vmem:[%s7 + $0x270] sm:$0xff]
    %v246 = vld [vmem:[%s7 + $0x278] sm:$0xff]
    %v247 = vld [vmem:[%s7 + $0x280] sm:$0xff]
    %v248 = vld [vmem:[%s7 + $0x288] sm:$0xff]
    %v249 = vld [vmem:[%s7 + $0x290] sm:$0xff]
    %v250 = vld [vmem:[%s7 + $0x298] sm:$0xff]
    %v251 = vld [vmem:[%s7 + $0x2a0] sm:$0xff]
    %v252 = vld [vmem:[%s7 + $0x2a8] sm:$0xff]
    %v253 = vld [vmem:[%s7 + $0x2b0] sm:$0xff]
    %v254 = vld [vmem:[%s7 + $0x2b8] sm:$0xff]
    %v255 = vld [vmem:[%s7 + $0x2c0] sm:$0xff]
    %v256 = vld [vmem:[%s7 + $0x2c8] sm:$0xff]
    %v257 = vld [vmem:[%s7 + $0x2d0] sm:$0xff]
    %v258 = vld [vmem:[%s7 + $0x2d8] sm:$0xff]
    %v259 = vld [vmem:[%s7 + $0x2e0] sm:$0xff]
    %v260 = vld [vmem:[%s7 + $0x2e8] sm:$0xff]
    %v261 = vld [vmem:[%s7 + $0x2f0] sm:$0xff]
    %v262 = vld [vmem:[%s7 + $0x2f8] sm:$0xff]
    %v263 = vld [vmem:[%s7 + $0x300] sm:$0xff]
    %v264 = vld [vmem:[%s7 + $0x308] sm:$0xff]
    %v265 = vld [vmem:[%s7 + $0x310] sm:$0xff]
    %v266 = vld [vmem:[%s7 + $0x318] sm:$0xff]
    %v267 = vld [vmem:[%s7 + $0x320] sm:$0xff]
    %v268 = vld [vmem:[%s7 + $0x328] sm:$0xff]
    %v269 = vld [vmem:[%s7 + $0x330] sm:$0xff]
    %v270 = vld [vmem:[%s7 + $0x338] sm:$0xff]
    %v271 = vld [vmem:[%s7 + $0x340] sm:$0xff]
    %v272 = vld [vmem:[%s7 + $0x348] sm:$0xff]
    %v273 = vld [vmem:[%s7 + $0x350] sm:$0xff]
    %v274 = vld [vmem:[%s7 + $0x358] sm:$0xff]
    %v275 = vld [vmem:[%s7 + $0x360] sm:$0xff]
    %v276 = vld [vmem:[%s7 + $0x368] sm:$0xff]
    %v277 = vld [vmem:[%s7 + $0x370] sm:$0xff]
    %v278 = vld [vmem:[%s7 + $0x378] sm:$0xff]
    %v279 = vld [vmem:[%s7 + $0x380] sm:$0xff]
    %v280 = vld [vmem:[%s7 + $0x388] sm:$0xff]
    %v281 = vld [vmem:[%s7 + $0x390] sm:$0xff]
    %v282 = vld [vmem:[%s7 + $0x398] sm:$0xff]
    %v283 = vld [vmem:[%s7 + $0x3a0] sm:$0xff]
    %v284 = vld [vmem:[%s7 + $0x3a8] sm:$0xff]
    %v285 = vld [vmem:[%s7 + $0x3b0] sm:$0xff]
    %v286 = vld [vmem:[%s7 + $0x3b8] sm:$0xff]
    %v287 = vld [vmem:[%s7 + $0x3c0] sm:$0xff]
    %v288 = vld [vmem:[%s7 + $0x3c8] sm:$0xff]
    %v289 = vld [vmem:[%s7 + $0x3d0] sm:$0xff]
    %v290 = vld [vmem:[%s7 + $0x3d8] sm:$0xff]
    %v291 = vld [vmem:[%s7 + $0x3e0] sm:$0xff]
    %v292 = vld [vmem:[%s7 + $0x3e8] sm:$0xff]
    %v293 = vld [vmem:[%s7 + $0x3f0] sm:$0xff]
    %v294 = vld [vmem:[%s7 + $0x3f8] sm:$0xff]
    %v295 = vld [vmem:[%s7 + $0x400] sm:$0xff]
    %v296 = vld [vmem:[%s7 + $0x408] sm:$0xff]
    %v297 = vld [vmem:[%s7 + $0x410] sm:$0xff]
    %v298 = vld [vmem:[%s7 + $0x418] sm:$0xff]
    %v299 = vld [vmem:[%s7 + $0x420] sm:$0xff]
    %v300 = vld [vmem:[%s7 + $0x428] sm:$0xff]
    %v301 = vld [vmem:[%s7 + $0x430] sm:$0xff]
    %v302 = vld [vmem:[%s7 + $0x438] sm:$0xff]
    %v303 = vld [vmem:[%s7 + $0x440] sm:$0xff]
    %v304 = vld [vmem:[%s7 + $0x448] sm:$0xff]
    %v305 = vld [vmem:[%s7 + $0x450] sm:$0xff]
    %v306 = vld [vmem:[%s7 + $0x458] sm:$0xff]
    %v307 = vld [vmem:[%s7 + $0x460] sm:$0xff]
    %v308 = vld [vmem:[%s7 + $0x468] sm:$0xff]
    %v309 = vld [vmem:[%s7 + $0x470] sm:$0xff]
    %v310 = vld [vmem:[%s7 + $0x478] sm:$0xff]
    %v311 = vld [vmem:[%s7 + $0x480] sm:$0xff]
    %v312 = vld [vmem:[%s7 + $0x488] sm:$0xff]
    %v313 = vld [vmem:[%s7 + $0x490] sm:$0xff]
    %v314 = vld [vmem:[%s7 + $0x498] sm:$0xff]
    %v315 = vld [vmem:[%s7 + $0x4a0] sm:$0xff]
    %v316 = vld [vmem:[%s7 + $0x4a8] sm:$0xff]
    %v317 = vld [vmem:[%s7 + $0x4b0] sm:$0xff]
    %v318 = vld [vmem:[%s7 + $0x4b8] sm:$0xff]
    %v319 = vld [vmem:[%s7 + $0x4c0] sm:$0xff]
    %v320 = vld [vmem:[%s7 + $0x4c8] sm:$0xff]
    %v321 = vld [vmem:[%s7 + $0x4d0] sm:$0xff]
    %v322 = vld [vmem:[%s7 + $0x4d8] sm:$0xff]
    %v323 = vld [vmem:[%s7 + $0x4e0] sm:$0xff]
    %v324 = vld [vmem:[%s7 + $0x4e8] sm:$0xff]
    %v325 = vld [vmem:[%s7 + $0x4f0] sm:$0xff]
    %v326 = vld [vmem:[%s7 + $0x4f8] sm:$0xff]
    %v327 = vld [vmem:[%s7 + $0x500] sm:$0xff]
    %v328 = vld [vmem:[%s7 + $0x508] sm:$0xff]
    %v329 = vld [vmem:[%s7 + $0x510] sm:$0xff]
    %v330 = vld [vmem:[%s7 + $0x518] sm:$0xff]
    %v331 = vld [vmem:[%s7 + $0x520] sm:$0xff]
    %v332 = vld [vmem:[%s7 + $0x528] sm:$0xff]
    %v333 = vld [vmem:[%s7 + $0x530] sm:$0xff]
    %v334 = vld [vmem:[%s7 + $0x538] sm:$0xff]
    %v335 = vld [vmem:[%s7 + $0x540] sm:$0xff]
    %v336 = vld [vmem:[%s7 + $0x548] sm:$0xff]
    %v337 = vld [vmem:[%s7 + $0x550] sm:$0xff]
    %v338 = vld [vmem:[%s7 + $0x558] sm:$0xff]
    %v339 = vld [vmem:[%s7 + $0x560] sm:$0xff]
    %v340 = vld [vmem:[%s7 + $0x568] sm:$0xff]
    %v341 = vld [vmem:[%s7 + $0x570] sm:$0xff]
    %v342 = vld [vmem:[%s7 + $0x578] sm:$0xff]
    %v343 = vld [vmem:[%s7 + $0x580] sm:$0xff]
    %v344 = vld [vmem:[%s7 + $0x588] sm:$0xff]
    %v345 = vld [vmem:[%s7 + $0x590] sm:$0xff]
    %v346 = vld [vmem:[%s7 + $0x598] sm:$0xff]
    %v347 = vld [vmem:[%s7 + $0x5a0] sm:$0xff]
    %v348 = vld [vmem:[%s7 + $0x5a8] sm:$0xff]
    %v349 = vld [vmem:[%s7 + $0x5b0] sm:$0xff]
    %v350 = vld [vmem:[%s7 + $0x5b8] sm:$0xff]
    %v351 = vld [vmem:[%s7 + $0x5c0] sm:$0xff]
    %v352 = vld [vmem:[%s7 + $0x5c8] sm:$0xff]
    %v353 = vld [vmem:[%s7 + $0x5d0] sm:$0xff]
    %v354 = vld [vmem:[%s7 + $0x5d8] sm:$0xff]
    %v355 = vld [vmem:[%s7 + $0x5e0] sm:$0xff]
    %v356 = vld [vmem:[%s7 + $0x5e8] sm:$0xff]
    %v357 = vld [vmem:[%s7 + $0x5f0] sm:$0xff]
    %v358 = vld [vmem:[%s7 + $0x5f8] sm:$0xff]
    %v361 = vunpack.c.l.s4 1983009808
    %v362 = vunpack.c.0.s8 %v361
    %v363 = vlaneseq
    %v364 = vshrl.u32 %v363, 7
    %v365 = vsub.s32 %v362, %v364
    %v366 = vrot.slane %v53, %v365
    %v367 = vcombine.high %v366, %v366
    %370 = vmatprep.subr.mxu0 %v168
    %371 = vmatpush1.msra.mxu0 %v167
    %372 = vmatprep.subr.mxu0 %v174
    %373 = vmatpush1.msra.mxu0 %v173
    %374 = vmatprep.subr.mxu0 %v180
    %375 = vmatpush1.msra.mxu0 %v179
    %376 = vmatprep.subr.mxu0 %v186
    %377 = vmatpush1.msra.mxu0 %v185
    %378 = vmatprep.subr.mxu0 %v192
    %379 = vmatpush1.msra.mxu0 %v191
    %380 = vmatprep.subr.mxu0 %v198
    %381 = vmatpush1.msra.mxu0 %v197
    %382 = vmatprep.subr.mxu0 %v204
    %383 = vmatpush1.msra.mxu0 %v203
    %384 = vmatprep.subr.mxu0 %v210
    %385 = vmatpush1.msra.mxu0 %v209
    %386 = vmatprep.subr.mxu0 %v216
    %387 = vmatpush1.msra.mxu0 %v215
    %388 = vmatprep.subr.mxu0 %v222
    %389 = vmatpush1.msra.mxu0 %v221
    %390 = vmatprep.subr.mxu0 %v228
    %391 = vmatpush1.msra.mxu0 %v227
    %392 = vmatprep.subr.mxu0 %v234
    %393 = vmatpush1.msra.mxu0 %v233
    %394 = vmatprep.subr.mxu0 %v240
    %395 = vmatpush1.msra.mxu0 %v239
    %396 = vmatprep.subr.mxu0 %v246
    %397 = vmatpush1.msra.mxu0 %v245
    %398 = vmatprep.subr.mxu0 %v252
    %399 = vmatpush1.msra.mxu0 %v251
    %400 = vmatprep.subr.mxu0 %v258
    %401 = vmatpush1.msra.mxu0 %v257
    %402 = vmatprep.subr.mxu0 %v264
    %403 = vmatpush1.msra.mxu0 %v263
    %404 = vmatprep.subr.mxu0 %v270
    %405 = vmatpush1.msra.mxu0 %v269
    %406 = vmatprep.subr.mxu0 %v276
    %407 = vmatpush1.msra.mxu0 %v275
    %408 = vmatprep.subr.mxu0 %v282
    %409 = vmatpush1.msra.mxu0 %v281
    %410 = vmatprep.subr.mxu0 %v288
    %411 = vmatpush1.msra.mxu0 %v287
    %412 = vmatprep.subr.mxu0 %v294
    %413 = vmatpush1.msra.mxu0 %v293
    %414 = vmatprep.subr.mxu0 %v300
    %415 = vmatpush1.msra.mxu0 %v299
    %416 = vmatprep.subr.mxu0 %v306
    %417 = vmatpush1.msra.mxu0 %v305
    %418 = vmatprep.subr.mxu0 %v312
    %419 = vmatpush1.msra.mxu0 %v311
    %420 = vmatprep.subr.mxu0 %v318
    %421 = vmatpush1.msra.mxu0 %v317
    %422 = vmatprep.subr.mxu0 %v324
    %423 = vmatpush1.msra.mxu0 %v323
    %424 = vmatprep.subr.mxu0 %v330
    %425 = vmatpush1.msra.mxu0 %v329
    %426 = vmatprep.subr.mxu0 %v336
    %427 = vmatpush1.msra.mxu0 %v335
    %428 = vmatprep.subr.mxu0 %v342
    %429 = vmatpush1.msra.mxu0 %v341
    %430 = vmatprep.subr.mxu0 %v348
    %431 = vmatpush1.msra.mxu0 %v347
    %432 = vmatprep.subr.mxu0 %v354
    %433 = vmatpush1.msra.mxu0 %v353
    %434 = vmatprep.mubr.f32.mxu0 %v367
    %435 = vmatmul.mubr.f32.gmra.mrb[0].mxu0 %v366
    %v436 = vpop.f32.mrb[0].mxu0
    %v437 = vadd.f32 0.0, %v436
    %v438 = vpop.f32.mrb[0].mxu0
    %v439 = vadd.f32 0.0, %v438
    %440 = vdwg.mxu0
    %441 = vmatprep.subr.mxu0 %v170
    %442 = vmatpush1.msra.mxu0 %v169
    %443 = vmatprep.subr.mxu0 %v176
    %444 = vmatpush1.msra.mxu0 %v175
    %445 = vmatprep.subr.mxu0 %v182
    %446 = vmatpush1.msra.mxu0 %v181
    %447 = vmatprep.subr.mxu0 %v188
    %448 = vmatpush1.msra.mxu0 %v187
    %449 = vmatprep.subr.mxu0 %v194
    %450 = vmatpush1.msra.mxu0 %v193
    %451 = vmatprep.subr.mxu0 %v200
    %452 = vmatpush1.msra.mxu0 %v199
    %453 = vmatprep.subr.mxu0 %v206
    %454 = vmatpush1.msra.mxu0 %v205
    %455 = vmatprep.subr.mxu0 %v212
    %456 = vmatpush1.msra.mxu0 %v211
    %457 = vmatprep.subr.mxu0 %v218
    %458 = vmatpush1.msra.mxu0 %v217
    %459 = vmatprep.subr.mxu0 %v224
    %460 = vmatpush1.msra.mxu0 %v223
    %461 = vmatprep.subr.mxu0 %v230
    %462 = vmatpush1.msra.mxu0 %v229
    %463 = vmatprep.subr.mxu0 %v236
    %464 = vmatpush1.msra.mxu0 %v235
    %465 = vmatprep.subr.mxu0 %v242
    %466 = vmatpush1.msra.mxu0 %v241
    %467 = vmatprep.subr.mxu0 %v248
    %468 = vmatpush1.msra.mxu0 %v247
    %469 = vmatprep.subr.mxu0 %v254
    %470 = vmatpush1.msra.mxu0 %v253
    %471 = vmatprep.subr.mxu0 %v260
    %472 = vmatpush1.msra.mxu0 %v259
    %473 = vmatprep.subr.mxu0 %v266
    %474 = vmatpush1.msra.mxu0 %v265
    %475 = vmatprep.subr.mxu0 %v272
    %476 = vmatpush1.msra.mxu0 %v271
    %477 = vmatprep.subr.mxu0 %v278
    %478 = vmatpush1.msra.mxu0 %v277
    %479 = vmatprep.subr.mxu0 %v284
    %480 = vmatpush1.msra.mxu0 %v283
    %481 = vmatprep.subr.mxu0 %v290
    %482 = vmatpush1.msra.mxu0 %v289
    %483 = vmatprep.subr.mxu0 %v296
    %484 = vmatpush1.msra.mxu0 %v295
    %485 = vmatprep.subr.mxu0 %v302
    %486 = vmatpush1.msra.mxu0 %v301
    %487 = vmatprep.subr.mxu0 %v308
    %488 = vmatpush1.msra.mxu0 %v307
    %489 = vmatprep.subr.mxu0 %v314
    %490 = vmatpush1.msra.mxu0 %v313
    %491 = vmatprep.subr.mxu0 %v320
    %492 = vmatpush1.msra.mxu0 %v319
    %493 = vmatprep.subr.mxu0 %v326
    %494 = vmatpush1.msra.mxu0 %v325
    %495 = vmatprep.subr.mxu0 %v332
    %496 = vmatpush1.msra.mxu0 %v331
    %497 = vmatprep.subr.mxu0 %v338
    %498 = vmatpush1.msra.mxu0 %v337
    %499 = vmatprep.subr.mxu0 %v344
    %500 = vmatpush1.msra.mxu0 %v343
    %501 = vmatprep.subr.mxu0 %v350
    %502 = vmatpush1.msra.mxu0 %v349
    %503 = vmatprep.subr.mxu0 %v356
    %504 = vmatpush1.msra.mxu0 %v355
    %505 = vmatprep.mubr.f32.mxu0 %v367
    %506 = vmatmul.mubr.f32.gmra.mrb[0].mxu0 %v366
    %v507 = vpop.f32.mrb[0].mxu0
    %v508 = vadd.f32 0.0, %v507
    %v509 = vpop.f32.mrb[0].mxu0
    %v510 = vadd.f32 0.0, %v509
    %511 = vdwg.mxu0
    %512 = vmatprep.subr.mxu0 %v172
    %513 = vmatpush1.msra.mxu0 %v171
    %514 = vmatprep.subr.mxu0 %v178
    %515 = vmatpush1.msra.mxu0 %v177
    %516 = vmatprep.subr.mxu0 %v184
    %517 = vmatpush1.msra.mxu0 %v183
    %518 = vmatprep.subr.mxu0 %v190
    %519 = vmatpush1.msra.mxu0 %v189
    %520 = vmatprep.subr.mxu0 %v196
    %521 = vmatpush1.msra.mxu0 %v195
    %522 = vmatprep.subr.mxu0 %v202
    %523 = vmatpush1.msra.mxu0 %v201
    %524 = vmatprep.subr.mxu0 %v208
    %525 = vmatpush1.msra.mxu0 %v207
    %526 = vmatprep.subr.mxu0 %v214
    %527 = vmatpush1.msra.mxu0 %v213
    %528 = vmatprep.subr.mxu0 %v220
    %529 = vmatpush1.msra.mxu0 %v219
    %530 = vmatprep.subr.mxu0 %v226
    %531 = vmatpush1.msra.mxu0 %v225
    %532 = vmatprep.subr.mxu0 %v232
    %533 = vmatpush1.msra.mxu0 %v231
    %534 = vmatprep.subr.mxu0 %v238
    %535 = vmatpush1.msra.mxu0 %v237
    %536 = vmatprep.subr.mxu0 %v244
    %537 = vmatpush1.msra.mxu0 %v243
    %538 = vmatprep.subr.mxu0 %v250
    %539 = vmatpush1.msra.mxu0 %v249
    %540 = vmatprep.subr.mxu0 %v256
    %541 = vmatpush1.msra.mxu0 %v255
    %542 = vmatprep.subr.mxu0 %v262
    %543 = vmatpush1.msra.mxu0 %v261
    %544 = vmatprep.subr.mxu0 %v268
    %545 = vmatpush1.msra.mxu0 %v267
    %546 = vmatprep.subr.mxu0 %v274
    %547 = vmatpush1.msra.mxu0 %v273
    %548 = vmatprep.subr.mxu0 %v280
    %549 = vmatpush1.msra.mxu0 %v279
    %550 = vmatprep.subr.mxu0 %v286
    %551 = vmatpush1.msra.mxu0 %v285
    %552 = vmatprep.subr.mxu0 %v292
    %553 = vmatpush1.msra.mxu0 %v291
    %554 = vmatprep.subr.mxu0 %v298
    %555 = vmatpush1.msra.mxu0 %v297
    %556 = vmatprep.subr.mxu0 %v304
    %557 = vmatpush1.msra.mxu0 %v303
    %558 = vmatprep.subr.mxu0 %v310
    %559 = vmatpush1.msra.mxu0 %v309
    %560 = vmatprep.subr.mxu0 %v316
    %561 = vmatpush1.msra.mxu0 %v315
    %562 = vmatprep.subr.mxu0 %v322
    %563 = vmatpush1.msra.mxu0 %v321
    %564 = vmatprep.subr.mxu0 %v328
    %565 = vmatpush1.msra.mxu0 %v327
    %566 = vmatprep.subr.mxu0 %v334
    %567 = vmatpush1.msra.mxu0 %v333
    %568 = vmatprep.subr.mxu0 %v340
    %569 = vmatpush1.msra.mxu0 %v339
    %570 = vmatprep.subr.mxu0 %v346
    %571 = vmatpush1.msra.mxu0 %v345
    %572 = vmatprep.subr.mxu0 %v352
    %573 = vmatpush1.msra.mxu0 %v351
    %574 = vmatprep.subr.mxu0 %v358
    %575 = vmatpush1.msra.mxu0 %v357
    %576 = vmatprep.mubr.f32.mxu0 %v367
    %577 = vmatmul.mubr.f32.gmra.mrb[0].mxu0 %v366
    %v578 = vpop.f32.mrb[0].mxu0
    %v579 = vadd.f32 0.0, %v578
    %v580 = vpop.f32.mrb[0].mxu0
    %v581 = vadd.f32 0.0, %v580
    %582 = vdwg.mxu0
    %vm583 = vcmask 1040384
    %v584 = vsel %vm583, %v437, 0.0
    %v585 = vsel %vm583, %v439, 0.0
    %v586 = vrot.slane %v437, 1
    %v587 = vsel %vm583, %v586, 0.0
    %v588 = vrot.slane %v439, 1
    %v589 = vsel %vm583, %v588, 0.0
    %v590 = vsel %vm583, %v508, 0.0
    %v591 = vsel %vm583, %v510, 0.0
    %v592 = vrot.slane %v508, 1
    %v593 = vsel %vm583, %v592, 0.0
    %v594 = vrot.slane %v510, 1
    %v595 = vsel %vm583, %v594, 0.0
    %v596 = vsel %vm583, %v579, 0.0
    %v597 = vsel %vm583, %v581, 0.0
    %v598 = vrot.slane %v579, 1
    %v599 = vsel %vm583, %v598, 0.0
    %v600 = vrot.slane %v581, 1
    %v601 = vsel %vm583, %v600, 0.0
    %s602 = smul.u32 4, 16
    %s603 = smul.u32 %s602, 1
    %s604 = sshll.u32 %s603, 4
    %605 = dma.done [#allocation6], %s604
    %s606 = sshll.u32 %s603, 4
    %607 = dma.done %s110, %s606
    %608 = vst [vmem:[#allocation4] sm:$0x1] %v590
    %609 = vst [vmem:[#allocation4 + $0x1] sm:$0x1] %v591
    %610 = vst [vmem:[#allocation4 + $0x2] sm:$0x1] %v593
    %611 = vst [vmem:[#allocation4 + $0x3] sm:$0x1] %v595
    %612 = vst [vmem:[#allocation5] sm:$0x1] %v596
    %613 = vst [vmem:[#allocation5 + $0x1] sm:$0x1] %v597
    %614 = vst [vmem:[#allocation5 + $0x2] sm:$0x1] %v599
    %615 = vst [vmem:[#allocation5 + $0x3] sm:$0x1] %v601
    %s616 = scalar_lea.vmem %s12, %s52
    %p618 = scmp.lt.u32.totalorder 1, 8
    %p619 = pneg %p618
    // Predicated region
    $region110: #{closed_call.37} parent=1 // pred_check
      _
    $region111: #{closed_call.37} parent=1 // pred_check_branch
      %621 = sbr.rel (%p618) target = $region113
    $region112: #{closed_call.37} parent=1 // pred_region
      %s642 = sand.u32 1, 7
      %p643 = scmp.eq.s32.totalorder %s642, 0
      %p644 = pneg %p643
      // Predicated region
      $region125: #{closed_call.37} parent=112 // pred_check
        _
      $region126: #{closed_call.37} parent=112 // pred_check_branch
        %646 = sbr.rel (%p643) target = $region128
      $region127: #{closed_call.37} parent=112 // pred_region
        %s647 = sand.u32 1, 7
        %s648 = ssub.s32 1, %s647
        %s649 = scalar_lea.vmem [#allocation4], %s648
        %s650 = ssub.s32 1, %s647
        %s651 = scalar_lea.vmem %s616, %s650
        %s652 = sshllo.u32 0, %s647
        loop: start=0, step=1, limit=1
        $region129: #{closed_call.37} parent=127 // loop_pre_header
          _
        $region130: #{closed_call.37} parent=127 // loop_header
          %s654 = sphi 0, %s658
          %p655 = scmp.ge.s32.totalorder %s654, 1
          %s659 = sphi %s649, %s649
          %s660 = sphi %s651, %s651
        $region131: #{closed_call.37} parent=127 // loop_header_branch
          %657 = sbr.rel (%p655) target = $region135
        $region132: #{closed_call.37} parent=127 // loop_body
          %v661 = vld [vmem:[%s659] sm:%s652]
          %662 = vst [vmem:[%s660] sm:%s652] %v661
          %v663 = vld [vmem:[%s659 + $0x1] sm:%s652]
          %664 = vst [vmem:[%s660 + $0x10] sm:%s652] %v663
          %v665 = vld [vmem:[%s659 + $0x2] sm:%s652]
          %666 = vst [vmem:[%s660 + $0x20] sm:%s652] %v665
          %v667 = vld [vmem:[%s659 + $0x3] sm:%s652]
          %668 = vst [vmem:[%s660 + $0x30] sm:%s652] %v667
        $region133: #{closed_call.37} parent=127 // loop_footer
          %s658 = sadd.s32 1, %s654
        $region134: #{closed_call.37} parent=127 // loop_footer_branch
          %653 = sbr.rel target = $region130
        $region135: #{closed_call.37} parent=127 // loop_exit
          _
      $region128: #{closed_call.37} parent=112 // pred_fallthru
        _
    $region113: #{closed_call.37} parent=1 // pred_fallthru
      _
    // Predicated region
    $region114: #{closed_call.37} parent=1 // pred_check
      %p622 = pneg %p618
    $region115: #{closed_call.37} parent=1 // pred_check_branch
      %624 = sbr.rel (%p622) target = $region117
    $region116: #{closed_call.37} parent=1 // pred_region
      %s625 = sshllo.u32 0, 1
      loop: start=0, step=1, limit=1
      $region118: #{closed_call.37} parent=116 // loop_pre_header
        _
      $region119: #{closed_call.37} parent=116 // loop_header
        %s627 = sphi 0, %s631
        %p628 = scmp.ge.s32.totalorder %s627, 1
        %s632 = sphi [#allocation4], [#allocation4]
        %s633 = sphi %s616, %s616
      $region120: #{closed_call.37} parent=116 // loop_header_branch
        %630 = sbr.rel (%p628) target = $region124
      $region121: #{closed_call.37} parent=116 // loop_body
        %v634 = vld [vmem:[%s632] sm:%s625]
        %635 = vst [vmem:[%s633] sm:%s625] %v634
        %v636 = vld [vmem:[%s632 + $0x1] sm:%s625]
        %637 = vst [vmem:[%s633 + $0x10] sm:%s625] %v636
        %v638 = vld [vmem:[%s632 + $0x2] sm:%s625]
        %639 = vst [vmem:[%s633 + $0x20] sm:%s625] %v638
        %v640 = vld [vmem:[%s632 + $0x3] sm:%s625]
        %641 = vst [vmem:[%s633 + $0x30] sm:%s625] %v640
      $region122: #{closed_call.37} parent=116 // loop_footer
        %s631 = sadd.s32 1, %s627
      $region123: #{closed_call.37} parent=116 // loop_footer_branch
        %626 = sbr.rel target = $region119
      $region124: #{closed_call.37} parent=116 // loop_exit
        _
    $region117: #{closed_call.37} parent=1 // pred_fallthru
      _
    // Predicated region
    $region136: #{closed_call.37} parent=1 // pred_check
      _
    $region137: #{closed_call.37} parent=1 // pred_check_branch
      %671 = sbr.rel (0) target = $region139
    $region138: #{closed_call.37} parent=1 // pred_region
      %672 = vsyncadd [#allocation6], 64
    $region139: #{closed_call.37} parent=1 // pred_fallthru
      _
    %s673 = scalar_lea.vmem %s13, %s52
    %p675 = scmp.lt.u32.totalorder 1, 8
    %p676 = pneg %p675
    // Predicated region
    $region140: #{closed_call.37} parent=1 // pred_check
      _
    $region141: #{closed_call.37} parent=1 // pred_check_branch
      %678 = sbr.rel (%p675) target = $region143
    $region142: #{closed_call.37} parent=1 // pred_region
      %s699 = sand.u32 1, 7
      %p700 = scmp.eq.s32.totalorder %s699, 0
      %p701 = pneg %p700
      // Predicated region
      $region155: #{closed_call.37} parent=142 // pred_check
        _
      $region156: #{closed_call.37} parent=142 // pred_check_branch
        %703 = sbr.rel (%p700) target = $region158
      $region157: #{closed_call.37} parent=142 // pred_region
        %s704 = sand.u32 1, 7
        %s705 = ssub.s32 1, %s704
        %s706 = scalar_lea.vmem [#allocation5], %s705
        %s707 = ssub.s32 1, %s704
        %s708 = scalar_lea.vmem %s673, %s707
        %s709 = sshllo.u32 0, %s704
        loop: start=0, step=1, limit=1
        $region159: #{closed_call.37} parent=157 // loop_pre_header
          _
        $region160: #{closed_call.37} parent=157 // loop_header
          %s711 = sphi 0, %s715
          %p712 = scmp.ge.s32.totalorder %s711, 1
          %s716 = sphi %s706, %s706
          %s717 = sphi %s708, %s708
        $region161: #{closed_call.37} parent=157 // loop_header_branch
          %714 = sbr.rel (%p712) target = $region165
        $region162: #{closed_call.37} parent=157 // loop_body
          %v718 = vld [vmem:[%s716] sm:%s709]
          %719 = vst [vmem:[%s717] sm:%s709] %v718
          %v720 = vld [vmem:[%s716 + $0x1] sm:%s709]
          %721 = vst [vmem:[%s717 + $0x10] sm:%s709] %v720
          %v722 = vld [vmem:[%s716 + $0x2] sm:%s709]
          %723 = vst [vmem:[%s717 + $0x20] sm:%s709] %v722
          %v724 = vld [vmem:[%s716 + $0x3] sm:%s709]
          %725 = vst [vmem:[%s717 + $0x30] sm:%s709] %v724
        $region163: #{closed_call.37} parent=157 // loop_footer
          %s715 = sadd.s32 1, %s711
        $region164: #{closed_call.37} parent=157 // loop_footer_branch
          %710 = sbr.rel target = $region160
        $region165: #{closed_call.37} parent=157 // loop_exit
          _
      $region158: #{closed_call.37} parent=142 // pred_fallthru
        _
    $region143: #{closed_call.37} parent=1 // pred_fallthru
      _
    // Predicated region
    $region144: #{closed_call.37} parent=1 // pred_check
      %p679 = pneg %p675
    $region145: #{closed_call.37} parent=1 // pred_check_branch
      %681 = sbr.rel (%p679) target = $region147
    $region146: #{closed_call.37} parent=1 // pred_region
      %s682 = sshllo.u32 0, 1
      loop: start=0, step=1, limit=1
      $region148: #{closed_call.37} parent=146 // loop_pre_header
        _
      $region149: #{closed_call.37} parent=146 // loop_header
        %s684 = sphi 0, %s688
        %p685 = scmp.ge.s32.totalorder %s684, 1
        %s689 = sphi [#allocation5], [#allocation5]
        %s690 = sphi %s673, %s673
      $region150: #{closed_call.37} parent=146 // loop_header_branch
        %687 = sbr.rel (%p685) target = $region154
      $region151: #{closed_call.37} parent=146 // loop_body
        %v691 = vld [vmem:[%s689] sm:%s682]
        %692 = vst [vmem:[%s690] sm:%s682] %v691
        %v693 = vld [vmem:[%s689 + $0x1] sm:%s682]
        %694 = vst [vmem:[%s690 + $0x10] sm:%s682] %v693
        %v695 = vld [vmem:[%s689 + $0x2] sm:%s682]
        %696 = vst [vmem:[%s690 + $0x20] sm:%s682] %v695
        %v697 = vld [vmem:[%s689 + $0x3] sm:%s682]
        %698 = vst [vmem:[%s690 + $0x30] sm:%s682] %v697
      $region152: #{closed_call.37} parent=146 // loop_footer
        %s688 = sadd.s32 1, %s684
      $region153: #{closed_call.37} parent=146 // loop_footer_branch
        %683 = sbr.rel target = $region149
      $region154: #{closed_call.37} parent=146 // loop_exit
        _
    $region147: #{closed_call.37} parent=1 // pred_fallthru
      _
    // Predicated region
    $region166: #{closed_call.37} parent=1 // pred_check
      _
    $region167: #{closed_call.37} parent=1 // pred_check_branch
      %728 = sbr.rel (0) target = $region169
    $region168: #{closed_call.37} parent=1 // pred_region
      %729 = vsyncadd %s110, 64
    $region169: #{closed_call.37} parent=1 // pred_fallthru
      _
    %v730 = vlaneseq
    %v731 = vand.u32 %v730, 127
    %v732 = vmul.f32 %v584, %v590
    %v733 = vmul.f32 %v585, %v591
    %v734 = vmul.f32 %v587, %v593
    %v735 = vmul.f32 %v589, %v595
    %v736 = vsel %vm583, %v732, 0.0
    %737 = vadd.xlane.f32.xlu0 %v736
    %v738 = vpop.xlane.xlu0 %737
    %v739 = vsel %vm583, %v733, 0.0
    %740 = vadd.xlane.f32.xlu0 %v739
    %v741 = vpop.xlane.xlu0 %740
    %v742 = vsel %vm583, %v734, 0.0
    %743 = vadd.xlane.f32.xlu0 %v742
    %v744 = vpop.xlane.xlu0 %743
    %v745 = vsel %vm583, %v735, 0.0
    %746 = vadd.xlane.f32.xlu0 %v745
    %v747 = vpop.xlane.xlu0 %746
    %v748 = vld [vmem:[#allocation2] sm:$0xff]
    %v749 = vld [vmem:[#allocation2 + $0x8] sm:$0xff]
    %v750 = vld [vmem:[#allocation2 + $0x10] sm:$0xff]
    %v751 = vld [vmem:[#allocation2 + $0x18] sm:$0xff]
    %v752 = vld [vmem:[#allocation2 + $0x20] sm:$0xff]
    %v753 = vld [vmem:[#allocation2 + $0x28] sm:$0xff]
    %v754 = vld [vmem:[#allocation2 + $0x30] sm:$0xff]
    %v755 = vld [vmem:[#allocation2 + $0x38] sm:$0xff]
    %756 = vmatprep.subr.mxu0 0.0
    %757 = vmatpush1.xpose.msra.mxu0 %v748
    %758 = vmatprep.subr.mxu0 0.0
    %759 = vmatpush1.xpose.msra.mxu0 %v749
    %760 = vmatprep.subr.mxu0 0.0
    %761 = vmatpush1.xpose.msra.mxu0 0.0
    %762 = vmatprep.subr.mxu0 0.0
    %763 = vmatpush1.xpose.msra.mxu0 0.0
    %764 = vmatprep.subr.mxu0 0.0
    %765 = vmatpush1.xpose.msra.mxu0 0.0
    %766 = vmatprep.subr.mxu0 0.0
    %767 = vmatpush1.xpose.msra.mxu0 0.0
    %768 = vmatprep.subr.mxu0 0.0
    %769 = vmatpush1.xpose.msra.mxu0 0.0
    %770 = vmatprep.subr.mxu0 0.0
    %771 = vmatpush1.xpose.msra.mxu0 0.0
    %772 = vmatprep.subr.mxu0 0.0
    %773 = vmatpush1.xpose.msra.mxu0 0.0
    %774 = vmatprep.subr.mxu0 0.0
    %775 = vmatpush1.xpose.msra.mxu0 0.0
    %776 = vmatprep.subr.mxu0 0.0
    %777 = vmatpush1.xpose.msra.mxu0 0.0
    %778 = vmatprep.subr.mxu0 0.0
    %779 = vmatpush1.xpose.msra.mxu0 0.0
    %780 = vmatprep.subr.mxu0 0.0
    %781 = vmatpush1.xpose.msra.mxu0 0.0
    %782 = vmatprep.subr.mxu0 0.0
    %783 = vmatpush1.xpose.msra.mxu0 0.0
    %784 = vmatprep.subr.mxu0 0.0
    %785 = vmatpush1.xpose.msra.mxu0 0.0
    %786 = vmatprep.subr.mxu0 0.0
    %787 = vmatpush1.xpose.msra.mxu0 0.0
    %788 = vmatprep.subr.mxu0 0.0
    %789 = vmatpush1.xpose.msra.mxu0 0.0
    %790 = vmatprep.subr.mxu0 0.0
    %791 = vmatpush1.xpose.msra.mxu0 0.0
    %792 = vmatprep.subr.mxu0 0.0
    %793 = vmatpush1.xpose.msra.mxu0 0.0
    %794 = vmatprep.subr.mxu0 0.0
    %795 = vmatpush1.xpose.msra.mxu0 0.0
    %796 = vmatprep.subr.mxu0 0.0
    %797 = vmatpush1.xpose.msra.mxu0 0.0
    %798 = vmatprep.subr.mxu0 0.0
    %799 = vmatpush1.xpose.msra.mxu0 0.0
    %800 = vmatprep.subr.mxu0 0.0
    %801 = vmatpush1.xpose.msra.mxu0 0.0
    %802 = vmatprep.subr.mxu0 0.0
    %803 = vmatpush1.xpose.msra.mxu0 0.0
    %804 = vmatprep.subr.mxu0 0.0
    %805 = vmatpush1.xpose.msra.mxu0 0.0
    %806 = vmatprep.subr.mxu0 0.0
    %807 = vmatpush1.xpose.msra.mxu0 0.0
    %808 = vmatprep.subr.mxu0 0.0
    %809 = vmatpush1.xpose.msra.mxu0 0.0
    %810 = vmatprep.subr.mxu0 0.0
    %811 = vmatpush1.xpose.msra.mxu0 0.0
    %812 = vmatprep.subr.mxu0 0.0
    %813 = vmatpush1.xpose.msra.mxu0 0.0
    %814 = vmatprep.subr.mxu0 0.0
    %815 = vmatpush1.xpose.msra.mxu0 0.0
    %816 = vmatprep.subr.mxu0 0.0
    %817 = vmatpush1.xpose.msra.mxu0 0.0
    %818 = vmatprep.subr.mxu0 0.0
    %819 = vmatpush1.xpose.msra.mxu0 0.0
    %820 = vmatprep.mubr.f32.mxu0 0.0
    %821 = vmatmul.mubr.f32.gmra.mrb[0].mxu0 %v584
    %v822 = vpop.f32.mrb[0].mxu0
    %v823 = vadd.f32 0.0, %v822
    %v824 = vpop.f32.mrb[0].mxu0
    %825 = vdwg.mxu0
    %826 = vmatprep.subr.mxu0 0.0
    %827 = vmatpush1.xpose.msra.mxu0 %v750
    %828 = vmatprep.subr.mxu0 0.0
    %829 = vmatpush1.xpose.msra.mxu0 %v751
    %830 = vmatprep.subr.mxu0 0.0
    %831 = vmatpush1.xpose.msra.mxu0 0.0
    %832 = vmatprep.subr.mxu0 0.0
    %833 = vmatpush1.xpose.msra.mxu0 0.0
    %834 = vmatprep.subr.mxu0 0.0
    %835 = vmatpush1.xpose.msra.mxu0 0.0
    %836 = vmatprep.subr.mxu0 0.0
    %837 = vmatpush1.xpose.msra.mxu0 0.0
    %838 = vmatprep.subr.mxu0 0.0
    %839 = vmatpush1.xpose.msra.mxu0 0.0
    %840 = vmatprep.subr.mxu0 0.0
    %841 = vmatpush1.xpose.msra.mxu0 0.0
    %842 = vmatprep.subr.mxu0 0.0
    %843 = vmatpush1.xpose.msra.mxu0 0.0
    %844 = vmatprep.subr.mxu0 0.0
    %845 = vmatpush1.xpose.msra.mxu0 0.0
    %846 = vmatprep.subr.mxu0 0.0
    %847 = vmatpush1.xpose.msra.mxu0 0.0
    %848 = vmatprep.subr.mxu0 0.0
    %849 = vmatpush1.xpose.msra.mxu0 0.0
    %850 = vmatprep.subr.mxu0 0.0
    %851 = vmatpush1.xpose.msra.mxu0 0.0
    %852 = vmatprep.subr.mxu0 0.0
    %853 = vmatpush1.xpose.msra.mxu0 0.0
    %854 = vmatprep.subr.mxu0 0.0
    %855 = vmatpush1.xpose.msra.mxu0 0.0
    %856 = vmatprep.subr.mxu0 0.0
    %857 = vmatpush1.xpose.msra.mxu0 0.0
    %858 = vmatprep.subr.mxu0 0.0
    %859 = vmatpush1.xpose.msra.mxu0 0.0
    %860 = vmatprep.subr.mxu0 0.0
    %861 = vmatpush1.xpose.msra.mxu0 0.0
    %862 = vmatprep.subr.mxu0 0.0
    %863 = vmatpush1.xpose.msra.mxu0 0.0
    %864 = vmatprep.subr.mxu0 0.0
    %865 = vmatpush1.xpose.msra.mxu0 0.0
    %866 = vmatprep.subr.mxu0 0.0
    %867 = vmatpush1.xpose.msra.mxu0 0.0
    %868 = vmatprep.subr.mxu0 0.0
    %869 = vmatpush1.xpose.msra.mxu0 0.0
    %870 = vmatprep.subr.mxu0 0.0
    %871 = vmatpush1.xpose.msra.mxu0 0.0
    %872 = vmatprep.subr.mxu0 0.0
    %873 = vmatpush1.xpose.msra.mxu0 0.0
    %874 = vmatprep.subr.mxu0 0.0
    %875 = vmatpush1.xpose.msra.mxu0 0.0
    %876 = vmatprep.subr.mxu0 0.0
    %877 = vmatpush1.xpose.msra.mxu0 0.0
    %878 = vmatprep.subr.mxu0 0.0
    %879 = vmatpush1.xpose.msra.mxu0 0.0
    %880 = vmatprep.subr.mxu0 0.0
    %881 = vmatpush1.xpose.msra.mxu0 0.0
    %882 = vmatprep.subr.mxu0 0.0
    %883 = vmatpush1.xpose.msra.mxu0 0.0
    %884 = vmatprep.subr.mxu0 0.0
    %885 = vmatpush1.xpose.msra.mxu0 0.0
    %886 = vmatprep.subr.mxu0 0.0
    %887 = vmatpush1.xpose.msra.mxu0 0.0
    %888 = vmatprep.subr.mxu0 0.0
    %889 = vmatpush1.xpose.msra.mxu0 0.0
    %890 = vmatprep.mubr.f32.mxu0 0.0
    %891 = vmatmul.mubr.f32.gmra.mrb[0].mxu0 %v585
    %v892 = vpop.f32.mrb[0].mxu0
    %v893 = vadd.f32 0.0, %v892
    %v894 = vpop.f32.mrb[0].mxu0
    %895 = vdwg.mxu0
    %896 = vmatprep.subr.mxu0 0.0
    %897 = vmatpush1.xpose.msra.mxu0 %v752
    %898 = vmatprep.subr.mxu0 0.0
    %899 = vmatpush1.xpose.msra.mxu0 %v753
    %900 = vmatprep.subr.mxu0 0.0
    %901 = vmatpush1.xpose.msra.mxu0 0.0
    %902 = vmatprep.subr.mxu0 0.0
    %903 = vmatpush1.xpose.msra.mxu0 0.0
    %904 = vmatprep.subr.mxu0 0.0
    %905 = vmatpush1.xpose.msra.mxu0 0.0
    %906 = vmatprep.subr.mxu0 0.0
    %907 = vmatpush1.xpose.msra.mxu0 0.0
    %908 = vmatprep.subr.mxu0 0.0
    %909 = vmatpush1.xpose.msra.mxu0 0.0
    %910 = vmatprep.subr.mxu0 0.0
    %911 = vmatpush1.xpose.msra.mxu0 0.0
    %912 = vmatprep.subr.mxu0 0.0
    %913 = vmatpush1.xpose.msra.mxu0 0.0
    %914 = vmatprep.subr.mxu0 0.0
    %915 = vmatpush1.xpose.msra.mxu0 0.0
    %916 = vmatprep.subr.mxu0 0.0
    %917 = vmatpush1.xpose.msra.mxu0 0.0
    %918 = vmatprep.subr.mxu0 0.0
    %919 = vmatpush1.xpose.msra.mxu0 0.0
    %920 = vmatprep.subr.mxu0 0.0
    %921 = vmatpush1.xpose.msra.mxu0 0.0
    %922 = vmatprep.subr.mxu0 0.0
    %923 = vmatpush1.xpose.msra.mxu0 0.0
    %924 = vmatprep.subr.mxu0 0.0
    %925 = vmatpush1.xpose.msra.mxu0 0.0
    %926 = vmatprep.subr.mxu0 0.0
    %927 = vmatpush1.xpose.msra.mxu0 0.0
    %928 = vmatprep.subr.mxu0 0.0
    %929 = vmatpush1.xpose.msra.mxu0 0.0
    %930 = vmatprep.subr.mxu0 0.0
    %931 = vmatpush1.xpose.msra.mxu0 0.0
    %932 = vmatprep.subr.mxu0 0.0
    %933 = vmatpush1.xpose.msra.mxu0 0.0
    %934 = vmatprep.subr.mxu0 0.0
    %935 = vmatpush1.xpose.msra.mxu0 0.0
    %936 = vmatprep.subr.mxu0 0.0
    %937 = vmatpush1.xpose.msra.mxu0 0.0
    %938 = vmatprep.subr.mxu0 0.0
    %939 = vmatpush1.xpose.msra.mxu0 0.0
    %940 = vmatprep.subr.mxu0 0.0
    %941 = vmatpush1.xpose.msra.mxu0 0.0
    %942 = vmatprep.subr.mxu0 0.0
    %943 = vmatpush1.xpose.msra.mxu0 0.0
    %944 = vmatprep.subr.mxu0 0.0
    %945 = vmatpush1.xpose.msra.mxu0 0.0
    %946 = vmatprep.subr.mxu0 0.0
    %947 = vmatpush1.xpose.msra.mxu0 0.0
    %948 = vmatprep.subr.mxu0 0.0
    %949 = vmatpush1.xpose.msra.mxu0 0.0
    %950 = vmatprep.subr.mxu0 0.0
    %951 = vmatpush1.xpose.msra.mxu0 0.0
    %952 = vmatprep.subr.mxu0 0.0
    %953 = vmatpush1.xpose.msra.mxu0 0.0
    %954 = vmatprep.subr.mxu0 0.0
    %955 = vmatpush1.xpose.msra.mxu0 0.0
    %956 = vmatprep.subr.mxu0 0.0
    %957 = vmatpush1.xpose.msra.mxu0 0.0
    %958 = vmatprep.subr.mxu0 0.0
    %959 = vmatpush1.xpose.msra.mxu0 0.0
    %960 = vmatprep.mubr.f32.mxu0 0.0
    %961 = vmatmul.mubr.f32.gmra.mrb[0].mxu0 %v587
    %v962 = vpop.f32.mrb[0].mxu0
    %v963 = vadd.f32 0.0, %v962
    %v964 = vpop.f32.mrb[0].mxu0
    %965 = vdwg.mxu0
    %966 = vmatprep.subr.mxu0 0.0
    %967 = vmatpush1.xpose.msra.mxu0 %v754
    %968 = vmatprep.subr.mxu0 0.0
    %969 = vmatpush1.xpose.msra.mxu0 %v755
    %970 = vmatprep.subr.mxu0 0.0
    %971 = vmatpush1.xpose.msra.mxu0 0.0
    %972 = vmatprep.subr.mxu0 0.0
    %973 = vmatpush1.xpose.msra.mxu0 0.0
    %974 = vmatprep.subr.mxu0 0.0
    %975 = vmatpush1.xpose.msra.mxu0 0.0
    %976 = vmatprep.subr.mxu0 0.0
    %977 = vmatpush1.xpose.msra.mxu0 0.0
    %978 = vmatprep.subr.mxu0 0.0
    %979 = vmatpush1.xpose.msra.mxu0 0.0
    %980 = vmatprep.subr.mxu0 0.0
    %981 = vmatpush1.xpose.msra.mxu0 0.0
    %982 = vmatprep.subr.mxu0 0.0
    %983 = vmatpush1.xpose.msra.mxu0 0.0
    %984 = vmatprep.subr.mxu0 0.0
    %985 = vmatpush1.xpose.msra.mxu0 0.0
    %986 = vmatprep.subr.mxu0 0.0
    %987 = vmatpush1.xpose.msra.mxu0 0.0
    %988 = vmatprep.subr.mxu0 0.0
    %989 = vmatpush1.xpose.msra.mxu0 0.0
    %990 = vmatprep.subr.mxu0 0.0
    %991 = vmatpush1.xpose.msra.mxu0 0.0
    %992 = vmatprep.subr.mxu0 0.0
    %993 = vmatpush1.xpose.msra.mxu0 0.0
    %994 = vmatprep.subr.mxu0 0.0
    %995 = vmatpush1.xpose.msra.mxu0 0.0
    %996 = vmatprep.subr.mxu0 0.0
    %997 = vmatpush1.xpose.msra.mxu0 0.0
    %998 = vmatprep.subr.mxu0 0.0
    %999 = vmatpush1.xpose.msra.mxu0 0.0
    %1000 = vmatprep.subr.mxu0 0.0
    %1001 = vmatpush1.xpose.msra.mxu0 0.0
    %1002 = vmatprep.subr.mxu0 0.0
    %1003 = vmatpush1.xpose.msra.mxu0 0.0
    %1004 = vmatprep.subr.mxu0 0.0
    %1005 = vmatpush1.xpose.msra.mxu0 0.0
    %1006 = vmatprep.subr.mxu0 0.0
    %1007 = vmatpush1.xpose.msra.mxu0 0.0
    %1008 = vmatprep.subr.mxu0 0.0
    %1009 = vmatpush1.xpose.msra.mxu0 0.0
    %1010 = vmatprep.subr.mxu0 0.0
    %1011 = vmatpush1.xpose.msra.mxu0 0.0
    %1012 = vmatprep.subr.mxu0 0.0
    %1013 = vmatpush1.xpose.msra.mxu0 0.0
    %1014 = vmatprep.subr.mxu0 0.0
    %1015 = vmatpush1.xpose.msra.mxu0 0.0
    %1016 = vmatprep.subr.mxu0 0.0
    %1017 = vmatpush1.xpose.msra.mxu0 0.0
    %1018 = vmatprep.subr.mxu0 0.0
    %1019 = vmatpush1.xpose.msra.mxu0 0.0
    %1020 = vmatprep.subr.mxu0 0.0
    %1021 = vmatpush1.xpose.msra.mxu0 0.0
    %1022 = vmatprep.subr.mxu0 0.0
    %1023 = vmatpush1.xpose.msra.mxu0 0.0
    %1024 = vmatprep.subr.mxu0 0.0
    %1025 = vmatpush1.xpose.msra.mxu0 0.0
    %1026 = vmatprep.subr.mxu0 0.0
    %1027 = vmatpush1.xpose.msra.mxu0 0.0
    %1028 = vmatprep.subr.mxu0 0.0
    %1029 = vmatpush1.xpose.msra.mxu0 0.0
    %1030 = vmatprep.mubr.f32.mxu0 0.0
    %1031 = vmatmul.mubr.f32.gmra.mrb[0].mxu0 %v589
    %v1032 = vpop.f32.mrb[0].mxu0
    %v1033 = vadd.f32 0.0, %v1032
    %v1034 = vpop.f32.mrb[0].mxu0
    %1035 = vdwg.mxu0
    %v1036 = vstv %s52
    %vm1037 = vcmp.eq.s32.totalorder %v731, %v1036
    %v1038 = vsel %vm1037, 1, 0
    %vm1039 = vcmp.eq.s32.totalorder %v1038, 1
    %v1040 = vsel %vm1039, %v738, %v823
    %v1041 = vsel %vm1039, %v741, %v893
    %v1042 = vsel %vm1039, %v744, %v963
    %v1043 = vsel %vm1039, %v747, %v1033
    %v1044 = vmul.f32 %v1040, 0.088388346
    %v1045 = vmul.f32 %v1041, 0.088388346
    %v1046 = vmul.f32 %v1042, 0.088388346
    %v1047 = vmul.f32 %v1043, 0.088388346
    %vm1048 = vcmp.le.s32.totalorder %v731, %v1036
    %v1049 = vsel %vm1048, 1, 0
    %vm1050 = vcmp.eq.s32.totalorder %v1049, 1
    %v1051 = vsel %vm1050, %v1044, -1e+30
    %v1052 = vsel %vm1050, %v1045, -1e+30
    %v1053 = vsel %vm1050, %v1046, -1e+30
    %v1054 = vsel %vm1050, %v1047, -1e+30
    %vm1055 = vcmask 122880
    %v1056 = vsel %vm1055, %v1051, -inf
    %1057 = vmax.xlane.f32.xlu0 %v1056
    %v1058 = vpop.xlane.xlu0 %1057
    %v1059 = vsel %vm1055, %v1052, -inf
    %1060 = vmax.xlane.f32.xlu0 %v1059
    %v1061 = vpop.xlane.xlu0 %1060
    %v1062 = vsel %vm1055, %v1053, -inf
    %1063 = vmax.xlane.f32.xlu0 %v1062
    %v1064 = vpop.xlane.xlu0 %1063
    %v1065 = vsel %vm1055, %v1054, -inf
    %1066 = vmax.xlane.f32.xlu0 %v1065
    %v1067 = vpop.xlane.xlu0 %1066
    %v1068 = vsub.f32 %v1051, %v1058
    %v1069 = vsub.f32 %v1052, %v1061
    %v1070 = vsub.f32 %v1053, %v1064
    %v1071 = vsub.f32 %v1054, %v1067
    %v1072 = vmul.f32 %v1068, 1.442695
    %v1073 = vpow.pop %v1072
    %v1074 = vmul.f32 %v1069, 1.442695
    %v1075 = vpow.pop %v1074
    %v1076 = vmul.f32 %v1070, 1.442695
    %v1077 = vpow.pop %v1076
    %v1078 = vmul.f32 %v1071, 1.442695
    %v1079 = vpow.pop %v1078
    %v1080 = vsel %vm1055, %v1073, 0.0
    %1081 = vadd.xlane.f32.xlu0 %v1080
    %v1082 = vpop.xlane.xlu0 %1081
    %v1083 = vsel %vm1055, %v1075, 0.0
    %1084 = vadd.xlane.f32.xlu0 %v1083
    %v1085 = vpop.xlane.xlu0 %1084
    %v1086 = vsel %vm1055, %v1077, 0.0
    %1087 = vadd.xlane.f32.xlu0 %v1086
    %v1088 = vpop.xlane.xlu0 %1087
    %v1089 = vsel %vm1055, %v1079, 0.0
    %1090 = vadd.xlane.f32.xlu0 %v1089
    %v1091 = vpop.xlane.xlu0 %1090
    %v1092 = vrcp.pop %v1082
    %v1093 = vrcp.pop %v1085
    %v1094 = vrcp.pop %v1088
    %v1095 = vrcp.pop %v1091
    %v1096 = vmul.f32 %v1073, %v1092
    %v1097 = vmul.f32 %v1075, %v1093
    %v1098 = vmul.f32 %v1077, %v1094
    %v1099 = vmul.f32 %v1079, %v1095
    %v1100 = vsel %vm1039, %v1096, 0.0
    %v1101 = vsel %vm1039, %v1097, 0.0
    %v1102 = vsel %vm1039, %v1098, 0.0
    %v1103 = vsel %vm1039, %v1099, 0.0
    %v1104 = vsel %vm1055, %v1100, 0.0
    %1105 = vadd.xlane.f32.xlu0 %v1104
    %v1106 = vpop.xlane.xlu0 %1105
    %v1107 = vsel %vm1055, %v1101, 0.0
    %1108 = vadd.xlane.f32.xlu0 %v1107
    %v1109 = vpop.xlane.xlu0 %1108
    %v1110 = vsel %vm1055, %v1102, 0.0
    %1111 = vadd.xlane.f32.xlu0 %v1110
    %v1112 = vpop.xlane.xlu0 %1111
    %v1113 = vsel %vm1055, %v1103, 0.0
    %1114 = vadd.xlane.f32.xlu0 %v1113
    %v1115 = vpop.xlane.xlu0 %1114
    %v1116 = vsel %vm1039, 0.0, %v1096
    %v1117 = vsel %vm1039, 0.0, %v1097
    %v1118 = vsel %vm1039, 0.0, %v1098
    %v1119 = vsel %vm1039, 0.0, %v1099
    %v1120 = vld [vmem:[#allocation3] sm:$0xff]
    %v1121 = vld [vmem:[#allocation3 + $0x8] sm:$0xff]
    %v1122 = vld [vmem:[#allocation3 + $0x10] sm:$0xff]
    %v1123 = vld [vmem:[#allocation3 + $0x18] sm:$0xff]
    %v1124 = vld [vmem:[#allocation3 + $0x20] sm:$0xff]
    %v1125 = vld [vmem:[#allocation3 + $0x28] sm:$0xff]
    %v1126 = vld [vmem:[#allocation3 + $0x30] sm:$0xff]
    %v1127 = vld [vmem:[#allocation3 + $0x38] sm:$0xff]
    %v1128 = vmul.f32 %v1106, %v596
    %v1129 = vmul.f32 %v1109, %v597
    %v1130 = vmul.f32 %v1112, %v599
    %v1131 = vmul.f32 %v1115, %v601
    %vm1132 = vcmask 130048
    %v1134 = vsel %vm1132, %v1116, 0
    %1136 = vmatprep.subr.mxu0 0.0
    %1137 = vmatpush1.msra.mxu0 %v1120
    %1138 = vmatprep.subr.mxu0 0.0
    %1139 = vmatpush1.msra.mxu0 %v1121
    %1140 = vmatprep.subr.mxu0 0.0
    %1141 = vmatpush1.msra.mxu0 0.0
    %1142 = vmatprep.subr.mxu0 0.0
    %1143 = vmatpush1.msra.mxu0 0.0
    %1144 = vmatprep.subr.mxu0 0.0
    %1145 = vmatpush1.msra.mxu0 0.0
    %1146 = vmatprep.subr.mxu0 0.0
    %1147 = vmatpush1.msra.mxu0 0.0
    %1148 = vmatprep.subr.mxu0 0.0
    %1149 = vmatpush1.msra.mxu0 0.0
    %1150 = vmatprep.subr.mxu0 0.0
    %1151 = vmatpush1.msra.mxu0 0.0
    %1152 = vmatprep.subr.mxu0 0.0
    %1153 = vmatpush1.msra.mxu0 0.0
    %1154 = vmatprep.subr.mxu0 0.0
    %1155 = vmatpush1.msra.mxu0 0.0
    %1156 = vmatprep.subr.mxu0 0.0
    %1157 = vmatpush1.msra.mxu0 0.0
    %1158 = vmatprep.subr.mxu0 0.0
    %1159 = vmatpush1.msra.mxu0 0.0
    %1160 = vmatprep.subr.mxu0 0.0
    %1161 = vmatpush1.msra.mxu0 0.0
    %1162 = vmatprep.subr.mxu0 0.0
    %1163 = vmatpush1.msra.mxu0 0.0
    %1164 = vmatprep.subr.mxu0 0.0
    %1165 = vmatpush1.msra.mxu0 0.0
    %1166 = vmatprep.subr.mxu0 0.0
    %1167 = vmatpush1.msra.mxu0 0.0
    %1168 = vmatprep.subr.mxu0 0.0
    %1169 = vmatpush1.msra.mxu0 0.0
    %1170 = vmatprep.subr.mxu0 0.0
    %1171 = vmatpush1.msra.mxu0 0.0
    %1172 = vmatprep.subr.mxu0 0.0
    %1173 = vmatpush1.msra.mxu0 0.0
    %1174 = vmatprep.subr.mxu0 0.0
    %1175 = vmatpush1.msra.mxu0 0.0
    %1176 = vmatprep.subr.mxu0 0.0
    %1177 = vmatpush1.msra.mxu0 0.0
    %1178 = vmatprep.subr.mxu0 0.0
    %1179 = vmatpush1.msra.mxu0 0.0
    %1180 = vmatprep.subr.mxu0 0.0
    %1181 = vmatpush1.msra.mxu0 0.0
    %1182 = vmatprep.subr.mxu0 0.0
    %1183 = vmatpush1.msra.mxu0 0.0
    %1184 = vmatprep.subr.mxu0 0.0
    %1185 = vmatpush1.msra.mxu0 0.0
    %1186 = vmatprep.subr.mxu0 0.0
    %1187 = vmatpush1.msra.mxu0 0.0
    %1188 = vmatprep.subr.mxu0 0.0
    %1189 = vmatpush1.msra.mxu0 0.0
    %1190 = vmatprep.subr.mxu0 0.0
    %1191 = vmatpush1.msra.mxu0 0.0
    %1192 = vmatprep.subr.mxu0 0.0
    %1193 = vmatpush1.msra.mxu0 0.0
    %1194 = vmatprep.subr.mxu0 0.0
    %1195 = vmatpush1.msra.mxu0 0.0
    %1196 = vmatprep.subr.mxu0 0.0
    %1197 = vmatpush1.msra.mxu0 0.0
    %1198 = vmatprep.subr.mxu0 0.0
    %1199 = vmatpush1.msra.mxu0 0.0
    %1200 = vmatprep.mubr.f32.mxu0 0.0
    %1201 = vmatmul.mubr.f32.gmra.mrb[0].mxu0 %v1134
    %v1202 = vpop.f32.mrb[0].mxu0
    %v1203 = vadd.f32 %v1128, %v1202
    %v1204 = vpop.f32.mrb[0].mxu0
    %1205 = vdwg.mxu0
    %v1207 = vsel %vm1132, %v1117, 0
    %1209 = vmatprep.subr.mxu0 0.0
    %1210 = vmatpush1.msra.mxu0 %v1122
    %1211 = vmatprep.subr.mxu0 0.0
    %1212 = vmatpush1.msra.mxu0 %v1123
    %1213 = vmatprep.subr.mxu0 0.0
    %1214 = vmatpush1.msra.mxu0 0.0
    %1215 = vmatprep.subr.mxu0 0.0
    %1216 = vmatpush1.msra.mxu0 0.0
    %1217 = vmatprep.subr.mxu0 0.0
    %1218 = vmatpush1.msra.mxu0 0.0
    %1219 = vmatprep.subr.mxu0 0.0
    %1220 = vmatpush1.msra.mxu0 0.0
    %1221 = vmatprep.subr.mxu0 0.0
    %1222 = vmatpush1.msra.mxu0 0.0
    %1223 = vmatprep.subr.mxu0 0.0
    %1224 = vmatpush1.msra.mxu0 0.0
    %1225 = vmatprep.subr.mxu0 0.0
    %1226 = vmatpush1.msra.mxu0 0.0
    %1227 = vmatprep.subr.mxu0 0.0
    %1228 = vmatpush1.msra.mxu0 0.0
    %1229 = vmatprep.subr.mxu0 0.0
    %1230 = vmatpush1.msra.mxu0 0.0
    %1231 = vmatprep.subr.mxu0 0.0
    %1232 = vmatpush1.msra.mxu0 0.0
    %1233 = vmatprep.subr.mxu0 0.0
    %1234 = vmatpush1.msra.mxu0 0.0
    %1235 = vmatprep.subr.mxu0 0.0
    %1236 = vmatpush1.msra.mxu0 0.0
    %1237 = vmatprep.subr.mxu0 0.0
    %1238 = vmatpush1.msra.mxu0 0.0
    %1239 = vmatprep.subr.mxu0 0.0
    %1240 = vmatpush1.msra.mxu0 0.0
    %1241 = vmatprep.subr.mxu0 0.0
    %1242 = vmatpush1.msra.mxu0 0.0
    %1243 = vmatprep.subr.mxu0 0.0
    %1244 = vmatpush1.msra.mxu0 0.0
    %1245 = vmatprep.subr.mxu0 0.0
    %1246 = vmatpush1.msra.mxu0 0.0
    %1247 = vmatprep.subr.mxu0 0.0
    %1248 = vmatpush1.msra.mxu0 0.0
    %1249 = vmatprep.subr.mxu0 0.0
    %1250 = vmatpush1.msra.mxu0 0.0
    %1251 = vmatprep.subr.mxu0 0.0
    %1252 = vmatpush1.msra.mxu0 0.0
    %1253 = vmatprep.subr.mxu0 0.0
    %1254 = vmatpush1.msra.mxu0 0.0
    %1255 = vmatprep.subr.mxu0 0.0
    %1256 = vmatpush1.msra.mxu0 0.0
    %1257 = vmatprep.subr.mxu0 0.0
    %1258 = vmatpush1.msra.mxu0 0.0
    %1259 = vmatprep.subr.mxu0 0.0
    %1260 = vmatpush1.msra.mxu0 0.0
    %1261 = vmatprep.subr.mxu0 0.0
    %1262 = vmatpush1.msra.mxu0 0.0
    %1263 = vmatprep.subr.mxu0 0.0
    %1264 = vmatpush1.msra.mxu0 0.0
    %1265 = vmatprep.subr.mxu0 0.0
    %1266 = vmatpush1.msra.mxu0 0.0
    %1267 = vmatprep.subr.mxu0 0.0
    %1268 = vmatpush1.msra.mxu0 0.0
    %1269 = vmatprep.subr.mxu0 0.0
    %1270 = vmatpush1.msra.mxu0 0.0
    %1271 = vmatprep.subr.mxu0 0.0
    %1272 = vmatpush1.msra.mxu0 0.0
    %1273 = vmatprep.mubr.f32.mxu0 0.0
    %1274 = vmatmul.mubr.f32.gmra.mrb[0].mxu0 %v1207
    %v1275 = vpop.f32.mrb[0].mxu0
    %v1276 = vadd.f32 %v1129, %v1275
    %v1277 = vpop.f32.mrb[0].mxu0
    %1278 = vdwg.mxu0
    %v1280 = vsel %vm1132, %v1118, 0
    %1282 = vmatprep.subr.mxu0 0.0
    %1283 = vmatpush1.msra.mxu0 %v1124
    %1284 = vmatprep.subr.mxu0 0.0
    %1285 = vmatpush1.msra.mxu0 %v1125
    %1286 = vmatprep.subr.mxu0 0.0
    %1287 = vmatpush1.msra.mxu0 0.0
    %1288 = vmatprep.subr.mxu0 0.0
    %1289 = vmatpush1.msra.mxu0 0.0
    %1290 = vmatprep.subr.mxu0 0.0
    %1291 = vmatpush1.msra.mxu0 0.0
    %1292 = vmatprep.subr.mxu0 0.0
    %1293 = vmatpush1.msra.mxu0 0.0
    %1294 = vmatprep.subr.mxu0 0.0
    %1295 = vmatpush1.msra.mxu0 0.0
    %1296 = vmatprep.subr.mxu0 0.0
    %1297 = vmatpush1.msra.mxu0 0.0
    %1298 = vmatprep.subr.mxu0 0.0
    %1299 = vmatpush1.msra.mxu0 0.0
    %1300 = vmatprep.subr.mxu0 0.0
    %1301 = vmatpush1.msra.mxu0 0.0
    %1302 = vmatprep.subr.mxu0 0.0
    %1303 = vmatpush1.msra.mxu0 0.0
    %1304 = vmatprep.subr.mxu0 0.0
    %1305 = vmatpush1.msra.mxu0 0.0
    %1306 = vmatprep.subr.mxu0 0.0
    %1307 = vmatpush1.msra.mxu0 0.0
    %1308 = vmatprep.subr.mxu0 0.0
    %1309 = vmatpush1.msra.mxu0 0.0
    %1310 = vmatprep.subr.mxu0 0.0
    %1311 = vmatpush1.msra.mxu0 0.0
    %1312 = vmatprep.subr.mxu0 0.0
    %1313 = vmatpush1.msra.mxu0 0.0
    %1314 = vmatprep.subr.mxu0 0.0
    %1315 = vmatpush1.msra.mxu0 0.0
    %1316 = vmatprep.subr.mxu0 0.0
    %1317 = vmatpush1.msra.mxu0 0.0
    %1318 = vmatprep.subr.mxu0 0.0
    %1319 = vmatpush1.msra.mxu0 0.0
    %1320 = vmatprep.subr.mxu0 0.0
    %1321 = vmatpush1.msra.mxu0 0.0
    %1322 = vmatprep.subr.mxu0 0.0
    %1323 = vmatpush1.msra.mxu0 0.0
    %1324 = vmatprep.subr.mxu0 0.0
    %1325 = vmatpush1.msra.mxu0 0.0
    %1326 = vmatprep.subr.mxu0 0.0
    %1327 = vmatpush1.msra.mxu0 0.0
    %1328 = vmatprep.subr.mxu0 0.0
    %1329 = vmatpush1.msra.mxu0 0.0
    %1330 = vmatprep.subr.mxu0 0.0
    %1331 = vmatpush1.msra.mxu0 0.0
    %1332 = vmatprep.subr.mxu0 0.0
    %1333 = vmatpush1.msra.mxu0 0.0
    %1334 = vmatprep.subr.mxu0 0.0
    %1335 = vmatpush1.msra.mxu0 0.0
    %1336 = vmatprep.subr.mxu0 0.0
    %1337 = vmatpush1.msra.mxu0 0.0
    %1338 = vmatprep.subr.mxu0 0.0
    %1339 = vmatpush1.msra.mxu0 0.0
    %1340 = vmatprep.subr.mxu0 0.0
    %1341 = vmatpush1.msra.mxu0 0.0
    %1342 = vmatprep.subr.mxu0 0.0
    %1343 = vmatpush1.msra.mxu0 0.0
    %1344 = vmatprep.subr.mxu0 0.0
    %1345 = vmatpush1.msra.mxu0 0.0
    %1346 = vmatprep.mubr.f32.mxu0 0.0
    %1347 = vmatmul.mubr.f32.gmra.mrb[0].mxu0 %v1280
    %v1348 = vpop.f32.mrb[0].mxu0
    %v1349 = vadd.f32 %v1130, %v1348
    %v1350 = vpop.f32.mrb[0].mxu0
    %1351 = vdwg.mxu0
    %v1353 = vsel %vm1132, %v1119, 0
    %1355 = vmatprep.subr.mxu0 0.0
    %1356 = vmatpush1.msra.mxu0 %v1126
    %1357 = vmatprep.subr.mxu0 0.0
    %1358 = vmatpush1.msra.mxu0 %v1127
    %1359 = vmatprep.subr.mxu0 0.0
    %1360 = vmatpush1.msra.mxu0 0.0
    %1361 = vmatprep.subr.mxu0 0.0
    %1362 = vmatpush1.msra.mxu0 0.0
    %1363 = vmatprep.subr.mxu0 0.0
    %1364 = vmatpush1.msra.mxu0 0.0
    %1365 = vmatprep.subr.mxu0 0.0
    %1366 = vmatpush1.msra.mxu0 0.0
    %1367 = vmatprep.subr.mxu0 0.0
    %1368 = vmatpush1.msra.mxu0 0.0
    %1369 = vmatprep.subr.mxu0 0.0
    %1370 = vmatpush1.msra.mxu0 0.0
    %1371 = vmatprep.subr.mxu0 0.0
    %1372 = vmatpush1.msra.mxu0 0.0
    %1373 = vmatprep.subr.mxu0 0.0
    %1374 = vmatpush1.msra.mxu0 0.0
    %1375 = vmatprep.subr.mxu0 0.0
    %1376 = vmatpush1.msra.mxu0 0.0
    %1377 = vmatprep.subr.mxu0 0.0
    %1378 = vmatpush1.msra.mxu0 0.0
    %1379 = vmatprep.subr.mxu0 0.0
    %1380 = vmatpush1.msra.mxu0 0.0
    %1381 = vmatprep.subr.mxu0 0.0
    %1382 = vmatpush1.msra.mxu0 0.0
    %1383 = vmatprep.subr.mxu0 0.0
    %1384 = vmatpush1.msra.mxu0 0.0
    %1385 = vmatprep.subr.mxu0 0.0
    %1386 = vmatpush1.msra.mxu0 0.0
    %1387 = vmatprep.subr.mxu0 0.0
    %1388 = vmatpush1.msra.mxu0 0.0
    %1389 = vmatprep.subr.mxu0 0.0
    %1390 = vmatpush1.msra.mxu0 0.0
    %1391 = vmatprep.subr.mxu0 0.0
    %1392 = vmatpush1.msra.mxu0 0.0
    %1393 = vmatprep.subr.mxu0 0.0
    %1394 = vmatpush1.msra.mxu0 0.0
    %1395 = vmatprep.subr.mxu0 0.0
    %1396 = vmatpush1.msra.mxu0 0.0
    %1397 = vmatprep.subr.mxu0 0.0
    %1398 = vmatpush1.msra.mxu0 0.0
    %1399 = vmatprep.subr.mxu0 0.0
    %1400 = vmatpush1.msra.mxu0 0.0
    %1401 = vmatprep.subr.mxu0 0.0
    %1402 = vmatpush1.msra.mxu0 0.0
    %1403 = vmatprep.subr.mxu0 0.0
    %1404 = vmatpush1.msra.mxu0 0.0
    %1405 = vmatprep.subr.mxu0 0.0
    %1406 = vmatpush1.msra.mxu0 0.0
    %1407 = vmatprep.subr.mxu0 0.0
    %1408 = vmatpush1.msra.mxu0 0.0
    %1409 = vmatprep.subr.mxu0 0.0
    %1410 = vmatpush1.msra.mxu0 0.0
    %1411 = vmatprep.subr.mxu0 0.0
    %1412 = vmatpush1.msra.mxu0 0.0
    %1413 = vmatprep.subr.mxu0 0.0
    %1414 = vmatpush1.msra.mxu0 0.0
    %1415 = vmatprep.subr.mxu0 0.0
    %1416 = vmatpush1.msra.mxu0 0.0
    %1417 = vmatprep.subr.mxu0 0.0
    %1418 = vmatpush1.msra.mxu0 0.0
    %1419 = vmatprep.mubr.f32.mxu0 0.0
    %1420 = vmatmul.mubr.f32.gmra.mrb[0].mxu0 %v1353
    %v1421 = vpop.f32.mrb[0].mxu0
    %v1422 = vadd.f32 %v1131, %v1421
    %v1423 = vpop.f32.mrb[0].mxu0
    %1424 = vdwg.mxu0
    %v1425 = vsel %vm583, %v1203, 0.0
    %v1426 = vrot.slane %v1349, 7
    %vm1427 = vcmask 1041409
    %v1428 = vsel %vm1427, %v1426, %v1425
    %v1429 = vsel %vm583, %v1276, 0.0
    %v1430 = vrot.slane %v1422, 7
    %v1431 = vsel %vm1427, %v1430, %v1429
    %v1432 = vld [vmem:[%s8] sm:$0xff]
    %v1433 = vld [vmem:[%s8 + $0x8] sm:$0xff]
    %v1434 = vld [vmem:[%s8 + $0x10] sm:$0xff]
    %v1435 = vld [vmem:[%s8 + $0x18] sm:$0xff]
    %v1436 = vld [vmem:[%s8 + $0x20] sm:$0xff]
    %v1437 = vld [vmem:[%s8 + $0x28] sm:$0xff]
    %v1438 = vld [vmem:[%s8 + $0x30] sm:$0xff]
    %v1439 = vld [vmem:[%s8 + $0x38] sm:$0xff]
    %v1440 = vld [vmem:[%s8 + $0x40] sm:$0xff]
    %v1441 = vld [vmem:[%s8 + $0x48] sm:$0xff]
    %v1442 = vld [vmem:[%s8 + $0x50] sm:$0xff]
    %v1443 = vld [vmem:[%s8 + $0x58] sm:$0xff]
    %v1444 = vld [vmem:[%s8 + $0x60] sm:$0xff]
    %v1445 = vld [vmem:[%s8 + $0x68] sm:$0xff]
    %v1446 = vld [vmem:[%s8 + $0x70] sm:$0xff]
    %v1447 = vld [vmem:[%s8 + $0x78] sm:$0xff]
    %v1448 = vld [vmem:[%s8 + $0x80] sm:$0xff]
    %v1449 = vld [vmem:[%s8 + $0x88] sm:$0xff]
    %v1450 = vld [vmem:[%s8 + $0x90] sm:$0xff]
    %v1451 = vld [vmem:[%s8 + $0x98] sm:$0xff]
    %v1452 = vld [vmem:[%s8 + $0xa0] sm:$0xff]
    %v1453 = vld [vmem:[%s8 + $0xa8] sm:$0xff]
    %v1454 = vld [vmem:[%s8 + $0xb0] sm:$0xff]
    %v1455 = vld [vmem:[%s8 + $0xb8] sm:$0xff]
    %v1456 = vld [vmem:[%s8 + $0xc0] sm:$0xff]
    %v1457 = vld [vmem:[%s8 + $0xc8] sm:$0xff]
    %v1458 = vld [vmem:[%s8 + $0xd0] sm:$0xff]
    %v1459 = vld [vmem:[%s8 + $0xd8] sm:$0xff]
    %v1460 = vld [vmem:[%s8 + $0xe0] sm:$0xff]
    %v1461 = vld [vmem:[%s8 + $0xe8] sm:$0xff]
    %v1462 = vld [vmem:[%s8 + $0xf0] sm:$0xff]
    %v1463 = vld [vmem:[%s8 + $0xf8] sm:$0xff]
    %v1464 = vld [vmem:[%s8 + $0x100] sm:$0xff]
    %v1465 = vld [vmem:[%s8 + $0x108] sm:$0xff]
    %v1466 = vld [vmem:[%s8 + $0x110] sm:$0xff]
    %v1467 = vld [vmem:[%s8 + $0x118] sm:$0xff]
    %v1468 = vld [vmem:[%s8 + $0x120] sm:$0xff]
    %v1469 = vld [vmem:[%s8 + $0x128] sm:$0xff]
    %v1470 = vld [vmem:[%s8 + $0x130] sm:$0xff]
    %v1471 = vld [vmem:[%s8 + $0x138] sm:$0xff]
    %v1472 = vld [vmem:[%s8 + $0x140] sm:$0xff]
    %v1473 = vld [vmem:[%s8 + $0x148] sm:$0xff]
    %v1474 = vld [vmem:[%s8 + $0x150] sm:$0xff]
    %v1475 = vld [vmem:[%s8 + $0x158] sm:$0xff]
    %v1476 = vld [vmem:[%s8 + $0x160] sm:$0xff]
    %v1477 = vld [vmem:[%s8 + $0x168] sm:$0xff]
    %v1478 = vld [vmem:[%s8 + $0x170] sm:$0xff]
    %v1479 = vld [vmem:[%s8 + $0x178] sm:$0xff]
    %v1480 = vld [vmem:[%s8 + $0x180] sm:$0xff]
    %v1481 = vld [vmem:[%s8 + $0x188] sm:$0xff]
    %v1482 = vld [vmem:[%s8 + $0x190] sm:$0xff]
    %v1483 = vld [vmem:[%s8 + $0x198] sm:$0xff]
    %v1484 = vld [vmem:[%s8 + $0x1a0] sm:$0xff]
    %v1485 = vld [vmem:[%s8 + $0x1a8] sm:$0xff]
    %v1486 = vld [vmem:[%s8 + $0x1b0] sm:$0xff]
    %v1487 = vld [vmem:[%s8 + $0x1b8] sm:$0xff]
    %v1488 = vld [vmem:[%s8 + $0x1c0] sm:$0xff]
    %v1489 = vld [vmem:[%s8 + $0x1c8] sm:$0xff]
    %v1490 = vld [vmem:[%s8 + $0x1d0] sm:$0xff]
    %v1491 = vld [vmem:[%s8 + $0x1d8] sm:$0xff]
    %v1492 = vld [vmem:[%s8 + $0x1e0] sm:$0xff]
    %v1493 = vld [vmem:[%s8 + $0x1e8] sm:$0xff]
    %v1494 = vld [vmem:[%s8 + $0x1f0] sm:$0xff]
    %v1495 = vld [vmem:[%s8 + $0x1f8] sm:$0xff]
    %1496 = vmatprep.subr.mxu0 %v1433
    %1497 = vmatpush1.msra.mxu0 %v1432
    %1498 = vmatprep.subr.mxu0 %v1435
    %1499 = vmatpush1.msra.mxu0 %v1434
    %1500 = vmatprep.subr.mxu0 %v1437
    %1501 = vmatpush1.msra.mxu0 %v1436
    %1502 = vmatprep.subr.mxu0 %v1439
    %1503 = vmatpush1.msra.mxu0 %v1438
    %1504 = vmatprep.subr.mxu0 %v1441
    %1505 = vmatpush1.msra.mxu0 %v1440
    %1506 = vmatprep.subr.mxu0 %v1443
    %1507 = vmatpush1.msra.mxu0 %v1442
    %1508 = vmatprep.subr.mxu0 %v1445
    %1509 = vmatpush1.msra.mxu0 %v1444
    %1510 = vmatprep.subr.mxu0 %v1447
    %1511 = vmatpush1.msra.mxu0 %v1446
    %1512 = vmatprep.subr.mxu0 %v1449
    %1513 = vmatpush1.msra.mxu0 %v1448
    %1514 = vmatprep.subr.mxu0 %v1451
    %1515 = vmatpush1.msra.mxu0 %v1450
    %1516 = vmatprep.subr.mxu0 %v1453
    %1517 = vmatpush1.msra.mxu0 %v1452
    %1518 = vmatprep.subr.mxu0 %v1455
    %1519 = vmatpush1.msra.mxu0 %v1454
    %1520 = vmatprep.subr.mxu0 %v1457
    %1521 = vmatpush1.msra.mxu0 %v1456
    %1522 = vmatprep.subr.mxu0 %v1459
    %1523 = vmatpush1.msra.mxu0 %v1458
    %1524 = vmatprep.subr.mxu0 %v1461
    %1525 = vmatpush1.msra.mxu0 %v1460
    %1526 = vmatprep.subr.mxu0 %v1463
    %1527 = vmatpush1.msra.mxu0 %v1462
    %1528 = vmatprep.subr.mxu0 %v1465
    %1529 = vmatpush1.msra.mxu0 %v1464
    %1530 = vmatprep.subr.mxu0 %v1467
    %1531 = vmatpush1.msra.mxu0 %v1466
    %1532 = vmatprep.subr.mxu0 %v1469
    %1533 = vmatpush1.msra.mxu0 %v1468
    %1534 = vmatprep.subr.mxu0 %v1471
    %1535 = vmatpush1.msra.mxu0 %v1470
    %1536 = vmatprep.subr.mxu0 %v1473
    %1537 = vmatpush1.msra.mxu0 %v1472
    %1538 = vmatprep.subr.mxu0 %v1475
    %1539 = vmatpush1.msra.mxu0 %v1474
    %1540 = vmatprep.subr.mxu0 %v1477
    %1541 = vmatpush1.msra.mxu0 %v1476
    %1542 = vmatprep.subr.mxu0 %v1479
    %1543 = vmatpush1.msra.mxu0 %v1478
    %1544 = vmatprep.subr.mxu0 %v1481
    %1545 = vmatpush1.msra.mxu0 %v1480
    %1546 = vmatprep.subr.mxu0 %v1483
    %1547 = vmatpush1.msra.mxu0 %v1482
    %1548 = vmatprep.subr.mxu0 %v1485
    %1549 = vmatpush1.msra.mxu0 %v1484
    %1550 = vmatprep.subr.mxu0 %v1487
    %1551 = vmatpush1.msra.mxu0 %v1486
    %1552 = vmatprep.subr.mxu0 %v1489
    %1553 = vmatpush1.msra.mxu0 %v1488
    %1554 = vmatprep.subr.mxu0 %v1491
    %1555 = vmatpush1.msra.mxu0 %v1490
    %1556 = vmatprep.subr.mxu0 %v1493
    %1557 = vmatpush1.msra.mxu0 %v1492
    %1558 = vmatprep.subr.mxu0 %v1495
    %1559 = vmatpush1.msra.mxu0 %v1494
    %1560 = vmatprep.mubr.f32.mxu0 %v1431
    %1561 = vmatmul.mubr.f32.gmra.mrb[0].mxu0 %v1428
    %v1562 = vpop.f32.mrb[0].mxu0
    %v1563 = vadd.f32 0.0, %v1562
    %v1564 = vpop.f32.mrb[0].mxu0
    %v1565 = vadd.f32 0.0, %v1564
    %1566 = vdwg.mxu0
    %v1569 = vcombine.low %v1563, %v1565
    %v1571 = vunpack.c.l.s4 1983009808
    %v1572 = vunpack.c.0.s8 %v1571
    %v1573 = vlaneseq
    %v1574 = vshrl.u32 %v1573, 7
    %v1575 = vsub.s32 %v1572, %v1574
    %v1576 = vrot.slane %v1569, %v1575
    %v1578 = vadd.f32 %v53, %v1576
    %v1579 = vld [vmem:[%s9] sm:$0xff]
    %v1580 = vld [vmem:[%s9 + $0x8] sm:$0xff]
    %v1581 = vld [vmem:[%s9 + $0x10] sm:$0xff]
    %v1582 = vld [vmem:[%s9 + $0x18] sm:$0xff]
    %v1583 = vld [vmem:[%s9 + $0x20] sm:$0xff]
    %v1584 = vld [vmem:[%s9 + $0x28] sm:$0xff]
    %v1585 = vld [vmem:[%s9 + $0x30] sm:$0xff]
    %v1586 = vld [vmem:[%s9 + $0x38] sm:$0xff]
    %v1587 = vld [vmem:[%s9 + $0x40] sm:$0xff]
    %v1588 = vld [vmem:[%s9 + $0x48] sm:$0xff]
    %v1589 = vld [vmem:[%s9 + $0x50] sm:$0xff]
    %v1590 = vld [vmem:[%s9 + $0x58] sm:$0xff]
    %v1591 = vld [vmem:[%s9 + $0x60] sm:$0xff]
    %v1592 = vld [vmem:[%s9 + $0x68] sm:$0xff]
    %v1593 = vld [vmem:[%s9 + $0x70] sm:$0xff]
    %v1594 = vld [vmem:[%s9 + $0x78] sm:$0xff]
    %v1595 = vld [vmem:[%s9 + $0x80] sm:$0xff]
    %v1596 = vld [vmem:[%s9 + $0x88] sm:$0xff]
    %v1597 = vld [vmem:[%s9 + $0x90] sm:$0xff]
    %v1598 = vld [vmem:[%s9 + $0x98] sm:$0xff]
    %v1599 = vld [vmem:[%s9 + $0xa0] sm:$0xff]
    %v1600 = vld [vmem:[%s9 + $0xa8] sm:$0xff]
    %v1601 = vld [vmem:[%s9 + $0xb0] sm:$0xff]
    %v1602 = vld [vmem:[%s9 + $0xb8] sm:$0xff]
    %v1603 = vld [vmem:[%s9 + $0xc0] sm:$0xff]
    %v1604 = vld [vmem:[%s9 + $0xc8] sm:$0xff]
    %v1605 = vld [vmem:[%s9 + $0xd0] sm:$0xff]
    %v1606 = vld [vmem:[%s9 + $0xd8] sm:$0xff]
    %v1607 = vld [vmem:[%s9 + $0xe0] sm:$0xff]
    %v1608 = vld [vmem:[%s9 + $0xe8] sm:$0xff]
    %v1609 = vld [vmem:[%s9 + $0xf0] sm:$0xff]
    %v1610 = vld [vmem:[%s9 + $0xf8] sm:$0xff]
    %v1611 = vld [vmem:[%s9 + $0x100] sm:$0xff]
    %v1612 = vld [vmem:[%s9 + $0x108] sm:$0xff]
    %v1613 = vld [vmem:[%s9 + $0x110] sm:$0xff]
    %v1614 = vld [vmem:[%s9 + $0x118] sm:$0xff]
    %v1615 = vld [vmem:[%s9 + $0x120] sm:$0xff]
    %v1616 = vld [vmem:[%s9 + $0x128] sm:$0xff]
    %v1617 = vld [vmem:[%s9 + $0x130] sm:$0xff]
    %v1618 = vld [vmem:[%s9 + $0x138] sm:$0xff]
    %v1619 = vld [vmem:[%s9 + $0x140] sm:$0xff]
    %v1620 = vld [vmem:[%s9 + $0x148] sm:$0xff]
    %v1621 = vld [vmem:[%s9 + $0x150] sm:$0xff]
    %v1622 = vld [vmem:[%s9 + $0x158] sm:$0xff]
    %v1623 = vld [vmem:[%s9 + $0x160] sm:$0xff]
    %v1624 = vld [vmem:[%s9 + $0x168] sm:$0xff]
    %v1625 = vld [vmem:[%s9 + $0x170] sm:$0xff]
    %v1626 = vld [vmem:[%s9 + $0x178] sm:$0xff]
    %v1627 = vld [vmem:[%s9 + $0x180] sm:$0xff]
    %v1628 = vld [vmem:[%s9 + $0x188] sm:$0xff]
    %v1629 = vld [vmem:[%s9 + $0x190] sm:$0xff]
    %v1630 = vld [vmem:[%s9 + $0x198] sm:$0xff]
    %v1631 = vld [vmem:[%s9 + $0x1a0] sm:$0xff]
    %v1632 = vld [vmem:[%s9 + $0x1a8] sm:$0xff]
    %v1633 = vld [vmem:[%s9 + $0x1b0] sm:$0xff]
    %v1634 = vld [vmem:[%s9 + $0x1b8] sm:$0xff]
    %v1635 = vld [vmem:[%s9 + $0x1c0] sm:$0xff]
    %v1636 = vld [vmem:[%s9 + $0x1c8] sm:$0xff]
    %v1637 = vld [vmem:[%s9 + $0x1d0] sm:$0xff]
    %v1638 = vld [vmem:[%s9 + $0x1d8] sm:$0xff]
    %v1639 = vld [vmem:[%s9 + $0x1e0] sm:$0xff]
    %v1640 = vld [vmem:[%s9 + $0x1e8] sm:$0xff]
    %v1641 = vld [vmem:[%s9 + $0x1f0] sm:$0xff]
    %v1642 = vld [vmem:[%s9 + $0x1f8] sm:$0xff]
    %v1645 = vunpack.c.l.s4 1983009808
    %v1646 = vunpack.c.0.s8 %v1645
    %v1647 = vlaneseq
    %v1648 = vshrl.u32 %v1647, 7
    %v1649 = vsub.s32 %v1646, %v1648
    %v1650 = vrot.slane %v1578, %v1649
    %v1651 = vcombine.high %v1650, %v1650
    %1654 = vmatprep.subr.mxu0 %v1580
    %1655 = vmatpush1.msra.mxu0 %v1579
    %1656 = vmatprep.subr.mxu0 %v1582
    %1657 = vmatpush1.msra.mxu0 %v1581
    %1658 = vmatprep.subr.mxu0 %v1584
    %1659 = vmatpush1.msra.mxu0 %v1583
    %1660 = vmatprep.subr.mxu0 %v1586
    %1661 = vmatpush1.msra.mxu0 %v1585
    %1662 = vmatprep.subr.mxu0 %v1588
    %1663 = vmatpush1.msra.mxu0 %v1587
    %1664 = vmatprep.subr.mxu0 %v1590
    %1665 = vmatpush1.msra.mxu0 %v1589
    %1666 = vmatprep.subr.mxu0 %v1592
    %1667 = vmatpush1.msra.mxu0 %v1591
    %1668 = vmatprep.subr.mxu0 %v1594
    %1669 = vmatpush1.msra.mxu0 %v1593
    %1670 = vmatprep.subr.mxu0 %v1596
    %1671 = vmatpush1.msra.mxu0 %v1595
    %1672 = vmatprep.subr.mxu0 %v1598
    %1673 = vmatpush1.msra.mxu0 %v1597
    %1674 = vmatprep.subr.mxu0 %v1600
    %1675 = vmatpush1.msra.mxu0 %v1599
    %1676 = vmatprep.subr.mxu0 %v1602
    %1677 = vmatpush1.msra.mxu0 %v1601
    %1678 = vmatprep.subr.mxu0 %v1604
    %1679 = vmatpush1.msra.mxu0 %v1603
    %1680 = vmatprep.subr.mxu0 %v1606
    %1681 = vmatpush1.msra.mxu0 %v1605
    %1682 = vmatprep.subr.mxu0 %v1608
    %1683 = vmatpush1.msra.mxu0 %v1607
    %1684 = vmatprep.subr.mxu0 %v1610
    %1685 = vmatpush1.msra.mxu0 %v1609
    %1686 = vmatprep.subr.mxu0 %v1612
    %1687 = vmatpush1.msra.mxu0 %v1611
    %1688 = vmatprep.subr.mxu0 %v1614
    %1689 = vmatpush1.msra.mxu0 %v1613
    %1690 = vmatprep.subr.mxu0 %v1616
    %1691 = vmatpush1.msra.mxu0 %v1615
    %1692 = vmatprep.subr.mxu0 %v1618
    %1693 = vmatpush1.msra.mxu0 %v1617
    %1694 = vmatprep.subr.mxu0 %v1620
    %1695 = vmatpush1.msra.mxu0 %v1619
    %1696 = vmatprep.subr.mxu0 %v1622
    %1697 = vmatpush1.msra.mxu0 %v1621
    %1698 = vmatprep.subr.mxu0 %v1624
    %1699 = vmatpush1.msra.mxu0 %v1623
    %1700 = vmatprep.subr.mxu0 %v1626
    %1701 = vmatpush1.msra.mxu0 %v1625
    %1702 = vmatprep.subr.mxu0 %v1628
    %1703 = vmatpush1.msra.mxu0 %v1627
    %1704 = vmatprep.subr.mxu0 %v1630
    %1705 = vmatpush1.msra.mxu0 %v1629
    %1706 = vmatprep.subr.mxu0 %v1632
    %1707 = vmatpush1.msra.mxu0 %v1631
    %1708 = vmatprep.subr.mxu0 %v1634
    %1709 = vmatpush1.msra.mxu0 %v1633
    %1710 = vmatprep.subr.mxu0 %v1636
    %1711 = vmatpush1.msra.mxu0 %v1635
    %1712 = vmatprep.subr.mxu0 %v1638
    %1713 = vmatpush1.msra.mxu0 %v1637
    %1714 = vmatprep.subr.mxu0 %v1640
    %1715 = vmatpush1.msra.mxu0 %v1639
    %1716 = vmatprep.subr.mxu0 %v1642
    %1717 = vmatpush1.msra.mxu0 %v1641
    %1718 = vmatprep.mubr.f32.mxu0 %v1651
    %1719 = vmatmul.mubr.f32.gmra.mrb[0].mxu0 %v1650
    %v1720 = vpop.f32.mrb[0].mxu0
    %v1721 = vadd.f32 0.0, %v1720
    %v1722 = vpop.f32.mrb[0].mxu0
    %v1723 = vadd.f32 0.0, %v1722
    %1724 = vdwg.mxu0
    %v1725 = vsel %vm583, %v1721, 0.0
    %v1726 = vsel %vm583, %v1723, 0.0
    %v1727 = vrot.slane %v1721, 1
    %v1728 = vsel %vm583, %v1727, 0.0
    %v1729 = vrot.slane %v1723, 1
    %v1730 = vsel %vm583, %v1729, 0.0
    %v1731 = vld [vmem:[%s4] sm:$0xff]
    %v1732 = vld [vmem:[%s4 + $0x8] sm:$0xff]
    %v1733 = vld [vmem:[%s4 + $0x10] sm:$0xff]
    %v1734 = vld [vmem:[%s4 + $0x18] sm:$0xff]
    %1735 = vmatprep.subr.mxu0 0.0
    %1736 = vmatpush1.xpose.msra.mxu0 %v1731
    %1737 = vmatprep.subr.mxu0 0.0
    %1738 = vmatpush1.xpose.msra.mxu0 0.0
    %1739 = vmatprep.subr.mxu0 0.0
    %1740 = vmatpush1.xpose.msra.mxu0 0.0
    %1741 = vmatprep.subr.mxu0 0.0
    %1742 = vmatpush1.xpose.msra.mxu0 0.0
    %1743 = vmatprep.subr.mxu0 0.0
    %1744 = vmatpush1.xpose.msra.mxu0 0.0
    %1745 = vmatprep.subr.mxu0 0.0
    %1746 = vmatpush1.xpose.msra.mxu0 0.0
    %1747 = vmatprep.subr.mxu0 0.0
    %1748 = vmatpush1.xpose.msra.mxu0 0.0
    %1749 = vmatprep.subr.mxu0 0.0
    %1750 = vmatpush1.xpose.msra.mxu0 0.0
    %1751 = vmatprep.subr.mxu0 0.0
    %1752 = vmatpush1.xpose.msra.mxu0 0.0
    %1753 = vmatprep.subr.mxu0 0.0
    %1754 = vmatpush1.xpose.msra.mxu0 0.0
    %1755 = vmatprep.subr.mxu0 0.0
    %1756 = vmatpush1.xpose.msra.mxu0 0.0
    %1757 = vmatprep.subr.mxu0 0.0
    %1758 = vmatpush1.xpose.msra.mxu0 0.0
    %1759 = vmatprep.subr.mxu0 0.0
    %1760 = vmatpush1.xpose.msra.mxu0 0.0
    %1761 = vmatprep.subr.mxu0 0.0
    %1762 = vmatpush1.xpose.msra.mxu0 0.0
    %1763 = vmatprep.subr.mxu0 0.0
    %1764 = vmatpush1.xpose.msra.mxu0 0.0
    %1765 = vmatprep.subr.mxu0 0.0
    %1766 = vmatpush1.xpose.msra.mxu0 0.0
    %1767 = vmatprep.subr.mxu0 0.0
    %1768 = vmatpush1.xpose.msra.mxu0 0.0
    %1769 = vmatprep.subr.mxu0 0.0
    %1770 = vmatpush1.xpose.msra.mxu0 0.0
    %1771 = vmatprep.subr.mxu0 0.0
    %1772 = vmatpush1.xpose.msra.mxu0 0.0
    %1773 = vmatprep.subr.mxu0 0.0
    %1774 = vmatpush1.xpose.msra.mxu0 0.0
    %1775 = vmatprep.subr.mxu0 0.0
    %1776 = vmatpush1.xpose.msra.mxu0 0.0
    %1777 = vmatprep.subr.mxu0 0.0
    %1778 = vmatpush1.xpose.msra.mxu0 0.0
    %1779 = vmatprep.subr.mxu0 0.0
    %1780 = vmatpush1.xpose.msra.mxu0 0.0
    %1781 = vmatprep.subr.mxu0 0.0
    %1782 = vmatpush1.xpose.msra.mxu0 0.0
    %1783 = vmatprep.subr.mxu0 0.0
    %1784 = vmatpush1.xpose.msra.mxu0 0.0
    %1785 = vmatprep.subr.mxu0 0.0
    %1786 = vmatpush1.xpose.msra.mxu0 0.0
    %1787 = vmatprep.subr.mxu0 0.0
    %1788 = vmatpush1.xpose.msra.mxu0 0.0
    %1789 = vmatprep.subr.mxu0 0.0
    %1790 = vmatpush1.xpose.msra.mxu0 0.0
    %1791 = vmatprep.subr.mxu0 0.0
    %1792 = vmatpush1.xpose.msra.mxu0 0.0
    %1793 = vmatprep.subr.mxu0 0.0
    %1794 = vmatpush1.xpose.msra.mxu0 0.0
    %1795 = vmatprep.subr.mxu0 0.0
    %1796 = vmatpush1.xpose.msra.mxu0 0.0
    %1797 = vmatprep.subr.mxu0 0.0
    %1798 = vmatpush1.xpose.msra.mxu0 0.0
    %1799 = vmatprep.mubr.f32.mxu0 0.0
    %1800 = vmatmul.mubr.f32.gmra.mrb[0].mxu0 %v1725
    %v1801 = vpop.f32.mrb[0].mxu0
    %v1802 = vadd.f32 0.0, %v1801
    %v1803 = vpop.f32.mrb[0].mxu0
    %1804 = vdwg.mxu0
    %1805 = vmatprep.subr.mxu0 0.0
    %1806 = vmatpush1.xpose.msra.mxu0 %v1732
    %1807 = vmatprep.subr.mxu0 0.0
    %1808 = vmatpush1.xpose.msra.mxu0 0.0
    %1809 = vmatprep.subr.mxu0 0.0
    %1810 = vmatpush1.xpose.msra.mxu0 0.0
    %1811 = vmatprep.subr.mxu0 0.0
    %1812 = vmatpush1.xpose.msra.mxu0 0.0
    %1813 = vmatprep.subr.mxu0 0.0
    %1814 = vmatpush1.xpose.msra.mxu0 0.0
    %1815 = vmatprep.subr.mxu0 0.0
    %1816 = vmatpush1.xpose.msra.mxu0 0.0
    %1817 = vmatprep.subr.mxu0 0.0
    %1818 = vmatpush1.xpose.msra.mxu0 0.0
    %1819 = vmatprep.subr.mxu0 0.0
    %1820 = vmatpush1.xpose.msra.mxu0 0.0
    %1821 = vmatprep.subr.mxu0 0.0
    %1822 = vmatpush1.xpose.msra.mxu0 0.0
    %1823 = vmatprep.subr.mxu0 0.0
    %1824 = vmatpush1.xpose.msra.mxu0 0.0
    %1825 = vmatprep.subr.mxu0 0.0
    %1826 = vmatpush1.xpose.msra.mxu0 0.0
    %1827 = vmatprep.subr.mxu0 0.0
    %1828 = vmatpush1.xpose.msra.mxu0 0.0
    %1829 = vmatprep.subr.mxu0 0.0
    %1830 = vmatpush1.xpose.msra.mxu0 0.0
    %1831 = vmatprep.subr.mxu0 0.0
    %1832 = vmatpush1.xpose.msra.mxu0 0.0
    %1833 = vmatprep.subr.mxu0 0.0
    %1834 = vmatpush1.xpose.msra.mxu0 0.0
    %1835 = vmatprep.subr.mxu0 0.0
    %1836 = vmatpush1.xpose.msra.mxu0 0.0
    %1837 = vmatprep.subr.mxu0 0.0
    %1838 = vmatpush1.xpose.msra.mxu0 0.0
    %1839 = vmatprep.subr.mxu0 0.0
    %1840 = vmatpush1.xpose.msra.mxu0 0.0
    %1841 = vmatprep.subr.mxu0 0.0
    %1842 = vmatpush1.xpose.msra.mxu0 0.0
    %1843 = vmatprep.subr.mxu0 0.0
    %1844 = vmatpush1.xpose.msra.mxu0 0.0
    %1845 = vmatprep.subr.mxu0 0.0
    %1846 = vmatpush1.xpose.msra.mxu0 0.0
    %1847 = vmatprep.subr.mxu0 0.0
    %1848 = vmatpush1.xpose.msra.mxu0 0.0
    %1849 = vmatprep.subr.mxu0 0.0
    %1850 = vmatpush1.xpose.msra.mxu0 0.0
    %1851 = vmatprep.subr.mxu0 0.0
    %1852 = vmatpush1.xpose.msra.mxu0 0.0
    %1853 = vmatprep.subr.mxu0 0.0
    %1854 = vmatpush1.xpose.msra.mxu0 0.0
    %1855 = vmatprep.subr.mxu0 0.0
    %1856 = vmatpush1.xpose.msra.mxu0 0.0
    %1857 = vmatprep.subr.mxu0 0.0
    %1858 = vmatpush1.xpose.msra.mxu0 0.0
    %1859 = vmatprep.subr.mxu0 0.0
    %1860 = vmatpush1.xpose.msra.mxu0 0.0
    %1861 = vmatprep.subr.mxu0 0.0
    %1862 = vmatpush1.xpose.msra.mxu0 0.0
    %1863 = vmatprep.subr.mxu0 0.0
    %1864 = vmatpush1.xpose.msra.mxu0 0.0
    %1865 = vmatprep.subr.mxu0 0.0
    %1866 = vmatpush1.xpose.msra.mxu0 0.0
    %1867 = vmatprep.subr.mxu0 0.0
    %1868 = vmatpush1.xpose.msra.mxu0 0.0
    %1869 = vmatprep.mubr.f32.mxu0 0.0
    %1870 = vmatmul.mubr.f32.gmra.mrb[0].mxu0 %v1726
    %v1871 = vpop.f32.mrb[0].mxu0
    %v1872 = vadd.f32 0.0, %v1871
    %v1873 = vpop.f32.mrb[0].mxu0
    %1874 = vdwg.mxu0
    %1875 = vmatprep.subr.mxu0 0.0
    %1876 = vmatpush1.xpose.msra.mxu0 %v1733
    %1877 = vmatprep.subr.mxu0 0.0
    %1878 = vmatpush1.xpose.msra.mxu0 0.0
    %1879 = vmatprep.subr.mxu0 0.0
    %1880 = vmatpush1.xpose.msra.mxu0 0.0
    %1881 = vmatprep.subr.mxu0 0.0
    %1882 = vmatpush1.xpose.msra.mxu0 0.0
    %1883 = vmatprep.subr.mxu0 0.0
    %1884 = vmatpush1.xpose.msra.mxu0 0.0
    %1885 = vmatprep.subr.mxu0 0.0
    %1886 = vmatpush1.xpose.msra.mxu0 0.0
    %1887 = vmatprep.subr.mxu0 0.0
    %1888 = vmatpush1.xpose.msra.mxu0 0.0
    %1889 = vmatprep.subr.mxu0 0.0
    %1890 = vmatpush1.xpose.msra.mxu0 0.0
    %1891 = vmatprep.subr.mxu0 0.0
    %1892 = vmatpush1.xpose.msra.mxu0 0.0
    %1893 = vmatprep.subr.mxu0 0.0
    %1894 = vmatpush1.xpose.msra.mxu0 0.0
    %1895 = vmatprep.subr.mxu0 0.0
    %1896 = vmatpush1.xpose.msra.mxu0 0.0
    %1897 = vmatprep.subr.mxu0 0.0
    %1898 = vmatpush1.xpose.msra.mxu0 0.0
    %1899 = vmatprep.subr.mxu0 0.0
    %1900 = vmatpush1.xpose.msra.mxu0 0.0
    %1901 = vmatprep.subr.mxu0 0.0
    %1902 = vmatpush1.xpose.msra.mxu0 0.0
    %1903 = vmatprep.subr.mxu0 0.0
    %1904 = vmatpush1.xpose.msra.mxu0 0.0
    %1905 = vmatprep.subr.mxu0 0.0
    %1906 = vmatpush1.xpose.msra.mxu0 0.0
    %1907 = vmatprep.subr.mxu0 0.0
    %1908 = vmatpush1.xpose.msra.mxu0 0.0
    %1909 = vmatprep.subr.mxu0 0.0
    %1910 = vmatpush1.xpose.msra.mxu0 0.0
    %1911 = vmatprep.subr.mxu0 0.0
    %1912 = vmatpush1.xpose.msra.mxu0 0.0
    %1913 = vmatprep.subr.mxu0 0.0
    %1914 = vmatpush1.xpose.msra.mxu0 0.0
    %1915 = vmatprep.subr.mxu0 0.0
    %1916 = vmatpush1.xpose.msra.mxu0 0.0
    %1917 = vmatprep.subr.mxu0 0.0
    %1918 = vmatpush1.xpose.msra.mxu0 0.0
    %1919 = vmatprep.subr.mxu0 0.0
    %1920 = vmatpush1.xpose.msra.mxu0 0.0
    %1921 = vmatprep.subr.mxu0 0.0
    %1922 = vmatpush1.xpose.msra.mxu0 0.0
    %1923 = vmatprep.subr.mxu0 0.0
    %1924 = vmatpush1.xpose.msra.mxu0 0.0
    %1925 = vmatprep.subr.mxu0 0.0
    %1926 = vmatpush1.xpose.msra.mxu0 0.0
    %1927 = vmatprep.subr.mxu0 0.0
    %1928 = vmatpush1.xpose.msra.mxu0 0.0
    %1929 = vmatprep.subr.mxu0 0.0
    %1930 = vmatpush1.xpose.msra.mxu0 0.0
    %1931 = vmatprep.subr.mxu0 0.0
    %1932 = vmatpush1.xpose.msra.mxu0 0.0
    %1933 = vmatprep.subr.mxu0 0.0
    %1934 = vmatpush1.xpose.msra.mxu0 0.0
    %1935 = vmatprep.subr.mxu0 0.0
    %1936 = vmatpush1.xpose.msra.mxu0 0.0
    %1937 = vmatprep.subr.mxu0 0.0
    %1938 = vmatpush1.xpose.msra.mxu0 0.0
    %1939 = vmatprep.mubr.f32.mxu0 0.0
    %1940 = vmatmul.mubr.f32.gmra.mrb[0].mxu0 %v1728
    %v1941 = vpop.f32.mrb[0].mxu0
    %v1942 = vadd.f32 0.0, %v1941
    %v1943 = vpop.f32.mrb[0].mxu0
    %1944 = vdwg.mxu0
    %1945 = vmatprep.subr.mxu0 0.0
    %1946 = vmatpush1.xpose.msra.mxu0 %v1734
    %1947 = vmatprep.subr.mxu0 0.0
    %1948 = vmatpush1.xpose.msra.mxu0 0.0
    %1949 = vmatprep.subr.mxu0 0.0
    %1950 = vmatpush1.xpose.msra.mxu0 0.0
    %1951 = vmatprep.subr.mxu0 0.0
    %1952 = vmatpush1.xpose.msra.mxu0 0.0
    %1953 = vmatprep.subr.mxu0 0.0
    %1954 = vmatpush1.xpose.msra.mxu0 0.0
    %1955 = vmatprep.subr.mxu0 0.0
    %1956 = vmatpush1.xpose.msra.mxu0 0.0
    %1957 = vmatprep.subr.mxu0 0.0
    %1958 = vmatpush1.xpose.msra.mxu0 0.0
    %1959 = vmatprep.subr.mxu0 0.0
    %1960 = vmatpush1.xpose.msra.mxu0 0.0
    %1961 = vmatprep.subr.mxu0 0.0
    %1962 = vmatpush1.xpose.msra.mxu0 0.0
    %1963 = vmatprep.subr.mxu0 0.0
    %1964 = vmatpush1.xpose.msra.mxu0 0.0
    %1965 = vmatprep.subr.mxu0 0.0
    %1966 = vmatpush1.xpose.msra.mxu0 0.0
    %1967 = vmatprep.subr.mxu0 0.0
    %1968 = vmatpush1.xpose.msra.mxu0 0.0
    %1969 = vmatprep.subr.mxu0 0.0
    %1970 = vmatpush1.xpose.msra.mxu0 0.0
    %1971 = vmatprep.subr.mxu0 0.0
    %1972 = vmatpush1.xpose.msra.mxu0 0.0
    %1973 = vmatprep.subr.mxu0 0.0
    %1974 = vmatpush1.xpose.msra.mxu0 0.0
    %1975 = vmatprep.subr.mxu0 0.0
    %1976 = vmatpush1.xpose.msra.mxu0 0.0
    %1977 = vmatprep.subr.mxu0 0.0
    %1978 = vmatpush1.xpose.msra.mxu0 0.0
    %1979 = vmatprep.subr.mxu0 0.0
    %1980 = vmatpush1.xpose.msra.mxu0 0.0
    %1981 = vmatprep.subr.mxu0 0.0
    %1982 = vmatpush1.xpose.msra.mxu0 0.0
    %1983 = vmatprep.subr.mxu0 0.0
    %1984 = vmatpush1.xpose.msra.mxu0 0.0
    %1985 = vmatprep.subr.mxu0 0.0
    %1986 = vmatpush1.xpose.msra.mxu0 0.0
    %1987 = vmatprep.subr.mxu0 0.0
    %1988 = vmatpush1.xpose.msra.mxu0 0.0
    %1989 = vmatprep.subr.mxu0 0.0
    %1990 = vmatpush1.xpose.msra.mxu0 0.0
    %1991 = vmatprep.subr.mxu0 0.0
    %1992 = vmatpush1.xpose.msra.mxu0 0.0
    %1993 = vmatprep.subr.mxu0 0.0
    %1994 = vmatpush1.xpose.msra.mxu0 0.0
    %1995 = vmatprep.subr.mxu0 0.0
    %1996 = vmatpush1.xpose.msra.mxu0 0.0
    %1997 = vmatprep.subr.mxu0 0.0
    %1998 = vmatpush1.xpose.msra.mxu0 0.0
    %1999 = vmatprep.subr.mxu0 0.0
    %2000 = vmatpush1.xpose.msra.mxu0 0.0
    %2001 = vmatprep.subr.mxu0 0.0
    %2002 = vmatpush1.xpose.msra.mxu0 0.0
    %2003 = vmatprep.subr.mxu0 0.0
    %2004 = vmatpush1.xpose.msra.mxu0 0.0
    %2005 = vmatprep.subr.mxu0 0.0
    %2006 = vmatpush1.xpose.msra.mxu0 0.0
    %2007 = vmatprep.subr.mxu0 0.0
    %2008 = vmatpush1.xpose.msra.mxu0 0.0
    %2009 = vmatprep.mubr.f32.mxu0 0.0
    %2010 = vmatmul.mubr.f32.gmra.mrb[0].mxu0 %v1730
    %v2011 = vpop.f32.mrb[0].mxu0
    %v2012 = vadd.f32 0.0, %v2011
    %v2013 = vpop.f32.mrb[0].mxu0
    %2014 = vdwg.mxu0
    %v2015 = vmul.f32 %v1802, 0.088388346
    %v2016 = vmul.f32 %v1872, 0.088388346
    %v2017 = vmul.f32 %v1942, 0.088388346
    %v2018 = vmul.f32 %v2012, 0.088388346
    %v2019 = vld [vmem:[%s6] sm:$0xf]
    %v2022 = vunpack.c.l.s4 1966171168
    %v2023 = vunpack.c.0.s8 %v2022
    %v2024 = vlaneseq
    %v2025 = vshrl.u32 %v2024, 7
    %v2026 = vsub.s32 %v2023, %v2025
    %v2027 = vrot.slane %v2019, %v2026
    %v2028 = vcombine.high %v2027, %v2027
    %v2030 = vunpack.c.l.s4 1966171168
    %v2031 = vunpack.c.0.s8 %v2030
    %v2032 = vlaneseq
    %v2033 = vshrl.u32 %v2032, 7
    %v2034 = vsub.s32 %v2031, %v2033
    %v2035 = vrot.slane %v2027, %v2034
    %v2037 = vunpack.c.l.s4 1966171168
    %v2038 = vunpack.c.0.s8 %v2037
    %v2039 = vlaneseq
    %v2040 = vshrl.u32 %v2039, 7
    %v2041 = vsub.s32 %v2038, %v2040
    %v2042 = vrot.slane %v2028, %v2041
    %v2043 = vcombine.high %v2035, %v2035
    %v2044 = vcombine.high %v2042, %v2042
    %vm2049 = vcmp.gt.f32.partialorder %v2035, 0.5
    %vm2050 = vcmp.gt.f32.partialorder %v2042, 0.5
    %vm2051 = vcmp.gt.f32.partialorder %v2043, 0.5
    %vm2052 = vcmp.gt.f32.partialorder %v2044, 0.5
    %v2053 = vsel %vm2049, %v2015, -1e+30
    %v2054 = vsel %vm2050, %v2016, -1e+30
    %v2055 = vsel %vm2051, %v2017, -1e+30
    %v2056 = vsel %vm2052, %v2018, -1e+30
    %vm2057 = vcmask 57344
    %v2058 = vsel %vm2057, %v2053, -inf
    %2059 = vmax.xlane.f32.xlu0 %v2058
    %v2060 = vpop.xlane.xlu0 %2059
    %v2061 = vsel %vm2057, %v2054, -inf
    %2062 = vmax.xlane.f32.xlu0 %v2061
    %v2063 = vpop.xlane.xlu0 %2062
    %v2064 = vsel %vm2057, %v2055, -inf
    %2065 = vmax.xlane.f32.xlu0 %v2064
    %v2066 = vpop.xlane.xlu0 %2065
    %v2067 = vsel %vm2057, %v2056, -inf
    %2068 = vmax.xlane.f32.xlu0 %v2067
    %v2069 = vpop.xlane.xlu0 %2068
    %v2070 = vsub.f32 %v2053, %v2060
    %v2071 = vsub.f32 %v2054, %v2063
    %v2072 = vsub.f32 %v2055, %v2066
    %v2073 = vsub.f32 %v2056, %v2069
    %v2074 = vmul.f32 %v2070, 1.442695
    %v2075 = vpow.pop %v2074
    %v2076 = vmul.f32 %v2071, 1.442695
    %v2077 = vpow.pop %v2076
    %v2078 = vmul.f32 %v2072, 1.442695
    %v2079 = vpow.pop %v2078
    %v2080 = vmul.f32 %v2073, 1.442695
    %v2081 = vpow.pop %v2080
    %v2082 = vsel %vm2049, 1, 0
    %v2083 = vsel %vm2050, 1, 0
    %v2084 = vsel %vm2051, 1, 0
    %v2085 = vsel %vm2052, 1, 0
    %v2086 = vcvt.s32.f32 %v2082
    %v2087 = vcvt.s32.f32 %v2083
    %v2088 = vcvt.s32.f32 %v2084
    %v2089 = vcvt.s32.f32 %v2085
    %v2090 = vmul.f32 %v2075, %v2086
    %v2091 = vmul.f32 %v2077, %v2087
    %v2092 = vmul.f32 %v2079, %v2088
    %v2093 = vmul.f32 %v2081, %v2089
    %v2094 = vsel %vm2057, %v2090, 0.0
    %2095 = vadd.xlane.f32.xlu0 %v2094
    %v2096 = vpop.xlane.xlu0 %2095
    %v2097 = vsel %vm2057, %v2091, 0.0
    %2098 = vadd.xlane.f32.xlu0 %v2097
    %v2099 = vpop.xlane.xlu0 %2098
    %v2100 = vsel %vm2057, %v2092, 0.0
    %2101 = vadd.xlane.f32.xlu0 %v2100
    %v2102 = vpop.xlane.xlu0 %2101
    %v2103 = vsel %vm2057, %v2093, 0.0
    %2104 = vadd.xlane.f32.xlu0 %v2103
    %v2105 = vpop.xlane.xlu0 %2104
    %v2106 = vmax.f32 %v2096, 1e-20
    %v2107 = vmax.f32 %v2099, 1e-20
    %v2108 = vmax.f32 %v2102, 1e-20
    %v2109 = vmax.f32 %v2105, 1e-20
    %v2110 = vrcp.pop %v2106
    %v2111 = vrcp.pop %v2107
    %v2112 = vrcp.pop %v2108
    %v2113 = vrcp.pop %v2109
    %v2114 = vmul.f32 %v2090, %v2110
    %v2115 = vmul.f32 %v2091, %v2111
    %v2116 = vmul.f32 %v2092, %v2112
    %v2117 = vmul.f32 %v2093, %v2113
    %v2118 = vld [vmem:[%s5] sm:$0xff]
    %v2119 = vld [vmem:[%s5 + $0x8] sm:$0xff]
    %v2120 = vld [vmem:[%s5 + $0x10] sm:$0xff]
    %v2121 = vld [vmem:[%s5 + $0x18] sm:$0xff]
    %vm2122 = vcmask 64512
    %v2124 = vsel %vm2122, %v2114, 0
    %2126 = vmatprep.subr.mxu0 0.0
    %2127 = vmatpush1.msra.mxu0 %v2118
    %2128 = vmatprep.subr.mxu0 0.0
    %2129 = vmatpush1.msra.mxu0 0.0
    %2130 = vmatprep.subr.mxu0 0.0
    %2131 = vmatpush1.msra.mxu0 0.0
    %2132 = vmatprep.subr.mxu0 0.0
    %2133 = vmatpush1.msra.mxu0 0.0
    %2134 = vmatprep.subr.mxu0 0.0
    %2135 = vmatpush1.msra.mxu0 0.0
    %2136 = vmatprep.subr.mxu0 0.0
    %2137 = vmatpush1.msra.mxu0 0.0
    %2138 = vmatprep.subr.mxu0 0.0
    %2139 = vmatpush1.msra.mxu0 0.0
    %2140 = vmatprep.subr.mxu0 0.0
    %2141 = vmatpush1.msra.mxu0 0.0
    %2142 = vmatprep.subr.mxu0 0.0
    %2143 = vmatpush1.msra.mxu0 0.0
    %2144 = vmatprep.subr.mxu0 0.0
    %2145 = vmatpush1.msra.mxu0 0.0
    %2146 = vmatprep.subr.mxu0 0.0
    %2147 = vmatpush1.msra.mxu0 0.0
    %2148 = vmatprep.subr.mxu0 0.0
    %2149 = vmatpush1.msra.mxu0 0.0
    %2150 = vmatprep.subr.mxu0 0.0
    %2151 = vmatpush1.msra.mxu0 0.0
    %2152 = vmatprep.subr.mxu0 0.0
    %2153 = vmatpush1.msra.mxu0 0.0
    %2154 = vmatprep.subr.mxu0 0.0
    %2155 = vmatpush1.msra.mxu0 0.0
    %2156 = vmatprep.subr.mxu0 0.0
    %2157 = vmatpush1.msra.mxu0 0.0
    %2158 = vmatprep.subr.mxu0 0.0
    %2159 = vmatpush1.msra.mxu0 0.0
    %2160 = vmatprep.subr.mxu0 0.0
    %2161 = vmatpush1.msra.mxu0 0.0
    %2162 = vmatprep.subr.mxu0 0.0
    %2163 = vmatpush1.msra.mxu0 0.0
    %2164 = vmatprep.subr.mxu0 0.0
    %2165 = vmatpush1.msra.mxu0 0.0
    %2166 = vmatprep.subr.mxu0 0.0
    %2167 = vmatpush1.msra.mxu0 0.0
    %2168 = vmatprep.subr.mxu0 0.0
    %2169 = vmatpush1.msra.mxu0 0.0
    %2170 = vmatprep.subr.mxu0 0.0
    %2171 = vmatpush1.msra.mxu0 0.0
    %2172 = vmatprep.subr.mxu0 0.0
    %2173 = vmatpush1.msra.mxu0 0.0
    %2174 = vmatprep.subr.mxu0 0.0
    %2175 = vmatpush1.msra.mxu0 0.0
    %2176 = vmatprep.subr.mxu0 0.0
    %2177 = vmatpush1.msra.mxu0 0.0
    %2178 = vmatprep.subr.mxu0 0.0
    %2179 = vmatpush1.msra.mxu0 0.0
    %2180 = vmatprep.subr.mxu0 0.0
    %2181 = vmatpush1.msra.mxu0 0.0
    %2182 = vmatprep.subr.mxu0 0.0
    %2183 = vmatpush1.msra.mxu0 0.0
    %2184 = vmatprep.subr.mxu0 0.0
    %2185 = vmatpush1.msra.mxu0 0.0
    %2186 = vmatprep.subr.mxu0 0.0
    %2187 = vmatpush1.msra.mxu0 0.0
    %2188 = vmatprep.subr.mxu0 0.0
    %2189 = vmatpush1.msra.mxu0 0.0
    %2190 = vmatprep.mubr.f32.mxu0 0.0
    %2191 = vmatmul.mubr.f32.gmra.mrb[0].mxu0 %v2124
    %v2192 = vpop.f32.mrb[0].mxu0
    %v2193 = vadd.f32 0.0, %v2192
    %v2194 = vpop.f32.mrb[0].mxu0
    %2195 = vdwg.mxu0
    %v2197 = vsel %vm2122, %v2115, 0
    %2199 = vmatprep.subr.mxu0 0.0
    %2200 = vmatpush1.msra.mxu0 %v2119
    %2201 = vmatprep.subr.mxu0 0.0
    %2202 = vmatpush1.msra.mxu0 0.0
    %2203 = vmatprep.subr.mxu0 0.0
    %2204 = vmatpush1.msra.mxu0 0.0
    %2205 = vmatprep.subr.mxu0 0.0
    %2206 = vmatpush1.msra.mxu0 0.0
    %2207 = vmatprep.subr.mxu0 0.0
    %2208 = vmatpush1.msra.mxu0 0.0
    %2209 = vmatprep.subr.mxu0 0.0
    %2210 = vmatpush1.msra.mxu0 0.0
    %2211 = vmatprep.subr.mxu0 0.0
    %2212 = vmatpush1.msra.mxu0 0.0
    %2213 = vmatprep.subr.mxu0 0.0
    %2214 = vmatpush1.msra.mxu0 0.0
    %2215 = vmatprep.subr.mxu0 0.0
    %2216 = vmatpush1.msra.mxu0 0.0
    %2217 = vmatprep.subr.mxu0 0.0
    %2218 = vmatpush1.msra.mxu0 0.0
    %2219 = vmatprep.subr.mxu0 0.0
    %2220 = vmatpush1.msra.mxu0 0.0
    %2221 = vmatprep.subr.mxu0 0.0
    %2222 = vmatpush1.msra.mxu0 0.0
    %2223 = vmatprep.subr.mxu0 0.0
    %2224 = vmatpush1.msra.mxu0 0.0
    %2225 = vmatprep.subr.mxu0 0.0
    %2226 = vmatpush1.msra.mxu0 0.0
    %2227 = vmatprep.subr.mxu0 0.0
    %2228 = vmatpush1.msra.mxu0 0.0
    %2229 = vmatprep.subr.mxu0 0.0
    %2230 = vmatpush1.msra.mxu0 0.0
    %2231 = vmatprep.subr.mxu0 0.0
    %2232 = vmatpush1.msra.mxu0 0.0
    %2233 = vmatprep.subr.mxu0 0.0
    %2234 = vmatpush1.msra.mxu0 0.0
    %2235 = vmatprep.subr.mxu0 0.0
    %2236 = vmatpush1.msra.mxu0 0.0
    %2237 = vmatprep.subr.mxu0 0.0
    %2238 = vmatpush1.msra.mxu0 0.0
    %2239 = vmatprep.subr.mxu0 0.0
    %2240 = vmatpush1.msra.mxu0 0.0
    %2241 = vmatprep.subr.mxu0 0.0
    %2242 = vmatpush1.msra.mxu0 0.0
    %2243 = vmatprep.subr.mxu0 0.0
    %2244 = vmatpush1.msra.mxu0 0.0
    %2245 = vmatprep.subr.mxu0 0.0
    %2246 = vmatpush1.msra.mxu0 0.0
    %2247 = vmatprep.subr.mxu0 0.0
    %2248 = vmatpush1.msra.mxu0 0.0
    %2249 = vmatprep.subr.mxu0 0.0
    %2250 = vmatpush1.msra.mxu0 0.0
    %2251 = vmatprep.subr.mxu0 0.0
    %2252 = vmatpush1.msra.mxu0 0.0
    %2253 = vmatprep.subr.mxu0 0.0
    %2254 = vmatpush1.msra.mxu0 0.0
    %2255 = vmatprep.subr.mxu0 0.0
    %2256 = vmatpush1.msra.mxu0 0.0
    %2257 = vmatprep.subr.mxu0 0.0
    %2258 = vmatpush1.msra.mxu0 0.0
    %2259 = vmatprep.subr.mxu0 0.0
    %2260 = vmatpush1.msra.mxu0 0.0
    %2261 = vmatprep.subr.mxu0 0.0
    %2262 = vmatpush1.msra.mxu0 0.0
    %2263 = vmatprep.mubr.f32.mxu0 0.0
    %2264 = vmatmul.mubr.f32.gmra.mrb[0].mxu0 %v2197
    %v2265 = vpop.f32.mrb[0].mxu0
    %v2266 = vadd.f32 0.0, %v2265
    %v2267 = vpop.f32.mrb[0].mxu0
    %2268 = vdwg.mxu0
    %v2270 = vsel %vm2122, %v2116, 0
    %2272 = vmatprep.subr.mxu0 0.0
    %2273 = vmatpush1.msra.mxu0 %v2120
    %2274 = vmatprep.subr.mxu0 0.0
    %2275 = vmatpush1.msra.mxu0 0.0
    %2276 = vmatprep.subr.mxu0 0.0
    %2277 = vmatpush1.msra.mxu0 0.0
    %2278 = vmatprep.subr.mxu0 0.0
    %2279 = vmatpush1.msra.mxu0 0.0
    %2280 = vmatprep.subr.mxu0 0.0
    %2281 = vmatpush1.msra.mxu0 0.0
    %2282 = vmatprep.subr.mxu0 0.0
    %2283 = vmatpush1.msra.mxu0 0.0
    %2284 = vmatprep.subr.mxu0 0.0
    %2285 = vmatpush1.msra.mxu0 0.0
    %2286 = vmatprep.subr.mxu0 0.0
    %2287 = vmatpush1.msra.mxu0 0.0
    %2288 = vmatprep.subr.mxu0 0.0
    %2289 = vmatpush1.msra.mxu0 0.0
    %2290 = vmatprep.subr.mxu0 0.0
    %2291 = vmatpush1.msra.mxu0 0.0
    %2292 = vmatprep.subr.mxu0 0.0
    %2293 = vmatpush1.msra.mxu0 0.0
    %2294 = vmatprep.subr.mxu0 0.0
    %2295 = vmatpush1.msra.mxu0 0.0
    %2296 = vmatprep.subr.mxu0 0.0
    %2297 = vmatpush1.msra.mxu0 0.0
    %2298 = vmatprep.subr.mxu0 0.0
    %2299 = vmatpush1.msra.mxu0 0.0
    %2300 = vmatprep.subr.mxu0 0.0
    %2301 = vmatpush1.msra.mxu0 0.0
    %2302 = vmatprep.subr.mxu0 0.0
    %2303 = vmatpush1.msra.mxu0 0.0
    %2304 = vmatprep.subr.mxu0 0.0
    %2305 = vmatpush1.msra.mxu0 0.0
    %2306 = vmatprep.subr.mxu0 0.0
    %2307 = vmatpush1.msra.mxu0 0.0
    %2308 = vmatprep.subr.mxu0 0.0
    %2309 = vmatpush1.msra.mxu0 0.0
    %2310 = vmatprep.subr.mxu0 0.0
    %2311 = vmatpush1.msra.mxu0 0.0
    %2312 = vmatprep.subr.mxu0 0.0
    %2313 = vmatpush1.msra.mxu0 0.0
    %2314 = vmatprep.subr.mxu0 0.0
    %2315 = vmatpush1.msra.mxu0 0.0
    %2316 = vmatprep.subr.mxu0 0.0
    %2317 = vmatpush1.msra.mxu0 0.0
    %2318 = vmatprep.subr.mxu0 0.0
    %2319 = vmatpush1.msra.mxu0 0.0
    %2320 = vmatprep.subr.mxu0 0.0
    %2321 = vmatpush1.msra.mxu0 0.0
    %2322 = vmatprep.subr.mxu0 0.0
    %2323 = vmatpush1.msra.mxu0 0.0
    %2324 = vmatprep.subr.mxu0 0.0
    %2325 = vmatpush1.msra.mxu0 0.0
    %2326 = vmatprep.subr.mxu0 0.0
    %2327 = vmatpush1.msra.mxu0 0.0
    %2328 = vmatprep.subr.mxu0 0.0
    %2329 = vmatpush1.msra.mxu0 0.0
    %2330 = vmatprep.subr.mxu0 0.0
    %2331 = vmatpush1.msra.mxu0 0.0
    %2332 = vmatprep.subr.mxu0 0.0
    %2333 = vmatpush1.msra.mxu0 0.0
    %2334 = vmatprep.subr.mxu0 0.0
    %2335 = vmatpush1.msra.mxu0 0.0
    %2336 = vmatprep.mubr.f32.mxu0 0.0
    %2337 = vmatmul.mubr.f32.gmra.mrb[0].mxu0 %v2270
    %v2338 = vpop.f32.mrb[0].mxu0
    %v2339 = vadd.f32 0.0, %v2338
    %v2340 = vpop.f32.mrb[0].mxu0
    %2341 = vdwg.mxu0
    %v2343 = vsel %vm2122, %v2117, 0
    %2345 = vmatprep.subr.mxu0 0.0
    %2346 = vmatpush1.msra.mxu0 %v2121
    %2347 = vmatprep.subr.mxu0 0.0
    %2348 = vmatpush1.msra.mxu0 0.0
    %2349 = vmatprep.subr.mxu0 0.0
    %2350 = vmatpush1.msra.mxu0 0.0
    %2351 = vmatprep.subr.mxu0 0.0
    %2352 = vmatpush1.msra.mxu0 0.0
    %2353 = vmatprep.subr.mxu0 0.0
    %2354 = vmatpush1.msra.mxu0 0.0
    %2355 = vmatprep.subr.mxu0 0.0
    %2356 = vmatpush1.msra.mxu0 0.0
    %2357 = vmatprep.subr.mxu0 0.0
    %2358 = vmatpush1.msra.mxu0 0.0
    %2359 = vmatprep.subr.mxu0 0.0
    %2360 = vmatpush1.msra.mxu0 0.0
    %2361 = vmatprep.subr.mxu0 0.0
    %2362 = vmatpush1.msra.mxu0 0.0
    %2363 = vmatprep.subr.mxu0 0.0
    %2364 = vmatpush1.msra.mxu0 0.0
    %2365 = vmatprep.subr.mxu0 0.0
    %2366 = vmatpush1.msra.mxu0 0.0
    %2367 = vmatprep.subr.mxu0 0.0
    %2368 = vmatpush1.msra.mxu0 0.0
    %2369 = vmatprep.subr.mxu0 0.0
    %2370 = vmatpush1.msra.mxu0 0.0
    %2371 = vmatprep.subr.mxu0 0.0
    %2372 = vmatpush1.msra.mxu0 0.0
    %2373 = vmatprep.subr.mxu0 0.0
    %2374 = vmatpush1.msra.mxu0 0.0
    %2375 = vmatprep.subr.mxu0 0.0
    %2376 = vmatpush1.msra.mxu0 0.0
    %2377 = vmatprep.subr.mxu0 0.0
    %2378 = vmatpush1.msra.mxu0 0.0
    %2379 = vmatprep.subr.mxu0 0.0
    %2380 = vmatpush1.msra.mxu0 0.0
    %2381 = vmatprep.subr.mxu0 0.0
    %2382 = vmatpush1.msra.mxu0 0.0
    %2383 = vmatprep.subr.mxu0 0.0
    %2384 = vmatpush1.msra.mxu0 0.0
    %2385 = vmatprep.subr.mxu0 0.0
    %2386 = vmatpush1.msra.mxu0 0.0
    %2387 = vmatprep.subr.mxu0 0.0
    %2388 = vmatpush1.msra.mxu0 0.0
    %2389 = vmatprep.subr.mxu0 0.0
    %2390 = vmatpush1.msra.mxu0 0.0
    %2391 = vmatprep.subr.mxu0 0.0
    %2392 = vmatpush1.msra.mxu0 0.0
    %2393 = vmatprep.subr.mxu0 0.0
    %2394 = vmatpush1.msra.mxu0 0.0
    %2395 = vmatprep.subr.mxu0 0.0
    %2396 = vmatpush1.msra.mxu0 0.0
    %2397 = vmatprep.subr.mxu0 0.0
    %2398 = vmatpush1.msra.mxu0 0.0
    %2399 = vmatprep.subr.mxu0 0.0
    %2400 = vmatpush1.msra.mxu0 0.0
    %2401 = vmatprep.subr.mxu0 0.0
    %2402 = vmatpush1.msra.mxu0 0.0
    %2403 = vmatprep.subr.mxu0 0.0
    %2404 = vmatpush1.msra.mxu0 0.0
    %2405 = vmatprep.subr.mxu0 0.0
    %2406 = vmatpush1.msra.mxu0 0.0
    %2407 = vmatprep.subr.mxu0 0.0
    %2408 = vmatpush1.msra.mxu0 0.0
    %2409 = vmatprep.mubr.f32.mxu0 0.0
    %2410 = vmatmul.mubr.f32.gmra.mrb[0].mxu0 %v2343
    %v2411 = vpop.f32.mrb[0].mxu0
    %v2412 = vadd.f32 0.0, %v2411
    %v2413 = vpop.f32.mrb[0].mxu0
    %2414 = vdwg.mxu0
    %v2415 = vsel %vm583, %v2193, 0.0
    %v2416 = vrot.slane %v2339, 7
    %v2417 = vsel %vm1427, %v2416, %v2415
    %v2418 = vsel %vm583, %v2266, 0.0
    %v2419 = vrot.slane %v2412, 7
    %v2420 = vsel %vm1427, %v2419, %v2418
    %v2421 = vld [vmem:[#allocation8] sm:$0xff]
    %v2422 = vld [vmem:[#allocation8 + $0x8] sm:$0xff]
    %v2423 = vld [vmem:[#allocation8 + $0x10] sm:$0xff]
    %v2424 = vld [vmem:[#allocation8 + $0x18] sm:$0xff]
    %v2425 = vld [vmem:[#allocation8 + $0x20] sm:$0xff]
    %v2426 = vld [vmem:[#allocation8 + $0x28] sm:$0xff]
    %v2427 = vld [vmem:[#allocation8 + $0x30] sm:$0xff]
    %v2428 = vld [vmem:[#allocation8 + $0x38] sm:$0xff]
    %v2429 = vld [vmem:[#allocation8 + $0x40] sm:$0xff]
    %v2430 = vld [vmem:[#allocation8 + $0x48] sm:$0xff]
    %v2431 = vld [vmem:[#allocation8 + $0x50] sm:$0xff]
    %v2432 = vld [vmem:[#allocation8 + $0x58] sm:$0xff]
    %v2433 = vld [vmem:[#allocation8 + $0x60] sm:$0xff]
    %v2434 = vld [vmem:[#allocation8 + $0x68] sm:$0xff]
    %v2435 = vld [vmem:[#allocation8 + $0x70] sm:$0xff]
    %v2436 = vld [vmem:[#allocation8 + $0x78] sm:$0xff]
    %v2437 = vld [vmem:[#allocation8 + $0x80] sm:$0xff]
    %v2438 = vld [vmem:[#allocation8 + $0x88] sm:$0xff]
    %v2439 = vld [vmem:[#allocation8 + $0x90] sm:$0xff]
    %v2440 = vld [vmem:[#allocation8 + $0x98] sm:$0xff]
    %v2441 = vld [vmem:[#allocation8 + $0xa0] sm:$0xff]
    %v2442 = vld [vmem:[#allocation8 + $0xa8] sm:$0xff]
    %v2443 = vld [vmem:[#allocation8 + $0xb0] sm:$0xff]
    %v2444 = vld [vmem:[#allocation8 + $0xb8] sm:$0xff]
    %v2445 = vld [vmem:[#allocation8 + $0xc0] sm:$0xff]
    %v2446 = vld [vmem:[#allocation8 + $0xc8] sm:$0xff]
    %v2447 = vld [vmem:[#allocation8 + $0xd0] sm:$0xff]
    %v2448 = vld [vmem:[#allocation8 + $0xd8] sm:$0xff]
    %v2449 = vld [vmem:[#allocation8 + $0xe0] sm:$0xff]
    %v2450 = vld [vmem:[#allocation8 + $0xe8] sm:$0xff]
    %v2451 = vld [vmem:[#allocation8 + $0xf0] sm:$0xff]
    %v2452 = vld [vmem:[#allocation8 + $0xf8] sm:$0xff]
    %v2453 = vld [vmem:[#allocation8 + $0x100] sm:$0xff]
    %v2454 = vld [vmem:[#allocation8 + $0x108] sm:$0xff]
    %v2455 = vld [vmem:[#allocation8 + $0x110] sm:$0xff]
    %v2456 = vld [vmem:[#allocation8 + $0x118] sm:$0xff]
    %v2457 = vld [vmem:[#allocation8 + $0x120] sm:$0xff]
    %v2458 = vld [vmem:[#allocation8 + $0x128] sm:$0xff]
    %v2459 = vld [vmem:[#allocation8 + $0x130] sm:$0xff]
    %v2460 = vld [vmem:[#allocation8 + $0x138] sm:$0xff]
    %v2461 = vld [vmem:[#allocation8 + $0x140] sm:$0xff]
    %v2462 = vld [vmem:[#allocation8 + $0x148] sm:$0xff]
    %v2463 = vld [vmem:[#allocation8 + $0x150] sm:$0xff]
    %v2464 = vld [vmem:[#allocation8 + $0x158] sm:$0xff]
    %v2465 = vld [vmem:[#allocation8 + $0x160] sm:$0xff]
    %v2466 = vld [vmem:[#allocation8 + $0x168] sm:$0xff]
    %v2467 = vld [vmem:[#allocation8 + $0x170] sm:$0xff]
    %v2468 = vld [vmem:[#allocation8 + $0x178] sm:$0xff]
    %v2469 = vld [vmem:[#allocation8 + $0x180] sm:$0xff]
    %v2470 = vld [vmem:[#allocation8 + $0x188] sm:$0xff]
    %v2471 = vld [vmem:[#allocation8 + $0x190] sm:$0xff]
    %v2472 = vld [vmem:[#allocation8 + $0x198] sm:$0xff]
    %v2473 = vld [vmem:[#allocation8 + $0x1a0] sm:$0xff]
    %v2474 = vld [vmem:[#allocation8 + $0x1a8] sm:$0xff]
    %v2475 = vld [vmem:[#allocation8 + $0x1b0] sm:$0xff]
    %v2476 = vld [vmem:[#allocation8 + $0x1b8] sm:$0xff]
    %v2477 = vld [vmem:[#allocation8 + $0x1c0] sm:$0xff]
    %v2478 = vld [vmem:[#allocation8 + $0x1c8] sm:$0xff]
    %v2479 = vld [vmem:[#allocation8 + $0x1d0] sm:$0xff]
    %v2480 = vld [vmem:[#allocation8 + $0x1d8] sm:$0xff]
    %v2481 = vld [vmem:[#allocation8 + $0x1e0] sm:$0xff]
    %v2482 = vld [vmem:[#allocation8 + $0x1e8] sm:$0xff]
    %v2483 = vld [vmem:[#allocation8 + $0x1f0] sm:$0xff]
    %v2484 = vld [vmem:[#allocation8 + $0x1f8] sm:$0xff]
    %2485 = vmatprep.subr.mxu0 %v2422
    %2486 = vmatpush1.msra.mxu0 %v2421
    %2487 = vmatprep.subr.mxu0 %v2424
    %2488 = vmatpush1.msra.mxu0 %v2423
    %2489 = vmatprep.subr.mxu0 %v2426
    %2490 = vmatpush1.msra.mxu0 %v2425
    %2491 = vmatprep.subr.mxu0 %v2428
    %2492 = vmatpush1.msra.mxu0 %v2427
    %2493 = vmatprep.subr.mxu0 %v2430
    %2494 = vmatpush1.msra.mxu0 %v2429
    %2495 = vmatprep.subr.mxu0 %v2432
    %2496 = vmatpush1.msra.mxu0 %v2431
    %2497 = vmatprep.subr.mxu0 %v2434
    %2498 = vmatpush1.msra.mxu0 %v2433
    %2499 = vmatprep.subr.mxu0 %v2436
    %2500 = vmatpush1.msra.mxu0 %v2435
    %2501 = vmatprep.subr.mxu0 %v2438
    %2502 = vmatpush1.msra.mxu0 %v2437
    %2503 = vmatprep.subr.mxu0 %v2440
    %2504 = vmatpush1.msra.mxu0 %v2439
    %2505 = vmatprep.subr.mxu0 %v2442
    %2506 = vmatpush1.msra.mxu0 %v2441
    %2507 = vmatprep.subr.mxu0 %v2444
    %2508 = vmatpush1.msra.mxu0 %v2443
    %2509 = vmatprep.subr.mxu0 %v2446
    %2510 = vmatpush1.msra.mxu0 %v2445
    %2511 = vmatprep.subr.mxu0 %v2448
    %2512 = vmatpush1.msra.mxu0 %v2447
    %2513 = vmatprep.subr.mxu0 %v2450
    %2514 = vmatpush1.msra.mxu0 %v2449
    %2515 = vmatprep.subr.mxu0 %v2452
    %2516 = vmatpush1.msra.mxu0 %v2451
    %2517 = vmatprep.subr.mxu0 %v2454
    %2518 = vmatpush1.msra.mxu0 %v2453
    %2519 = vmatprep.subr.mxu0 %v2456
    %2520 = vmatpush1.msra.mxu0 %v2455
    %2521 = vmatprep.subr.mxu0 %v2458
    %2522 = vmatpush1.msra.mxu0 %v2457
    %2523 = vmatprep.subr.mxu0 %v2460
    %2524 = vmatpush1.msra.mxu0 %v2459
    %2525 = vmatprep.subr.mxu0 %v2462
    %2526 = vmatpush1.msra.mxu0 %v2461
    %2527 = vmatprep.subr.mxu0 %v2464
    %2528 = vmatpush1.msra.mxu0 %v2463
    %2529 = vmatprep.subr.mxu0 %v2466
    %2530 = vmatpush1.msra.mxu0 %v2465
    %2531 = vmatprep.subr.mxu0 %v2468
    %2532 = vmatpush1.msra.mxu0 %v2467
    %2533 = vmatprep.subr.mxu0 %v2470
    %2534 = vmatpush1.msra.mxu0 %v2469
    %2535 = vmatprep.subr.mxu0 %v2472
    %2536 = vmatpush1.msra.mxu0 %v2471
    %2537 = vmatprep.subr.mxu0 %v2474
    %2538 = vmatpush1.msra.mxu0 %v2473
    %2539 = vmatprep.subr.mxu0 %v2476
    %2540 = vmatpush1.msra.mxu0 %v2475
    %2541 = vmatprep.subr.mxu0 %v2478
    %2542 = vmatpush1.msra.mxu0 %v2477
    %2543 = vmatprep.subr.mxu0 %v2480
    %2544 = vmatpush1.msra.mxu0 %v2479
    %2545 = vmatprep.subr.mxu0 %v2482
    %2546 = vmatpush1.msra.mxu0 %v2481
    %2547 = vmatprep.subr.mxu0 %v2484
    %2548 = vmatpush1.msra.mxu0 %v2483
    %2549 = vmatprep.mubr.f32.mxu0 %v2420
    %2550 = vmatmul.mubr.f32.gmra.mrb[0].mxu0 %v2417
    %v2551 = vpop.f32.mrb[0].mxu0
    %v2552 = vadd.f32 0.0, %v2551
    %v2553 = vpop.f32.mrb[0].mxu0
    %v2554 = vadd.f32 0.0, %v2553
    %2555 = vdwg.mxu0
    %v2558 = vcombine.low %v2552, %v2554
    %v2560 = vunpack.c.l.s4 1983009808
    %v2561 = vunpack.c.0.s8 %v2560
    %v2562 = vlaneseq
    %v2563 = vshrl.u32 %v2562, 7
    %v2564 = vsub.s32 %v2561, %v2563
    %v2565 = vrot.slane %v2558, %v2564
    %v2567 = vadd.f32 %v1578, %v2565
    %2568 = vst [vmem:[%s11] sm:$0xf] %v2567
    %s2569 = smul.u32 4, 1
    %s2570 = smul.u32 %s2569, 1
    %s2571 = sshll.u32 %s2570, 4
    %2572 = dma.done [#allocation6], %s2571
    %s2573 = sshll.u32 %s2570, 4
    %2574 = dma.done %s110, %s2573
    // Predicated region
    $region170: #{closed_call.37} parent=1 // pred_check
      _
    $region171: #{closed_call.37} parent=1 // pred_check_branch
      %2576 = sbr.rel (0) target = $region173
    $region172: #{closed_call.37} parent=1 // pred_region
      _
    $region173: #{closed_call.37} parent=1 // pred_fallthru
      _
    // Predicated region
    $region174: #{closed_call.37} parent=1 // pred_check
      _
    $region175: #{closed_call.37} parent=1 // pred_check_branch
      %2578 = sbr.rel (0) target = $region177
    $region176: #{closed_call.37} parent=1 // pred_region
      _
    $region177: #{closed_call.37} parent=1 // pred_fallthru
      _
    %2579 = vsyncpa [#allocation9], 1
  %2580 = vsyncmov [#allocation6]
  %s2581 = vpop.sfrf %2580
  %p2582 = scmp.eq.s32.totalorder %s2581, 0
  %p2583 = pneg %p2582
  %2585 = shalt.err (%p2583)
  %s2586 = scalar_lea.sflag [#allocation6], 1
  %2587 = vsyncmov %s2586
  %s2588 = vpop.sfrf %2587
  %p2589 = scmp.eq.s32.totalorder %s2588, 0
  %p2590 = pneg %p2589
  %2592 = shalt.err (%p2590)

</llo_original>
